<compile_context>
chip_gen: v6e
topology: v6e:2x2x1
jax: 0.10.0
libtpu: 0.0.40
codegen_flags: <defaults>
</compile_context>

<pallas_src>
import numpy as np
import jax
import jax.numpy as jnp
from jax import lax
from jax.experimental import pallas as pl
from jax.experimental.pallas import tpu as pltpu


# ----------------------------------------------------------------------------
# Host-side (init-time) weight preparation
# ----------------------------------------------------------------------------

def _conv_band_matrices(w, w_in):
    """Turn an OIHW conv weight into KH banded GEMM matrices.

    Activations use an (H, W*C) layout: act2d[h, w*C + c] = act[c, h, w].
    For each kernel row kh, band[kh] has shape (W_in*C_in, W_out*C_out) with
        band[kh][w_i*C_in + ci, w_o*C_out + co] = w[co, ci, kh, w_i - w_o]
    (zero outside 0 <= w_i - w_o < KW), so that
        sum_kh  act2d[kh + i, :] @ band[kh]
    equals the valid, stride-1 conv output row i in the same (H, W*C) layout.
    """
    c_out, c_in, k_h, k_w = w.shape
    w_out = w_in - k_w + 1
    wo_idx = jnp.arange(w_out)
    bands = []
    for kh in range(k_h):
        band = jnp.zeros((w_in, w_out, c_in, c_out), w.dtype)
        for kw in range(k_w):
            blk = w[:, :, kh, kw].T                                     # (C_in, C_out)
            upd = jnp.broadcast_to(blk[None, :, :], (w_out, c_in, c_out))
            band = band.at[wo_idx + kw, wo_idx, :, :].set(upd)
        band = band.transpose(0, 2, 1, 3).reshape(w_in * c_in, w_out * c_out)
        bands.append(band)
    return jnp.stack(bands, axis=0)             # (KH, W_in*C_in, W_out*C_out)


def _pool_selectors(h_out, w_out, c):
    """0/1 matrices implementing the stride-2 decimation of a 2x2 max-pool
    on the (H, W*C) layout (applied via matmul -> no strided slices)."""
    h_p, w_p = h_out // 2, w_out // 2
    sel_w = np.zeros(((w_out - 1) * c, w_p * c), np.float32)
    for pj in range(w_p):
        for cc in range(c):
            sel_w[(2 * pj) * c + cc, pj * c + cc] = 1.0
    sel_h = np.zeros((h_p, h_out - 1), np.float32)
    for pi in range(h_p):
        sel_h[pi, 2 * pi] = 1.0
    return jnp.asarray(sel_w), jnp.asarray(sel_h)


# ----------------------------------------------------------------------------
# Fused Pallas kernel (one grid step == one image, everything in VMEM)
# ----------------------------------------------------------------------------

def _conv_relu_pool_block(x2d, band_ref, bias_ref, selw_ref, selh_ref,
                          k_h, h_out, c_out):
    """conv(valid, stride 1) + bias + ReLU + 2x2/2 max-pool on an (H, W*C) slab."""
    f32 = jnp.float32
    acc = jnp.dot(x2d[0:h_out, :], band_ref[0], preferred_element_type=f32)
    for kh in range(1, k_h):
        acc = acc + jnp.dot(x2d[kh:kh + h_out, :], band_ref[kh],
                            preferred_element_type=f32)
    y = jnp.maximum(acc + bias_ref[...], 0.0)            # (h_out, w_out*c_out)
    woc = y.shape[1]
    # max over horizontally adjacent output columns (same channel): lanes l, l+C
    t = jnp.maximum(y[:, :woc - c_out], y[:, c_out:])
    # stride-2 column decimation as a 0/1 selection matmul (MXU, lane-dense)
    t = jnp.dot(t, selw_ref[...], preferred_element_type=f32)
    # max over vertically adjacent rows, then stride-2 row decimation
    r = jnp.maximum(t[:h_out - 1, :], t[1:, :])
    return jnp.dot(selh_ref[...], r, preferred_element_type=f32)


def _lenet_fused_kernel(x_ref,
                        band1_ref, bias1_ref, selw1_ref, selh1_ref,
                        band2_ref, bias2_ref, selw2_ref, selh2_ref,
                        fc1w_ref, fc1b_ref, fc2w_ref, fc2b_ref,
                        fc3w_ref, fc3b_ref,
                        out_ref):
    f32 = jnp.float32
    x2d = x_ref[0, 0]                                             # (32, 32) == (H, W*Cin), Cin=1
    p1 = _conv_relu_pool_block(x2d, band1_ref, bias1_ref, selw1_ref, selh1_ref,
                               k_h=5, h_out=28, c_out=6)          # (14, 14*6)
    p2 = _conv_relu_pool_block(p1, band2_ref, bias2_ref, selw2_ref, selh2_ref,
                               k_h=5, h_out=10, c_out=16)         # (5, 5*16)
    # fc1: contract over both dims of p2 via 5 row-sliced GEMMs (no reshape
    # inside the kernel; torch.flatten's NCHW ordering is folded into fc1w).
    h = jnp.dot(p2[0:1, :], fc1w_ref[0], preferred_element_type=f32)
    for i in range(1, 5):
        h = h + jnp.dot(p2[i:i + 1, :], fc1w_ref[i], preferred_element_type=f32)
    h = jnp.maximum(h + fc1b_ref[...], 0.0)                       # (1, 120)
    h = jnp.maximum(jnp.dot(h, fc2w_ref[...], preferred_element_type=f32)
                    + fc2b_ref[...], 0.0)                         # (1, 84)
    out = jnp.dot(h, fc3w_ref[...], preferred_element_type=f32) + fc3b_ref[...]
    out_ref[0] = out.astype(out_ref.dtype)                        # (1, 10)


# ----------------------------------------------------------------------------
# Parameters / forward
# ----------------------------------------------------------------------------

def _uniform(key, shape, fan_in):
    bound = 1.0 / jnp.sqrt(jnp.float32(fan_in))
    return jax.random.uniform(key, shape, jnp.float32, -bound, bound)


def init_params(key):
    ks = jax.random.split(key, 10)
    return {
        "conv1_w": _uniform(ks[0], (6, 1, 5, 5), 1 * 5 * 5),
        "conv1_b": _uniform(ks[1], (6,), 1 * 5 * 5),
        "conv2_w": _uniform(ks[2], (16, 6, 5, 5), 6 * 5 * 5),
        "conv2_b": _uniform(ks[3], (16,), 6 * 5 * 5),
        "fc1_w": _uniform(ks[4], (120, 400), 400),
        "fc1_b": _uniform(ks[5], (120,), 400),
        "fc2_w": _uniform(ks[6], (84, 120), 120),
        "fc2_b": _uniform(ks[7], (84,), 120),
        "fc3_w": _uniform(ks[8], (10, 84), 84),
        "fc3_b": _uniform(ks[9], (10,), 84),
    }


def prepare_kernel_params(params):
    """One-time conversion of PyTorch-layout params into kernel-ready operands."""
    kp = {}
    kp["band1"] = _conv_band_matrices(params["conv1_w"], w_in=32)      # (5, 32, 168)
    kp["bias1"] = jnp.tile(params["conv1_b"], 28)[None, :]             # (1, 168)
    kp["selw1"], kp["selh1"] = _pool_selectors(28, 28, 6)              # (162,84), (14,27)
    kp["band2"] = _conv_band_matrices(params["conv2_w"], w_in=14)      # (5, 84, 160)
    kp["bias2"] = jnp.tile(params["conv2_b"], 10)[None, :]             # (1, 160)
    kp["selw2"], kp["selh2"] = _pool_selectors(10, 10, 16)             # (144,80), (5,9)
    # fc1 acts on the pooled (H=5, W*C=80) layout; fold torch's NCHW flatten
    # permutation into the weight once, stored as (H, W*C, 120).
    kp["fc1w"] = jnp.transpose(params["fc1_w"].reshape(120, 16, 5, 5),
                               (2, 3, 1, 0)).reshape(5, 5 * 16, 120)
    kp["fc1b"] = params["fc1_b"][None, :]
    kp["fc2w"] = params["fc2_w"].T                                     # (120, 84)
    kp["fc2b"] = params["fc2_b"][None, :]
    kp["fc3w"] = params["fc3_w"].T                                     # (84, 10)
    kp["fc3b"] = params["fc3_b"][None, :]
    return kp


@jax.jit
def net_forward(kp, x):
    """x: (B, 1, 32, 32) float32 NCHW -> (B, 10) float32."""
    batch = x.shape[0]
    weight_list = [
        kp["band1"], kp["bias1"], kp["selw1"], kp["selh1"],
        kp["band2"], kp["bias2"], kp["selw2"], kp["selh2"],
        kp["fc1w"], kp["fc1b"], kp["fc2w"], kp["fc2b"], kp["fc3w"], kp["fc3b"],
    ]

    def _const_spec(a):
        # Full array resident in VMEM; constant block index => fetched once.
        return pl.BlockSpec(a.shape, lambda b, _nd=a.ndim: (0,) * _nd)

    out = pl.pallas_call(
        _lenet_fused_kernel,
        out_shape=jax.ShapeDtypeStruct((batch, 1, 10), jnp.float32),
        grid=(batch,),
        in_specs=[pl.BlockSpec((1, 1, 32, 32), lambda b: (b, 0, 0, 0))]
                 + [_const_spec(a) for a in weight_list],
        out_specs=pl.BlockSpec((1, 1, 10), lambda b: (b, 0, 0)),
        compiler_params=pltpu.CompilerParams(
            dimension_semantics=("parallel",),          # megacore split on v7x
            vmem_limit_bytes=32 * 1024 * 1024,          # tiny footprint, fits all gens
        ),
    )(x, *weight_list)
    return out.reshape(batch, 10)


# ----------------------------------------------------------------------------
# Plain-JAX reference (for correctness check)
# ----------------------------------------------------------------------------

def reference_forward(params, x):
    def conv(v, w, b):
        y = lax.conv_general_dilated(v, w, (1, 1), "VALID",
                                     dimension_numbers=("NCHW", "OIHW", "NCHW"))
        return y + b[None, :, None, None]

    def pool(v):
        return lax.reduce_window(v, -jnp.inf, lax.max,
                                 (1, 1, 2, 2), (1, 1, 2, 2), "VALID")

    y = pool(jax.nn.relu(conv(x, params["conv1_w"], params["conv1_b"])))
    y = pool(jax.nn.relu(conv(y, params["conv2_w"], params["conv2_b"])))
    y = y.reshape(y.shape[0], -1)
    y = jax.nn.relu(y @ params["fc1_w"].T + params["fc1_b"])
    y = jax.nn.relu(y @ params["fc2_w"].T + params["fc2_b"])
    return y @ params["fc3_w"].T + params["fc3_b"]


if __name__ == "__main__":
    key = jax.random.PRNGKey(0)
    pkey, xkey = jax.random.split(key)
    params = init_params(pkey)
    kparams = prepare_kernel_params(params)     # one-time weight prep (outside forward)

    # Net requires 32x32 single-channel input so pool2 yields 16*5*5 features.
    x = jax.random.normal(xkey, (2, 1, 32, 32), jnp.float32)

    out = jax.block_until_ready(net_forward(kparams, x))
    assert out.shape == (2, 10), out.shape
    assert out.dtype == jnp.float32

    ref = jax.block_until_ready(reference_forward(params, x))
    max_err = float(jnp.max(jnp.abs(out - ref)))
    assert jnp.allclose(out, ref, rtol=5e-2, atol=5e-2), f"max abs err={max_err}"
    print("KERNEL_OK")
</pallas_src>

<mosaic_0001>
module attributes {stable_mosaic.version = 11 : i64} {
  func.func @_lenet_fused_kernel(%arg0: i32, %arg1: memref<1x1x32x32xf32, #tpu.memory_space<vmem>>, %arg2: memref<5x32x168xf32, #tpu.memory_space<vmem>>, %arg3: memref<1x168xf32, #tpu.memory_space<vmem>>, %arg4: memref<162x84xf32, #tpu.memory_space<vmem>>, %arg5: memref<14x27xf32, #tpu.memory_space<vmem>>, %arg6: memref<5x84x160xf32, #tpu.memory_space<vmem>>, %arg7: memref<1x160xf32, #tpu.memory_space<vmem>>, %arg8: memref<144x80xf32, #tpu.memory_space<vmem>>, %arg9: memref<5x9xf32, #tpu.memory_space<vmem>>, %arg10: memref<5x80x120xf32, #tpu.memory_space<vmem>>, %arg11: memref<1x120xf32, #tpu.memory_space<vmem>>, %arg12: memref<120x84xf32, #tpu.memory_space<vmem>>, %arg13: memref<1x84xf32, #tpu.memory_space<vmem>>, %arg14: memref<84x10xf32, #tpu.memory_space<vmem>>, %arg15: memref<1x10xf32, #tpu.memory_space<vmem>>, %arg16: memref<1x1x10xf32, #tpu.memory_space<vmem>>) attributes {dimension_semantics = [#tpu.dimension_semantics<parallel>], iteration_bounds = array<i64: 2>, scalar_prefetch = 0 : i64, scratch_operands = 0 : i64, tpu.core_type = #tpu.core_type<tc>, window_params = [{transform_indices = @transform_0, window_bounds = array<i64: 1, 1, 32, 32>}, {pipeline_mode = #tpu.pipeline_mode<synchronous>, transform_indices = @transform_1, window_bounds = array<i64: 5, 32, 168>}, {pipeline_mode = #tpu.pipeline_mode<synchronous>, transform_indices = @transform_2, window_bounds = array<i64: 1, 168>}, {pipeline_mode = #tpu.pipeline_mode<synchronous>, transform_indices = @transform_3, window_bounds = array<i64: 162, 84>}, {pipeline_mode = #tpu.pipeline_mode<synchronous>, transform_indices = @transform_4, window_bounds = array<i64: 14, 27>}, {pipeline_mode = #tpu.pipeline_mode<synchronous>, transform_indices = @transform_5, window_bounds = array<i64: 5, 84, 160>}, {pipeline_mode = #tpu.pipeline_mode<synchronous>, transform_indices = @transform_6, window_bounds = array<i64: 1, 160>}, {pipeline_mode = #tpu.pipeline_mode<synchronous>, transform_indices = @transform_7, window_bounds = array<i64: 144, 80>}, {pipeline_mode = #tpu.pipeline_mode<synchronous>, transform_indices = @transform_8, window_bounds = array<i64: 5, 9>}, {pipeline_mode = #tpu.pipeline_mode<synchronous>, transform_indices = @transform_9, window_bounds = array<i64: 5, 80, 120>}, {pipeline_mode = #tpu.pipeline_mode<synchronous>, transform_indices = @transform_10, window_bounds = array<i64: 1, 120>}, {pipeline_mode = #tpu.pipeline_mode<synchronous>, transform_indices = @transform_11, window_bounds = array<i64: 120, 84>}, {pipeline_mode = #tpu.pipeline_mode<synchronous>, transform_indices = @transform_12, window_bounds = array<i64: 1, 84>}, {pipeline_mode = #tpu.pipeline_mode<synchronous>, transform_indices = @transform_13, window_bounds = array<i64: 84, 10>}, {pipeline_mode = #tpu.pipeline_mode<synchronous>, transform_indices = @transform_14, window_bounds = array<i64: 1, 10>}, {transform_indices = @transform_15, window_bounds = array<i64: 1, 1, 10>}]} {
    %c0 = arith.constant 0 : index
    %c0_0 = arith.constant 0 : index
    %c0_1 = arith.constant 0 : index
    %c0_2 = arith.constant 0 : index
    %0 = vector.load %arg1[%c0, %c0_0, %c0_1, %c0_2] : memref<1x1x32x32xf32, #tpu.memory_space<vmem>>, vector<1x1x32x32xf32>
    %1 = vector.shape_cast %0 : vector<1x1x32x32xf32> to vector<32x32xf32>
    %2 = vector.extract_strided_slice %1 {offsets = [0, 0], sizes = [28, 32], strides = [1, 1]} : vector<32x32xf32> to vector<28x32xf32>
    %c0_3 = arith.constant 0 : index
    %c0_4 = arith.constant 0 : index
    %c0_5 = arith.constant 0 : index
    %3 = vector.load %arg2[%c0_3, %c0_4, %c0_5] : memref<5x32x168xf32, #tpu.memory_space<vmem>>, vector<1x32x168xf32>
    %4 = vector.shape_cast %3 : vector<1x32x168xf32> to vector<32x168xf32>
    %cst = arith.constant dense<0.000000e+00> : vector<28x168xf32>
    %5 = tpu.matmul %2, %4, %cst {dimension_numbers = #tpu.dot_dimension_numbers<[1], [0], [0], [1], [0, 0, 1, 1], [], []>} : vector<28x32xf32>, vector<32x168xf32>, vector<28x168xf32> -> vector<28x168xf32>
    %6 = vector.extract_strided_slice %1 {offsets = [1, 0], sizes = [28, 32], strides = [1, 1]} : vector<32x32xf32> to vector<28x32xf32>
    %c1 = arith.constant 1 : index
    %c0_6 = arith.constant 0 : index
    %c0_7 = arith.constant 0 : index
    %7 = vector.load %arg2[%c1, %c0_6, %c0_7] : memref<5x32x168xf32, #tpu.memory_space<vmem>>, vector<1x32x168xf32>
    %8 = vector.shape_cast %7 : vector<1x32x168xf32> to vector<32x168xf32>
    %cst_8 = arith.constant dense<0.000000e+00> : vector<28x168xf32>
    %9 = tpu.matmul %6, %8, %cst_8 {dimension_numbers = #tpu.dot_dimension_numbers<[1], [0], [0], [1], [0, 0, 1, 1], [], []>} : vector<28x32xf32>, vector<32x168xf32>, vector<28x168xf32> -> vector<28x168xf32>
    %10 = arith.addf %5, %9 : vector<28x168xf32>
    %11 = vector.extract_strided_slice %1 {offsets = [2, 0], sizes = [28, 32], strides = [1, 1]} : vector<32x32xf32> to vector<28x32xf32>
    %c2 = arith.constant 2 : index
    %c0_9 = arith.constant 0 : index
    %c0_10 = arith.constant 0 : index
    %12 = vector.load %arg2[%c2, %c0_9, %c0_10] : memref<5x32x168xf32, #tpu.memory_space<vmem>>, vector<1x32x168xf32>
    %13 = vector.shape_cast %12 : vector<1x32x168xf32> to vector<32x168xf32>
    %cst_11 = arith.constant dense<0.000000e+00> : vector<28x168xf32>
    %14 = tpu.matmul %11, %13, %cst_11 {dimension_numbers = #tpu.dot_dimension_numbers<[1], [0], [0], [1], [0, 0, 1, 1], [], []>} : vector<28x32xf32>, vector<32x168xf32>, vector<28x168xf32> -> vector<28x168xf32>
    %15 = arith.addf %10, %14 : vector<28x168xf32>
    %16 = vector.extract_strided_slice %1 {offsets = [3, 0], sizes = [28, 32], strides = [1, 1]} : vector<32x32xf32> to vector<28x32xf32>
    %c3 = arith.constant 3 : index
    %c0_12 = arith.constant 0 : index
    %c0_13 = arith.constant 0 : index
    %17 = vector.load %arg2[%c3, %c0_12, %c0_13] : memref<5x32x168xf32, #tpu.memory_space<vmem>>, vector<1x32x168xf32>
    %18 = vector.shape_cast %17 : vector<1x32x168xf32> to vector<32x168xf32>
    %cst_14 = arith.constant dense<0.000000e+00> : vector<28x168xf32>
    %19 = tpu.matmul %16, %18, %cst_14 {dimension_numbers = #tpu.dot_dimension_numbers<[1], [0], [0], [1], [0, 0, 1, 1], [], []>} : vector<28x32xf32>, vector<32x168xf32>, vector<28x168xf32> -> vector<28x168xf32>
    %20 = arith.addf %15, %19 : vector<28x168xf32>
    %21 = vector.extract_strided_slice %1 {offsets = [4, 0], sizes = [28, 32], strides = [1, 1]} : vector<32x32xf32> to vector<28x32xf32>
    %c4 = arith.constant 4 : index
    %c0_15 = arith.constant 0 : index
    %c0_16 = arith.constant 0 : index
    %22 = vector.load %arg2[%c4, %c0_15, %c0_16] : memref<5x32x168xf32, #tpu.memory_space<vmem>>, vector<1x32x168xf32>
    %23 = vector.shape_cast %22 : vector<1x32x168xf32> to vector<32x168xf32>
    %cst_17 = arith.constant dense<0.000000e+00> : vector<28x168xf32>
    %24 = tpu.matmul %21, %23, %cst_17 {dimension_numbers = #tpu.dot_dimension_numbers<[1], [0], [0], [1], [0, 0, 1, 1], [], []>} : vector<28x32xf32>, vector<32x168xf32>, vector<28x168xf32> -> vector<28x168xf32>
    %25 = arith.addf %20, %24 : vector<28x168xf32>
    %c0_18 = arith.constant 0 : index
    %c0_19 = arith.constant 0 : index
    %26 = vector.load %arg3[%c0_18, %c0_19] : memref<1x168xf32, #tpu.memory_space<vmem>>, vector<1x168xf32>
    %27 = vector.broadcast %26 : vector<1x168xf32> to vector<28x168xf32>
    %28 = arith.addf %25, %27 : vector<28x168xf32>
    %cst_20 = arith.constant 0.000000e+00 : f32
    %29 = vector.broadcast %cst_20 : f32 to vector<28x168xf32>
    %30 = arith.maximumf %28, %29 : vector<28x168xf32>
    %31 = vector.extract_strided_slice %30 {offsets = [0, 0], sizes = [28, 162], strides = [1, 1]} : vector<28x168xf32> to vector<28x162xf32>
    %32 = vector.extract_strided_slice %30 {offsets = [0, 6], sizes = [28, 162], strides = [1, 1]} : vector<28x168xf32> to vector<28x162xf32>
    %33 = arith.maximumf %31, %32 : vector<28x162xf32>
    %c0_21 = arith.constant 0 : index
    %c0_22 = arith.constant 0 : index
    %34 = vector.load %arg4[%c0_21, %c0_22] : memref<162x84xf32, #tpu.memory_space<vmem>>, vector<162x84xf32>
    %cst_23 = arith.constant dense<0.000000e+00> : vector<28x84xf32>
    %35 = tpu.matmul %33, %34, %cst_23 {dimension_numbers = #tpu.dot_dimension_numbers<[1], [0], [0], [1], [0, 0, 1, 1], [], []>} : vector<28x162xf32>, vector<162x84xf32>, vector<28x84xf32> -> vector<28x84xf32>
    %36 = vector.extract_strided_slice %35 {offsets = [0, 0], sizes = [27, 84], strides = [1, 1]} : vector<28x84xf32> to vector<27x84xf32>
    %37 = vector.extract_strided_slice %35 {offsets = [1, 0], sizes = [27, 84], strides = [1, 1]} : vector<28x84xf32> to vector<27x84xf32>
    %38 = arith.maximumf %36, %37 : vector<27x84xf32>
    %c0_24 = arith.constant 0 : index
    %c0_25 = arith.constant 0 : index
    %39 = vector.load %arg5[%c0_24, %c0_25] : memref<14x27xf32, #tpu.memory_space<vmem>>, vector<14x27xf32>
    %cst_26 = arith.constant dense<0.000000e+00> : vector<14x84xf32>
    %40 = tpu.matmul %39, %38, %cst_26 {dimension_numbers = #tpu.dot_dimension_numbers<[1], [0], [0], [1], [0, 0, 1, 1], [], []>} : vector<14x27xf32>, vector<27x84xf32>, vector<14x84xf32> -> vector<14x84xf32>
    %41 = vector.extract_strided_slice %40 {offsets = [0, 0], sizes = [10, 84], strides = [1, 1]} : vector<14x84xf32> to vector<10x84xf32>
    %c0_27 = arith.constant 0 : index
    %c0_28 = arith.constant 0 : index
    %c0_29 = arith.constant 0 : index
    %42 = vector.load %arg6[%c0_27, %c0_28, %c0_29] : memref<5x84x160xf32, #tpu.memory_space<vmem>>, vector<1x84x160xf32>
    %43 = vector.shape_cast %42 : vector<1x84x160xf32> to vector<84x160xf32>
    %cst_30 = arith.constant dense<0.000000e+00> : vector<10x160xf32>
    %44 = tpu.matmul %41, %43, %cst_30 {dimension_numbers = #tpu.dot_dimension_numbers<[1], [0], [0], [1], [0, 0, 1, 1], [], []>} : vector<10x84xf32>, vector<84x160xf32>, vector<10x160xf32> -> vector<10x160xf32>
    %45 = vector.extract_strided_slice %40 {offsets = [1, 0], sizes = [10, 84], strides = [1, 1]} : vector<14x84xf32> to vector<10x84xf32>
    %c1_31 = arith.constant 1 : index
    %c0_32 = arith.constant 0 : index
    %c0_33 = arith.constant 0 : index
    %46 = vector.load %arg6[%c1_31, %c0_32, %c0_33] : memref<5x84x160xf32, #tpu.memory_space<vmem>>, vector<1x84x160xf32>
    %47 = vector.shape_cast %46 : vector<1x84x160xf32> to vector<84x160xf32>
    %cst_34 = arith.constant dense<0.000000e+00> : vector<10x160xf32>
    %48 = tpu.matmul %45, %47, %cst_34 {dimension_numbers = #tpu.dot_dimension_numbers<[1], [0], [0], [1], [0, 0, 1, 1], [], []>} : vector<10x84xf32>, vector<84x160xf32>, vector<10x160xf32> -> vector<10x160xf32>
    %49 = arith.addf %44, %48 : vector<10x160xf32>
    %50 = vector.extract_strided_slice %40 {offsets = [2, 0], sizes = [10, 84], strides = [1, 1]} : vector<14x84xf32> to vector<10x84xf32>
    %c2_35 = arith.constant 2 : index
    %c0_36 = arith.constant 0 : index
    %c0_37 = arith.constant 0 : index
    %51 = vector.load %arg6[%c2_35, %c0_36, %c0_37] : memref<5x84x160xf32, #tpu.memory_space<vmem>>, vector<1x84x160xf32>
    %52 = vector.shape_cast %51 : vector<1x84x160xf32> to vector<84x160xf32>
    %cst_38 = arith.constant dense<0.000000e+00> : vector<10x160xf32>
    %53 = tpu.matmul %50, %52, %cst_38 {dimension_numbers = #tpu.dot_dimension_numbers<[1], [0], [0], [1], [0, 0, 1, 1], [], []>} : vector<10x84xf32>, vector<84x160xf32>, vector<10x160xf32> -> vector<10x160xf32>
    %54 = arith.addf %49, %53 : vector<10x160xf32>
    %55 = vector.extract_strided_slice %40 {offsets = [3, 0], sizes = [10, 84], strides = [1, 1]} : vector<14x84xf32> to vector<10x84xf32>
    %c3_39 = arith.constant 3 : index
    %c0_40 = arith.constant 0 : index
    %c0_41 = arith.constant 0 : index
    %56 = vector.load %arg6[%c3_39, %c0_40, %c0_41] : memref<5x84x160xf32, #tpu.memory_space<vmem>>, vector<1x84x160xf32>
    %57 = vector.shape_cast %56 : vector<1x84x160xf32> to vector<84x160xf32>
    %cst_42 = arith.constant dense<0.000000e+00> : vector<10x160xf32>
    %58 = tpu.matmul %55, %57, %cst_42 {dimension_numbers = #tpu.dot_dimension_numbers<[1], [0], [0], [1], [0, 0, 1, 1], [], []>} : vector<10x84xf32>, vector<84x160xf32>, vector<10x160xf32> -> vector<10x160xf32>
    %59 = arith.addf %54, %58 : vector<10x160xf32>
    %60 = vector.extract_strided_slice %40 {offsets = [4, 0], sizes = [10, 84], strides = [1, 1]} : vector<14x84xf32> to vector<10x84xf32>
    %c4_43 = arith.constant 4 : index
    %c0_44 = arith.constant 0 : index
    %c0_45 = arith.constant 0 : index
    %61 = vector.load %arg6[%c4_43, %c0_44, %c0_45] : memref<5x84x160xf32, #tpu.memory_space<vmem>>, vector<1x84x160xf32>
    %62 = vector.shape_cast %61 : vector<1x84x160xf32> to vector<84x160xf32>
    %cst_46 = arith.constant dense<0.000000e+00> : vector<10x160xf32>
    %63 = tpu.matmul %60, %62, %cst_46 {dimension_numbers = #tpu.dot_dimension_numbers<[1], [0], [0], [1], [0, 0, 1, 1], [], []>} : vector<10x84xf32>, vector<84x160xf32>, vector<10x160xf32> -> vector<10x160xf32>
    %64 = arith.addf %59, %63 : vector<10x160xf32>
    %c0_47 = arith.constant 0 : index
    %c0_48 = arith.constant 0 : index
    %65 = vector.load %arg7[%c0_47, %c0_48] : memref<1x160xf32, #tpu.memory_space<vmem>>, vector<1x160xf32>
    %66 = vector.broadcast %65 : vector<1x160xf32> to vector<10x160xf32>
    %67 = arith.addf %64, %66 : vector<10x160xf32>
    %cst_49 = arith.constant 0.000000e+00 : f32
    %68 = vector.broadcast %cst_49 : f32 to vector<10x160xf32>
    %69 = arith.maximumf %67, %68 : vector<10x160xf32>
    %70 = vector.extract_strided_slice %69 {offsets = [0, 0], sizes = [10, 144], strides = [1, 1]} : vector<10x160xf32> to vector<10x144xf32>
    %71 = vector.extract_strided_slice %69 {offsets = [0, 16], sizes = [10, 144], strides = [1, 1]} : vector<10x160xf32> to vector<10x144xf32>
    %72 = arith.maximumf %70, %71 : vector<10x144xf32>
    %c0_50 = arith.constant 0 : index
    %c0_51 = arith.constant 0 : index
    %73 = vector.load %arg8[%c0_50, %c0_51] : memref<144x80xf32, #tpu.memory_space<vmem>>, vector<144x80xf32>
    %cst_52 = arith.constant dense<0.000000e+00> : vector<10x80xf32>
    %74 = tpu.matmul %72, %73, %cst_52 {dimension_numbers = #tpu.dot_dimension_numbers<[1], [0], [0], [1], [0, 0, 1, 1], [], []>} : vector<10x144xf32>, vector<144x80xf32>, vector<10x80xf32> -> vector<10x80xf32>
    %75 = vector.extract_strided_slice %74 {offsets = [0, 0], sizes = [9, 80], strides = [1, 1]} : vector<10x80xf32> to vector<9x80xf32>
    %76 = vector.extract_strided_slice %74 {offsets = [1, 0], sizes = [9, 80], strides = [1, 1]} : vector<10x80xf32> to vector<9x80xf32>
    %77 = arith.maximumf %75, %76 : vector<9x80xf32>
    %c0_53 = arith.constant 0 : index
    %c0_54 = arith.constant 0 : index
    %78 = vector.load %arg9[%c0_53, %c0_54] : memref<5x9xf32, #tpu.memory_space<vmem>>, vector<5x9xf32>
    %cst_55 = arith.constant dense<0.000000e+00> : vector<5x80xf32>
    %79 = tpu.matmul %78, %77, %cst_55 {dimension_numbers = #tpu.dot_dimension_numbers<[1], [0], [0], [1], [0, 0, 1, 1], [], []>} : vector<5x9xf32>, vector<9x80xf32>, vector<5x80xf32> -> vector<5x80xf32>
    %80 = vector.extract_strided_slice %79 {offsets = [0, 0], sizes = [1, 80], strides = [1, 1]} : vector<5x80xf32> to vector<1x80xf32>
    %c0_56 = arith.constant 0 : index
    %c0_57 = arith.constant 0 : index
    %c0_58 = arith.constant 0 : index
    %81 = vector.load %arg10[%c0_56, %c0_57, %c0_58] : memref<5x80x120xf32, #tpu.memory_space<vmem>>, vector<1x80x120xf32>
    %82 = vector.shape_cast %81 : vector<1x80x120xf32> to vector<80x120xf32>
    %cst_59 = arith.constant dense<0.000000e+00> : vector<1x120xf32>
    %83 = tpu.matmul %80, %82, %cst_59 {dimension_numbers = #tpu.dot_dimension_numbers<[1], [0], [0], [1], [0, 0, 1, 1], [], []>} : vector<1x80xf32>, vector<80x120xf32>, vector<1x120xf32> -> vector<1x120xf32>
    %84 = vector.extract_strided_slice %79 {offsets = [1, 0], sizes = [1, 80], strides = [1, 1]} : vector<5x80xf32> to vector<1x80xf32>
    %c1_60 = arith.constant 1 : index
    %c0_61 = arith.constant 0 : index
    %c0_62 = arith.constant 0 : index
    %85 = vector.load %arg10[%c1_60, %c0_61, %c0_62] : memref<5x80x120xf32, #tpu.memory_space<vmem>>, vector<1x80x120xf32>
    %86 = vector.shape_cast %85 : vector<1x80x120xf32> to vector<80x120xf32>
    %cst_63 = arith.constant dense<0.000000e+00> : vector<1x120xf32>
    %87 = tpu.matmul %84, %86, %cst_63 {dimension_numbers = #tpu.dot_dimension_numbers<[1], [0], [0], [1], [0, 0, 1, 1], [], []>} : vector<1x80xf32>, vector<80x120xf32>, vector<1x120xf32> -> vector<1x120xf32>
    %88 = arith.addf %83, %87 : vector<1x120xf32>
    %89 = vector.extract_strided_slice %79 {offsets = [2, 0], sizes = [1, 80], strides = [1, 1]} : vector<5x80xf32> to vector<1x80xf32>
    %c2_64 = arith.constant 2 : index
    %c0_65 = arith.constant 0 : index
    %c0_66 = arith.constant 0 : index
    %90 = vector.load %arg10[%c2_64, %c0_65, %c0_66] : memref<5x80x120xf32, #tpu.memory_space<vmem>>, vector<1x80x120xf32>
    %91 = vector.shape_cast %90 : vector<1x80x120xf32> to vector<80x120xf32>
    %cst_67 = arith.constant dense<0.000000e+00> : vector<1x120xf32>
    %92 = tpu.matmul %89, %91, %cst_67 {dimension_numbers = #tpu.dot_dimension_numbers<[1], [0], [0], [1], [0, 0, 1, 1], [], []>} : vector<1x80xf32>, vector<80x120xf32>, vector<1x120xf32> -> vector<1x120xf32>
    %93 = arith.addf %88, %92 : vector<1x120xf32>
    %94 = vector.extract_strided_slice %79 {offsets = [3, 0], sizes = [1, 80], strides = [1, 1]} : vector<5x80xf32> to vector<1x80xf32>
    %c3_68 = arith.constant 3 : index
    %c0_69 = arith.constant 0 : index
    %c0_70 = arith.constant 0 : index
    %95 = vector.load %arg10[%c3_68, %c0_69, %c0_70] : memref<5x80x120xf32, #tpu.memory_space<vmem>>, vector<1x80x120xf32>
    %96 = vector.shape_cast %95 : vector<1x80x120xf32> to vector<80x120xf32>
    %cst_71 = arith.constant dense<0.000000e+00> : vector<1x120xf32>
    %97 = tpu.matmul %94, %96, %cst_71 {dimension_numbers = #tpu.dot_dimension_numbers<[1], [0], [0], [1], [0, 0, 1, 1], [], []>} : vector<1x80xf32>, vector<80x120xf32>, vector<1x120xf32> -> vector<1x120xf32>
    %98 = arith.addf %93, %97 : vector<1x120xf32>
    %99 = vector.extract_strided_slice %79 {offsets = [4, 0], sizes = [1, 80], strides = [1, 1]} : vector<5x80xf32> to vector<1x80xf32>
    %c4_72 = arith.constant 4 : index
    %c0_73 = arith.constant 0 : index
    %c0_74 = arith.constant 0 : index
    %100 = vector.load %arg10[%c4_72, %c0_73, %c0_74] : memref<5x80x120xf32, #tpu.memory_space<vmem>>, vector<1x80x120xf32>
    %101 = vector.shape_cast %100 : vector<1x80x120xf32> to vector<80x120xf32>
    %cst_75 = arith.constant dense<0.000000e+00> : vector<1x120xf32>
    %102 = tpu.matmul %99, %101, %cst_75 {dimension_numbers = #tpu.dot_dimension_numbers<[1], [0], [0], [1], [0, 0, 1, 1], [], []>} : vector<1x80xf32>, vector<80x120xf32>, vector<1x120xf32> -> vector<1x120xf32>
    %103 = arith.addf %98, %102 : vector<1x120xf32>
    %c0_76 = arith.constant 0 : index
    %c0_77 = arith.constant 0 : index
    %104 = vector.load %arg11[%c0_76, %c0_77] : memref<1x120xf32, #tpu.memory_space<vmem>>, vector<1x120xf32>
    %105 = arith.addf %103, %104 : vector<1x120xf32>
    %cst_78 = arith.constant 0.000000e+00 : f32
    %106 = vector.broadcast %cst_78 : f32 to vector<1x120xf32>
    %107 = arith.maximumf %105, %106 : vector<1x120xf32>
    %c0_79 = arith.constant 0 : index
    %c0_80 = arith.constant 0 : index
    %108 = vector.load %arg12[%c0_79, %c0_80] : memref<120x84xf32, #tpu.memory_space<vmem>>, vector<120x84xf32>
    %cst_81 = arith.constant dense<0.000000e+00> : vector<1x84xf32>
    %109 = tpu.matmul %107, %108, %cst_81 {dimension_numbers = #tpu.dot_dimension_numbers<[1], [0], [0], [1], [0, 0, 1, 1], [], []>} : vector<1x120xf32>, vector<120x84xf32>, vector<1x84xf32> -> vector<1x84xf32>
    %c0_82 = arith.constant 0 : index
    %c0_83 = arith.constant 0 : index
    %110 = vector.load %arg13[%c0_82, %c0_83] : memref<1x84xf32, #tpu.memory_space<vmem>>, vector<1x84xf32>
    %111 = arith.addf %109, %110 : vector<1x84xf32>
    %cst_84 = arith.constant 0.000000e+00 : f32
    %112 = vector.broadcast %cst_84 : f32 to vector<1x84xf32>
    %113 = arith.maximumf %111, %112 : vector<1x84xf32>
    %c0_85 = arith.constant 0 : index
    %c0_86 = arith.constant 0 : index
    %114 = vector.load %arg14[%c0_85, %c0_86] : memref<84x10xf32, #tpu.memory_space<vmem>>, vector<84x10xf32>
    %cst_87 = arith.constant dense<0.000000e+00> : vector<1x10xf32>
    %115 = tpu.matmul %113, %114, %cst_87 {dimension_numbers = #tpu.dot_dimension_numbers<[1], [0], [0], [1], [0, 0, 1, 1], [], []>} : vector<1x84xf32>, vector<84x10xf32>, vector<1x10xf32> -> vector<1x10xf32>
    %c0_88 = arith.constant 0 : index
    %c0_89 = arith.constant 0 : index
    %116 = vector.load %arg15[%c0_88, %c0_89] : memref<1x10xf32, #tpu.memory_space<vmem>>, vector<1x10xf32>
    %117 = arith.addf %115, %116 : vector<1x10xf32>
    %c0_90 = arith.constant 0 : index
    %c0_91 = arith.constant 0 : index
    %c0_92 = arith.constant 0 : index
    %118 = vector.load %arg16[%c0_90, %c0_91, %c0_92] : memref<1x1x10xf32, #tpu.memory_space<vmem>>, vector<1x1x10xf32>
    %119 = vector.shape_cast %118 : vector<1x1x10xf32> to vector<1x10xf32>
    %120 = vector.shape_cast %117 : vector<1x10xf32> to vector<1x1x10xf32>
    tpu.vector_store %arg16[%c0_90, %c0_91, %c0_92], %120 {strides = array<i32>} : memref<1x1x10xf32, #tpu.memory_space<vmem>>, vector<1x1x10xf32>,
    return
  }
  func.func @transform_0(%arg0: i32) -> (i32, i32, i32, i32) {
    %c0_i32 = arith.constant 0 : i32
    %c0_i32_0 = arith.constant 0 : i32
    %c0_i32_1 = arith.constant 0 : i32
    %c0_i32_2 = arith.constant 0 : i32
    return %arg0, %c0_i32, %c0_i32_0, %c0_i32_1 : i32, i32, i32, i32
  }
  func.func @transform_1(%arg0: i32) -> (i32, i32, i32) {
    %c0_i32 = arith.constant 0 : i32
    %c0_i32_0 = arith.constant 0 : i32
    %c0_i32_1 = arith.constant 0 : i32
    %c0_i32_2 = arith.constant 0 : i32
    return %c0_i32, %c0_i32_0, %c0_i32_1 : i32, i32, i32
  }
  func.func @transform_2(%arg0: i32) -> (i32, i32) {
    %c0_i32 = arith.constant 0 : i32
    %c0_i32_0 = arith.constant 0 : i32
    %c0_i32_1 = arith.constant 0 : i32
    return %c0_i32, %c0_i32_0 : i32, i32
  }
  func.func @transform_3(%arg0: i32) -> (i32, i32) {
    %c0_i32 = arith.constant 0 : i32
    %c0_i32_0 = arith.constant 0 : i32
    %c0_i32_1 = arith.constant 0 : i32
    return %c0_i32, %c0_i32_0 : i32, i32
  }
  func.func @transform_4(%arg0: i32) -> (i32, i32) {
    %c0_i32 = arith.constant 0 : i32
    %c0_i32_0 = arith.constant 0 : i32
    %c0_i32_1 = arith.constant 0 : i32
    return %c0_i32, %c0_i32_0 : i32, i32
  }
  func.func @transform_5(%arg0: i32) -> (i32, i32, i32) {
    %c0_i32 = arith.constant 0 : i32
    %c0_i32_0 = arith.constant 0 : i32
    %c0_i32_1 = arith.constant 0 : i32
    %c0_i32_2 = arith.constant 0 : i32
    return %c0_i32, %c0_i32_0, %c0_i32_1 : i32, i32, i32
  }
  func.func @transform_6(%arg0: i32) -> (i32, i32) {
    %c0_i32 = arith.constant 0 : i32
    %c0_i32_0 = arith.constant 0 : i32
    %c0_i32_1 = arith.constant 0 : i32
    return %c0_i32, %c0_i32_0 : i32, i32
  }
  func.func @transform_7(%arg0: i32) -> (i32, i32) {
    %c0_i32 = arith.constant 0 : i32
    %c0_i32_0 = arith.constant 0 : i32
    %c0_i32_1 = arith.constant 0 : i32
    return %c0_i32, %c0_i32_0 : i32, i32
  }
  func.func @transform_8(%arg0: i32) -> (i32, i32) {
    %c0_i32 = arith.constant 0 : i32
    %c0_i32_0 = arith.constant 0 : i32
    %c0_i32_1 = arith.constant 0 : i32
    return %c0_i32, %c0_i32_0 : i32, i32
  }
  func.func @transform_9(%arg0: i32) -> (i32, i32, i32) {
    %c0_i32 = arith.constant 0 : i32
    %c0_i32_0 = arith.constant 0 : i32
    %c0_i32_1 = arith.constant 0 : i32
    %c0_i32_2 = arith.constant 0 : i32
    return %c0_i32, %c0_i32_0, %c0_i32_1 : i32, i32, i32
  }
  func.func @transform_10(%arg0: i32) -> (i32, i32) {
    %c0_i32 = arith.constant 0 : i32
    %c0_i32_0 = arith.constant 0 : i32
    %c0_i32_1 = arith.constant 0 : i32
    return %c0_i32, %c0_i32_0 : i32, i32
  }
  func.func @transform_11(%arg0: i32) -> (i32, i32) {
    %c0_i32 = arith.constant 0 : i32
    %c0_i32_0 = arith.constant 0 : i32
    %c0_i32_1 = arith.constant 0 : i32
    return %c0_i32, %c0_i32_0 : i32, i32
  }
  func.func @transform_12(%arg0: i32) -> (i32, i32) {
    %c0_i32 = arith.constant 0 : i32
    %c0_i32_0 = arith.constant 0 : i32
    %c0_i32_1 = arith.constant 0 : i32
    return %c0_i32, %c0_i32_0 : i32, i32
  }
  func.func @transform_13(%arg0: i32) -> (i32, i32) {
    %c0_i32 = arith.constant 0 : i32
    %c0_i32_0 = arith.constant 0 : i32
    %c0_i32_1 = arith.constant 0 : i32
    return %c0_i32, %c0_i32_0 : i32, i32
  }
  func.func @transform_14(%arg0: i32) -> (i32, i32) {
    %c0_i32 = arith.constant 0 : i32
    %c0_i32_0 = arith.constant 0 : i32
    %c0_i32_1 = arith.constant 0 : i32
    return %c0_i32, %c0_i32_0 : i32, i32
  }
  func.func @transform_15(%arg0: i32) -> (i32, i32, i32) {
    %c0_i32 = arith.constant 0 : i32
    %c0_i32_0 = arith.constant 0 : i32
    %c0_i32_1 = arith.constant 0 : i32
    return %arg0, %c0_i32, %c0_i32_0 : i32, i32, i32
  }
}

</mosaic_0001>

<llo_original>
// kernel: net_forward.1
$region0: #{net_forward.1}
  #allocation0 [shape = 'u32[]', space=smem, size = 0x4, offset = 0x4, fixed_abs, tag = 'smem constant byte address 0x4 - core index']
  #allocation1 [shape = 'u32[144,128]{1,0:T(1,128)}', space=vmem, size = 0x12000, scoped, tag = 'internal scratch']
  %s0 = inlined_call_operand.vmem [shape: f32[2,1,32,32], index: 0, kind: input, shape index: {}]
  %s1 = inlined_call_operand.vmem [shape: f32[5,32,168], index: 1, kind: input, shape index: {}]
  %s2 = inlined_call_operand.vmem [shape: f32[1,168], index: 2, kind: input, shape index: {}]
  %s3 = inlined_call_operand.vmem [shape: f32[162,84], index: 3, kind: input, shape index: {}]
  %s4 = inlined_call_operand.vmem [shape: f32[14,27], index: 4, kind: input, shape index: {}]
  %s5 = inlined_call_operand.vmem [shape: f32[5,84,160], index: 5, kind: input, shape index: {}]
  %s6 = inlined_call_operand.vmem [shape: f32[1,160], index: 6, kind: input, shape index: {}]
  %s7 = inlined_call_operand.vmem [shape: f32[144,80], index: 7, kind: input, shape index: {}]
  %s8 = inlined_call_operand.vmem [shape: f32[5,9], index: 8, kind: input, shape index: {}]
  %s9 = inlined_call_operand.vmem [shape: f32[5,80,120], index: 9, kind: input, shape index: {}]
  %s10 = inlined_call_operand.vmem [shape: f32[1,120], index: 10, kind: input, shape index: {}]
  %s11 = inlined_call_operand.vmem [shape: f32[120,84], index: 11, kind: input, shape index: {}]
  %s12 = inlined_call_operand.vmem [shape: f32[1,84], index: 12, kind: input, shape index: {}]
  %s13 = inlined_call_operand.vmem [shape: f32[84,10], index: 13, kind: input, shape index: {}]
  %s14 = inlined_call_operand.vmem [shape: f32[1,10], index: 14, kind: input, shape index: {}]
  %s15 = inlined_call_operand.hbm [shape: f32[2,1,10], index: 15, kind: output, shape index: {}]
  %s16 = sld [smem:[#allocation0]]
  $region93: #{net_forward.1} parent=0
    _
  %s18 = ssub.s32 1, %s16
  %s19 = scalar_select 0, %s18, %s16
  $region1: #{net_forward.1} parent=0
    #allocation2 [shape = 'u8[1024]{0}', space=vmem, size = 0x400, scoped, tag = 'output window, operand 0']
    #allocation3 [shape = 's32[2]{0}', space=sflag, size = 0x8, scoped, tag = 'scoped memory for net_forward.1']
    %20 = vsyncpa [#allocation3], 0
    %s21 = scalar_lea.sflag [#allocation3], 1
    %22 = vsyncpa %s21, 0
    loop: start=0, step=1, limit=4
    $region2: #{net_forward.1} parent=1 // loop_pre_header
      _
    $region3: #{net_forward.1} parent=1 // loop_header
      %s24 = sphi 0, %s28
      %p25 = scmp.ge.s32.totalorder %s24, 4
      %s34 = sphi 0, %s36
      %s37 = sphi 0, %s34
      %s38 = sphi 0, %s37
      %s54 = sphi 0, %s38
      %s58 = sphi 0, %s58
      %s60 = sphi 0, %s58
      %s61 = sphi 0, %s60
      %s75 = sphi 0, %s61
      %s79 = sphi 0, %s79
      %s81 = sphi 0, %s79
      %s82 = sphi 0, %s81
      %s96 = sphi 0, %s82
      %s100 = sphi 0, %s100
      %s102 = sphi 0, %s100
      %s103 = sphi 0, %s102
      %s117 = sphi 0, %s103
      %s121 = sphi 0, %s121
      %s123 = sphi 0, %s121
      %s124 = sphi 0, %s123
      %s138 = sphi 0, %s124
      %s142 = sphi 0, %s142
      %s144 = sphi 0, %s142
      %s145 = sphi 0, %s144
      %s159 = sphi 0, %s145
      %s163 = sphi 0, %s163
      %s165 = sphi 0, %s163
      %s166 = sphi 0, %s165
      %s180 = sphi 0, %s166
      %s184 = sphi 0, %s184
      %s186 = sphi 0, %s184
      %s187 = sphi 0, %s186
      %s201 = sphi 0, %s187
      %s205 = sphi 0, %s205
      %s207 = sphi 0, %s205
      %s208 = sphi 0, %s207
      %s222 = sphi 0, %s208
      %s226 = sphi 0, %s226
      %s228 = sphi 0, %s226
      %s229 = sphi 0, %s228
      %s243 = sphi 0, %s229
      %s247 = sphi 0, %s247
      %s249 = sphi 0, %s247
      %s250 = sphi 0, %s249
      %s264 = sphi 0, %s250
      %s268 = sphi 0, %s268
      %s270 = sphi 0, %s268
      %s271 = sphi 0, %s270
      %s285 = sphi 0, %s271
      %s289 = sphi 0, %s289
      %s291 = sphi 0, %s289
      %s292 = sphi 0, %s291
      %s306 = sphi 0, %s292
      %s310 = sphi 0, %s310
      %s312 = sphi 0, %s310
      %s313 = sphi 0, %s312
      %s327 = sphi 0, %s313
      %s331 = sphi 0, %s331
      %s333 = sphi 0, %s331
      %s334 = sphi 0, %s333
      %s348 = sphi 0, %s334
      %s354 = sphi 0, %s356
      %s357 = sphi 0, %s354
      %s358 = sphi 0, %s357
      %s374 = sphi 0, %s358
    $region4: #{net_forward.1} parent=1 // loop_header_branch
      %27 = sbr.rel (%p25) target = $region8
    $region5: #{net_forward.1} parent=1 // loop_body
      %s29 = ssub.s32 %s24, 1
      %s30 = ssub.s32 %s24, 2
      %s31 = sadd.s32 %s24, 1
      %s32 = ssub.s32 %s24, %s31
      %p33 = scmp.eq.s32.totalorder %s32, 0
      %s35 = sadd.s32 %s34, 1
      %s36 = scalar_select %p33, %s34, %s35
      %p39 = pneg %p33
      %p40 = scmp.eq.s32.totalorder %s24, 1
      %p41 = por %p39, %p40
      %p42 = scmp.ne.s32.totalorder %s34, %s37
      %p43 = scmp.eq.s32.totalorder %s24, 0
      %p44 = por %p42, %p43
      %p45 = scmp.ne.s32.totalorder %s34, %s37
      %p46 = scmp.eq.s32.totalorder %s29, 1
      %p47 = por %p45, %p46
      %p48 = scmp.ne.s32.totalorder %s37, %s38
      %p49 = scmp.eq.s32.totalorder %s29, 0
      %p50 = por %p48, %p49
      %p51 = scmp.ne.s32.totalorder %s37, %s38
      %p52 = scmp.eq.s32.totalorder %s30, 1
      %p53 = por %p51, %p52
      %p55 = scmp.ne.s32.totalorder %s38, %s54
      %p56 = scmp.eq.s32.totalorder %s30, 0
      %p57 = por %p55, %p56
      %s59 = sadd.s32 %s58, 1
      %p62 = scmp.eq.s32.totalorder %s24, 1
      %p63 = scmp.ne.s32.totalorder %s58, %s60
      %p64 = scmp.eq.s32.totalorder %s24, 0
      %p65 = por %p63, %p64
      %p66 = scmp.ne.s32.totalorder %s58, %s60
      %p67 = scmp.eq.s32.totalorder %s29, 1
      %p68 = por %p66, %p67
      %p69 = scmp.ne.s32.totalorder %s60, %s61
      %p70 = scmp.eq.s32.totalorder %s29, 0
      %p71 = por %p69, %p70
      %p72 = scmp.ne.s32.totalorder %s60, %s61
      %p73 = scmp.eq.s32.totalorder %s30, 1
      %p74 = por %p72, %p73
      %p76 = scmp.ne.s32.totalorder %s61, %s75
      %p77 = scmp.eq.s32.totalorder %s30, 0
      %p78 = por %p76, %p77
      %s80 = sadd.s32 %s79, 1
      %p83 = scmp.eq.s32.totalorder %s24, 1
      %p84 = scmp.ne.s32.totalorder %s79, %s81
      %p85 = scmp.eq.s32.totalorder %s24, 0
      %p86 = por %p84, %p85
      %p87 = scmp.ne.s32.totalorder %s79, %s81
      %p88 = scmp.eq.s32.totalorder %s29, 1
      %p89 = por %p87, %p88
      %p90 = scmp.ne.s32.totalorder %s81, %s82
      %p91 = scmp.eq.s32.totalorder %s29, 0
      %p92 = por %p90, %p91
      %p93 = scmp.ne.s32.totalorder %s81, %s82
      %p94 = scmp.eq.s32.totalorder %s30, 1
      %p95 = por %p93, %p94
      %p97 = scmp.ne.s32.totalorder %s82, %s96
      %p98 = scmp.eq.s32.totalorder %s30, 0
      %p99 = por %p97, %p98
      %s101 = sadd.s32 %s100, 1
      %p104 = scmp.eq.s32.totalorder %s24, 1
      %p105 = scmp.ne.s32.totalorder %s100, %s102
      %p106 = scmp.eq.s32.totalorder %s24, 0
      %p107 = por %p105, %p106
      %p108 = scmp.ne.s32.totalorder %s100, %s102
      %p109 = scmp.eq.s32.totalorder %s29, 1
      %p110 = por %p108, %p109
      %p111 = scmp.ne.s32.totalorder %s102, %s103
      %p112 = scmp.eq.s32.totalorder %s29, 0
      %p113 = por %p111, %p112
      %p114 = scmp.ne.s32.totalorder %s102, %s103
      %p115 = scmp.eq.s32.totalorder %s30, 1
      %p116 = por %p114, %p115
      %p118 = scmp.ne.s32.totalorder %s103, %s117
      %p119 = scmp.eq.s32.totalorder %s30, 0
      %p120 = por %p118, %p119
      %s122 = sadd.s32 %s121, 1
      %p125 = scmp.eq.s32.totalorder %s24, 1
      %p126 = scmp.ne.s32.totalorder %s121, %s123
      %p127 = scmp.eq.s32.totalorder %s24, 0
      %p128 = por %p126, %p127
      %p129 = scmp.ne.s32.totalorder %s121, %s123
      %p130 = scmp.eq.s32.totalorder %s29, 1
      %p131 = por %p129, %p130
      %p132 = scmp.ne.s32.totalorder %s123, %s124
      %p133 = scmp.eq.s32.totalorder %s29, 0
      %p134 = por %p132, %p133
      %p135 = scmp.ne.s32.totalorder %s123, %s124
      %p136 = scmp.eq.s32.totalorder %s30, 1
      %p137 = por %p135, %p136
      %p139 = scmp.ne.s32.totalorder %s124, %s138
      %p140 = scmp.eq.s32.totalorder %s30, 0
      %p141 = por %p139, %p140
      %s143 = sadd.s32 %s142, 1
      %p146 = scmp.eq.s32.totalorder %s24, 1
      %p147 = scmp.ne.s32.totalorder %s142, %s144
      %p148 = scmp.eq.s32.totalorder %s24, 0
      %p149 = por %p147, %p148
      %p150 = scmp.ne.s32.totalorder %s142, %s144
      %p151 = scmp.eq.s32.totalorder %s29, 1
      %p152 = por %p150, %p151
      %p153 = scmp.ne.s32.totalorder %s144, %s145
      %p154 = scmp.eq.s32.totalorder %s29, 0
      %p155 = por %p153, %p154
      %p156 = scmp.ne.s32.totalorder %s144, %s145
      %p157 = scmp.eq.s32.totalorder %s30, 1
      %p158 = por %p156, %p157
      %p160 = scmp.ne.s32.totalorder %s145, %s159
      %p161 = scmp.eq.s32.totalorder %s30, 0
      %p162 = por %p160, %p161
      %s164 = sadd.s32 %s163, 1
      %p167 = scmp.eq.s32.totalorder %s24, 1
      %p168 = scmp.ne.s32.totalorder %s163, %s165
      %p169 = scmp.eq.s32.totalorder %s24, 0
      %p170 = por %p168, %p169
      %p171 = scmp.ne.s32.totalorder %s163, %s165
      %p172 = scmp.eq.s32.totalorder %s29, 1
      %p173 = por %p171, %p172
      %p174 = scmp.ne.s32.totalorder %s165, %s166
      %p175 = scmp.eq.s32.totalorder %s29, 0
      %p176 = por %p174, %p175
      %p177 = scmp.ne.s32.totalorder %s165, %s166
      %p178 = scmp.eq.s32.totalorder %s30, 1
      %p179 = por %p177, %p178
      %p181 = scmp.ne.s32.totalorder %s166, %s180
      %p182 = scmp.eq.s32.totalorder %s30, 0
      %p183 = por %p181, %p182
      %s185 = sadd.s32 %s184, 1
      %p188 = scmp.eq.s32.totalorder %s24, 1
      %p189 = scmp.ne.s32.totalorder %s184, %s186
      %p190 = scmp.eq.s32.totalorder %s24, 0
      %p191 = por %p189, %p190
      %p192 = scmp.ne.s32.totalorder %s184, %s186
      %p193 = scmp.eq.s32.totalorder %s29, 1
      %p194 = por %p192, %p193
      %p195 = scmp.ne.s32.totalorder %s186, %s187
      %p196 = scmp.eq.s32.totalorder %s29, 0
      %p197 = por %p195, %p196
      %p198 = scmp.ne.s32.totalorder %s186, %s187
      %p199 = scmp.eq.s32.totalorder %s30, 1
      %p200 = por %p198, %p199
      %p202 = scmp.ne.s32.totalorder %s187, %s201
      %p203 = scmp.eq.s32.totalorder %s30, 0
      %p204 = por %p202, %p203
      %s206 = sadd.s32 %s205, 1
      %p209 = scmp.eq.s32.totalorder %s24, 1
      %p210 = scmp.ne.s32.totalorder %s205, %s207
      %p211 = scmp.eq.s32.totalorder %s24, 0
      %p212 = por %p210, %p211
      %p213 = scmp.ne.s32.totalorder %s205, %s207
      %p214 = scmp.eq.s32.totalorder %s29, 1
      %p215 = por %p213, %p214
      %p216 = scmp.ne.s32.totalorder %s207, %s208
      %p217 = scmp.eq.s32.totalorder %s29, 0
      %p218 = por %p216, %p217
      %p219 = scmp.ne.s32.totalorder %s207, %s208
      %p220 = scmp.eq.s32.totalorder %s30, 1
      %p221 = por %p219, %p220
      %p223 = scmp.ne.s32.totalorder %s208, %s222
      %p224 = scmp.eq.s32.totalorder %s30, 0
      %p225 = por %p223, %p224
      %s227 = sadd.s32 %s226, 1
      %p230 = scmp.eq.s32.totalorder %s24, 1
      %p231 = scmp.ne.s32.totalorder %s226, %s228
      %p232 = scmp.eq.s32.totalorder %s24, 0
      %p233 = por %p231, %p232
      %p234 = scmp.ne.s32.totalorder %s226, %s228
      %p235 = scmp.eq.s32.totalorder %s29, 1
      %p236 = por %p234, %p235
      %p237 = scmp.ne.s32.totalorder %s228, %s229
      %p238 = scmp.eq.s32.totalorder %s29, 0
      %p239 = por %p237, %p238
      %p240 = scmp.ne.s32.totalorder %s228, %s229
      %p241 = scmp.eq.s32.totalorder %s30, 1
      %p242 = por %p240, %p241
      %p244 = scmp.ne.s32.totalorder %s229, %s243
      %p245 = scmp.eq.s32.totalorder %s30, 0
      %p246 = por %p244, %p245
      %s248 = sadd.s32 %s247, 1
      %p251 = scmp.eq.s32.totalorder %s24, 1
      %p252 = scmp.ne.s32.totalorder %s247, %s249
      %p253 = scmp.eq.s32.totalorder %s24, 0
      %p254 = por %p252, %p253
      %p255 = scmp.ne.s32.totalorder %s247, %s249
      %p256 = scmp.eq.s32.totalorder %s29, 1
      %p257 = por %p255, %p256
      %p258 = scmp.ne.s32.totalorder %s249, %s250
      %p259 = scmp.eq.s32.totalorder %s29, 0
      %p260 = por %p258, %p259
      %p261 = scmp.ne.s32.totalorder %s249, %s250
      %p262 = scmp.eq.s32.totalorder %s30, 1
      %p263 = por %p261, %p262
      %p265 = scmp.ne.s32.totalorder %s250, %s264
      %p266 = scmp.eq.s32.totalorder %s30, 0
      %p267 = por %p265, %p266
      %s269 = sadd.s32 %s268, 1
      %p272 = scmp.eq.s32.totalorder %s24, 1
      %p273 = scmp.ne.s32.totalorder %s268, %s270
      %p274 = scmp.eq.s32.totalorder %s24, 0
      %p275 = por %p273, %p274
      %p276 = scmp.ne.s32.totalorder %s268, %s270
      %p277 = scmp.eq.s32.totalorder %s29, 1
      %p278 = por %p276, %p277
      %p279 = scmp.ne.s32.totalorder %s270, %s271
      %p280 = scmp.eq.s32.totalorder %s29, 0
      %p281 = por %p279, %p280
      %p282 = scmp.ne.s32.totalorder %s270, %s271
      %p283 = scmp.eq.s32.totalorder %s30, 1
      %p284 = por %p282, %p283
      %p286 = scmp.ne.s32.totalorder %s271, %s285
      %p287 = scmp.eq.s32.totalorder %s30, 0
      %p288 = por %p286, %p287
      %s290 = sadd.s32 %s289, 1
      %p293 = scmp.eq.s32.totalorder %s24, 1
      %p294 = scmp.ne.s32.totalorder %s289, %s291
      %p295 = scmp.eq.s32.totalorder %s24, 0
      %p296 = por %p294, %p295
      %p297 = scmp.ne.s32.totalorder %s289, %s291
      %p298 = scmp.eq.s32.totalorder %s29, 1
      %p299 = por %p297, %p298
      %p300 = scmp.ne.s32.totalorder %s291, %s292
      %p301 = scmp.eq.s32.totalorder %s29, 0
      %p302 = por %p300, %p301
      %p303 = scmp.ne.s32.totalorder %s291, %s292
      %p304 = scmp.eq.s32.totalorder %s30, 1
      %p305 = por %p303, %p304
      %p307 = scmp.ne.s32.totalorder %s292, %s306
      %p308 = scmp.eq.s32.totalorder %s30, 0
      %p309 = por %p307, %p308
      %s311 = sadd.s32 %s310, 1
      %p314 = scmp.eq.s32.totalorder %s24, 1
      %p315 = scmp.ne.s32.totalorder %s310, %s312
      %p316 = scmp.eq.s32.totalorder %s24, 0
      %p317 = por %p315, %p316
      %p318 = scmp.ne.s32.totalorder %s310, %s312
      %p319 = scmp.eq.s32.totalorder %s29, 1
      %p320 = por %p318, %p319
      %p321 = scmp.ne.s32.totalorder %s312, %s313
      %p322 = scmp.eq.s32.totalorder %s29, 0
      %p323 = por %p321, %p322
      %p324 = scmp.ne.s32.totalorder %s312, %s313
      %p325 = scmp.eq.s32.totalorder %s30, 1
      %p326 = por %p324, %p325
      %p328 = scmp.ne.s32.totalorder %s313, %s327
      %p329 = scmp.eq.s32.totalorder %s30, 0
      %p330 = por %p328, %p329
      %s332 = sadd.s32 %s331, 1
      %p335 = scmp.eq.s32.totalorder %s24, 1
      %p336 = scmp.ne.s32.totalorder %s331, %s333
      %p337 = scmp.eq.s32.totalorder %s24, 0
      %p338 = por %p336, %p337
      %p339 = scmp.ne.s32.totalorder %s331, %s333
      %p340 = scmp.eq.s32.totalorder %s29, 1
      %p341 = por %p339, %p340
      %p342 = scmp.ne.s32.totalorder %s333, %s334
      %p343 = scmp.eq.s32.totalorder %s29, 0
      %p344 = por %p342, %p343
      %p345 = scmp.ne.s32.totalorder %s333, %s334
      %p346 = scmp.eq.s32.totalorder %s30, 1
      %p347 = por %p345, %p346
      %p349 = scmp.ne.s32.totalorder %s334, %s348
      %p350 = scmp.eq.s32.totalorder %s30, 0
      %p351 = por %p349, %p350
      %s352 = ssub.s32 %s24, %s31
      %p353 = scmp.eq.s32.totalorder %s352, 0
      %s355 = sadd.s32 %s354, 1
      %s356 = scalar_select %p353, %s354, %s355
      %p359 = pneg %p353
      %p360 = scmp.eq.s32.totalorder %s24, 1
      %p361 = por %p359, %p360
      %p362 = scmp.ne.s32.totalorder %s354, %s357
      %p363 = scmp.eq.s32.totalorder %s24, 0
      %p364 = por %p362, %p363
      %p365 = scmp.ne.s32.totalorder %s354, %s357
      %p366 = scmp.eq.s32.totalorder %s29, 1
      %p367 = por %p365, %p366
      %p368 = scmp.ne.s32.totalorder %s357, %s358
      %p369 = scmp.eq.s32.totalorder %s29, 0
      %p370 = por %p368, %p369
      %p371 = scmp.ne.s32.totalorder %s357, %s358
      %p372 = scmp.eq.s32.totalorder %s30, 1
      %p373 = por %p371, %p372
      %p375 = scmp.ne.s32.totalorder %s358, %s374
      %p376 = scmp.eq.s32.totalorder %s30, 0
      %p377 = por %p375, %p376
      %p378 = scmp.le.s32.totalorder 1, %s24
      %p379 = scmp.lt.s32.totalorder %s24, 3
      %p380 = pnand %p378, %p379
      %p381 = pneg %p380
      // Predicated region
      $region9: #{net_forward.1} parent=5 // pred_check
        _
      $region10: #{net_forward.1} parent=5 // pred_check_branch
        %383 = sbr.rel (%p380) target = $region12
      $region11: #{net_forward.1} parent=5 // pred_region
        %s384 = ssub.s32 %s24, 1
        // Predicated region
        $region13: #{net_forward.1} parent=11 // pred_check
          %p385 = pneg %p71
        $region14: #{net_forward.1} parent=11 // pred_check_branch
          %387 = sbr.rel (%p385) target = $region16
        $region15: #{net_forward.1} parent=11 // pred_region
          _
        $region16: #{net_forward.1} parent=11 // pred_fallthru
          _
        // Predicated region
        $region17: #{net_forward.1} parent=11 // pred_check
          %p388 = pneg %p92
        $region18: #{net_forward.1} parent=11 // pred_check_branch
          %390 = sbr.rel (%p388) target = $region20
        $region19: #{net_forward.1} parent=11 // pred_region
          _
        $region20: #{net_forward.1} parent=11 // pred_fallthru
          _
        // Predicated region
        $region21: #{net_forward.1} parent=11 // pred_check
          %p391 = pneg %p113
        $region22: #{net_forward.1} parent=11 // pred_check_branch
          %393 = sbr.rel (%p391) target = $region24
        $region23: #{net_forward.1} parent=11 // pred_region
          _
        $region24: #{net_forward.1} parent=11 // pred_fallthru
          _
        // Predicated region
        $region25: #{net_forward.1} parent=11 // pred_check
          %p394 = pneg %p134
        $region26: #{net_forward.1} parent=11 // pred_check_branch
          %396 = sbr.rel (%p394) target = $region28
        $region27: #{net_forward.1} parent=11 // pred_region
          _
        $region28: #{net_forward.1} parent=11 // pred_fallthru
          _
        // Predicated region
        $region29: #{net_forward.1} parent=11 // pred_check
          %p397 = pneg %p155
        $region30: #{net_forward.1} parent=11 // pred_check_branch
          %399 = sbr.rel (%p397) target = $region32
        $region31: #{net_forward.1} parent=11 // pred_region
          _
        $region32: #{net_forward.1} parent=11 // pred_fallthru
          _
        // Predicated region
        $region33: #{net_forward.1} parent=11 // pred_check
          %p400 = pneg %p176
        $region34: #{net_forward.1} parent=11 // pred_check_branch
          %402 = sbr.rel (%p400) target = $region36
        $region35: #{net_forward.1} parent=11 // pred_region
          _
        $region36: #{net_forward.1} parent=11 // pred_fallthru
          _
        // Predicated region
        $region37: #{net_forward.1} parent=11 // pred_check
          %p403 = pneg %p197
        $region38: #{net_forward.1} parent=11 // pred_check_branch
          %405 = sbr.rel (%p403) target = $region40
        $region39: #{net_forward.1} parent=11 // pred_region
          _
        $region40: #{net_forward.1} parent=11 // pred_fallthru
          _
        // Predicated region
        $region41: #{net_forward.1} parent=11 // pred_check
          %p406 = pneg %p218
        $region42: #{net_forward.1} parent=11 // pred_check_branch
          %408 = sbr.rel (%p406) target = $region44
        $region43: #{net_forward.1} parent=11 // pred_region
          _
        $region44: #{net_forward.1} parent=11 // pred_fallthru
          _
        // Predicated region
        $region45: #{net_forward.1} parent=11 // pred_check
          %p409 = pneg %p239
        $region46: #{net_forward.1} parent=11 // pred_check_branch
          %411 = sbr.rel (%p409) target = $region48
        $region47: #{net_forward.1} parent=11 // pred_region
          _
        $region48: #{net_forward.1} parent=11 // pred_fallthru
          _
        // Predicated region
        $region49: #{net_forward.1} parent=11 // pred_check
          %p412 = pneg %p260
        $region50: #{net_forward.1} parent=11 // pred_check_branch
          %414 = sbr.rel (%p412) target = $region52
        $region51: #{net_forward.1} parent=11 // pred_region
          _
        $region52: #{net_forward.1} parent=11 // pred_fallthru
          _
        // Predicated region
        $region53: #{net_forward.1} parent=11 // pred_check
          %p415 = pneg %p281
        $region54: #{net_forward.1} parent=11 // pred_check_branch
          %417 = sbr.rel (%p415) target = $region56
        $region55: #{net_forward.1} parent=11 // pred_region
          _
        $region56: #{net_forward.1} parent=11 // pred_fallthru
          _
        // Predicated region
        $region57: #{net_forward.1} parent=11 // pred_check
          %p418 = pneg %p302
        $region58: #{net_forward.1} parent=11 // pred_check_branch
          %420 = sbr.rel (%p418) target = $region60
        $region59: #{net_forward.1} parent=11 // pred_region
          _
        $region60: #{net_forward.1} parent=11 // pred_fallthru
          _
        // Predicated region
        $region61: #{net_forward.1} parent=11 // pred_check
          %p421 = pneg %p323
        $region62: #{net_forward.1} parent=11 // pred_check_branch
          %423 = sbr.rel (%p421) target = $region64
        $region63: #{net_forward.1} parent=11 // pred_region
          _
        $region64: #{net_forward.1} parent=11 // pred_fallthru
          _
        // Predicated region
        $region65: #{net_forward.1} parent=11 // pred_check
          %p424 = pneg %p344
        $region66: #{net_forward.1} parent=11 // pred_check_branch
          %426 = sbr.rel (%p424) target = $region68
        $region67: #{net_forward.1} parent=11 // pred_region
          _
        $region68: #{net_forward.1} parent=11 // pred_fallthru
          _
      $region12: #{net_forward.1} parent=5 // pred_fallthru
        _
      %p427 = scmp.lt.s32.totalorder %s24, 2
      // Predicated region
      $region69: #{net_forward.1} parent=5 // pred_check
        %p428 = pneg %p427
      $region70: #{net_forward.1} parent=5 // pred_check_branch
        %430 = sbr.rel (%p428) target = $region72
      $region71: #{net_forward.1} parent=5 // pred_region
        // Predicated region
        $region73: #{net_forward.1} parent=71 // pred_check
          %p431 = pneg %p44
        $region74: #{net_forward.1} parent=71 // pred_check_branch
          %433 = sbr.rel (%p431) target = $region76
        $region75: #{net_forward.1} parent=71 // pred_region
          %p434 = scmp.lt.s32.totalorder %s24, 1
          %s435 = scalar_select %p434, %s24, 1
          %s436 = smul.addr %s435, 4
          %s437 = smul.addr %s436, 8
          %s438 = scalar_lea.vmem %s0, %s437
        $region76: #{net_forward.1} parent=71 // pred_fallthru
          _
      $region72: #{net_forward.1} parent=5 // pred_fallthru
        _
      %p439 = scmp.le.s32.totalorder 1, %s24
      %p440 = scmp.lt.s32.totalorder %s24, 3
      %p441 = pnand %p439, %p440
      %p442 = pneg %p441
      // Predicated region
      $region77: #{net_forward.1} parent=5 // pred_check
        _
      $region78: #{net_forward.1} parent=5 // pred_check_branch
        %444 = sbr.rel (%p441) target = $region80
      $region79: #{net_forward.1} parent=5 // pred_region
        %s445 = ssub.s32 %s24, 1
        %p446 = scmp.lt.s32.totalorder %s29, 1
        %s447 = scalar_select %p446, %s29, 1
        %s448 = smul.addr %s447, 4
        %s449 = smul.addr %s448, 8
        %s450 = scalar_lea.vmem %s0, %s449
        %p451 = pneg %p50
        %p452 = pneg %p47
        %p453 = pneg %p71
        %p454 = pneg %p68
        %p455 = pneg %p92
        %p456 = pneg %p89
        %p457 = pneg %p113
        %p458 = pneg %p110
        %p459 = pneg %p134
        %p460 = pneg %p131
        %p461 = pneg %p155
        %p462 = pneg %p152
        %p463 = pneg %p176
        %p464 = pneg %p173
        %p465 = pneg %p197
        %p466 = pneg %p194
        %p467 = pneg %p218
        %p468 = pneg %p215
        %p469 = pneg %p239
        %p470 = pneg %p236
        %p471 = pneg %p260
        %p472 = pneg %p257
        %p473 = pneg %p281
        %p474 = pneg %p278
        %p475 = pneg %p302
        %p476 = pneg %p299
        %p477 = pneg %p323
        %p478 = pneg %p320
        %p479 = pneg %p344
        %p480 = pneg %p341
        %p481 = pneg %p370
        %p482 = pneg %p367
        %s483 = sand.u32 %s357, 1
        %s484 = scalar_lea.sflag [#allocation3], %s483
        %s485 = sand.u32 %s357, 1
        %s486 = scalar_lea.vmem [#allocation2], %s485
        %p487 = scmp.lt.s32.totalorder %s29, 1
        %s488 = scalar_select %p487, %s29, 1
        %s489 = smul.addr %s488, 4
        %s490 = smul.addr %s489, 8
        %s491 = scalar_lea.vmem %s0, %s490
        %v492 = vld [vmem:[%s491] sm:$0xff]
        %v493 = vld [vmem:[%s491 + $0x8] sm:$0xff]
        %v494 = vld [vmem:[%s491 + $0x10] sm:$0xff]
        %v495 = vld [vmem:[%s491 + $0x18] sm:$0xff]
        %v496 = vld [vmem:[%s1] sm:$0xff]
        %v497 = vld [vmem:[%s1 + $0x8] sm:$0xff]
        %v498 = vld [vmem:[%s1 + $0x10] sm:$0xff]
        %v499 = vld [vmem:[%s1 + $0x18] sm:$0xff]
        %v500 = vld [vmem:[%s1 + $0x20] sm:$0xff]
        %v501 = vld [vmem:[%s1 + $0x28] sm:$0xff]
        %v502 = vld [vmem:[%s1 + $0x30] sm:$0xff]
        %v503 = vld [vmem:[%s1 + $0x38] sm:$0xff]
        %s504 = scalar_lea.vmem %s1, 64
        %v505 = vld [vmem:[%s504] sm:$0xff]
        %v506 = vld [vmem:[%s504 + $0x8] sm:$0xff]
        %v507 = vld [vmem:[%s504 + $0x10] sm:$0xff]
        %v508 = vld [vmem:[%s504 + $0x18] sm:$0xff]
        %v509 = vld [vmem:[%s504 + $0x20] sm:$0xff]
        %v510 = vld [vmem:[%s504 + $0x28] sm:$0xff]
        %v511 = vld [vmem:[%s504 + $0x30] sm:$0xff]
        %v512 = vld [vmem:[%s504 + $0x38] sm:$0xff]
        %vm517 = vcmask 1046528
        %v518 = vrot.slane %v492, 1
        %v519 = vrot.slane %v493, 1
        %v520 = vsel %vm517, %v518, %v519
        %v521 = vrot.slane %v494, 1
        %v522 = vsel %vm517, %v519, %v521
        %v523 = vrot.slane %v495, 1
        %v524 = vsel %vm517, %v521, %v523
        %vm525 = vcmask 261120
        %v526 = vsel %vm525, %v520, 0
        %v528 = vsel %vm525, %v522, 0
        %v530 = vsel %vm525, %v524, 0
        %v532 = vsel %vm525, %v523, 0
        %534 = vmatprep.subr.mxu0 0.0
        %535 = vmatpush1.msra.mxu0 0.0
        %536 = vmatprep.subr.mxu0 0.0
        %537 = vmatpush1.msra.mxu0 0.0
        %538 = vmatprep.subr.mxu0 0.0
        %539 = vmatpush1.msra.mxu0 0.0
        %540 = vmatprep.subr.mxu0 0.0
        %541 = vmatpush1.msra.mxu0 0.0
        %542 = vmatprep.subr.mxu0 0.0
        %543 = vmatpush1.msra.mxu0 0.0
        %544 = vmatprep.subr.mxu0 0.0
        %545 = vmatpush1.msra.mxu0 0.0
        %546 = vmatprep.subr.mxu0 0.0
        %547 = vmatpush1.msra.mxu0 0.0
        %548 = vmatprep.subr.mxu0 0.0
        %549 = vmatpush1.msra.mxu0 0.0
        %550 = vmatprep.subr.mxu0 0.0
        %551 = vmatpush1.msra.mxu0 0.0
        %552 = vmatprep.subr.mxu0 0.0
        %553 = vmatpush1.msra.mxu0 0.0
        %554 = vmatprep.subr.mxu0 0.0
        %555 = vmatpush1.msra.mxu0 0.0
        %556 = vmatprep.subr.mxu0 0.0
        %557 = vmatpush1.msra.mxu0 0.0
        %558 = vmatprep.subr.mxu0 %v512
        %559 = vmatpush1.msra.mxu0 %v511
        %560 = vmatprep.subr.mxu0 %v510
        %561 = vmatpush1.msra.mxu0 %v509
        %562 = vmatprep.subr.mxu0 %v508
        %563 = vmatpush1.msra.mxu0 %v507
        %564 = vmatprep.subr.mxu0 %v506
        %565 = vmatpush1.msra.mxu0 %v505
        %566 = vmatprep.subr.mxu0 0.0
        %567 = vmatpush2.msra.mxu0 0.0
        %568 = vmatprep.subr.mxu0 0.0
        %569 = vmatpush2.msra.mxu0 0.0
        %570 = vmatprep.subr.mxu0 0.0
        %571 = vmatpush2.msra.mxu0 0.0
        %572 = vmatprep.subr.mxu0 0.0
        %573 = vmatpush2.msra.mxu0 0.0
        %574 = vmatprep.subr.mxu0 0.0
        %575 = vmatpush2.msra.mxu0 0.0
        %576 = vmatprep.subr.mxu0 0.0
        %577 = vmatpush2.msra.mxu0 0.0
        %578 = vmatprep.subr.mxu0 0.0
        %579 = vmatpush2.msra.mxu0 0.0
        %580 = vmatprep.subr.mxu0 0.0
        %581 = vmatpush2.msra.mxu0 0.0
        %582 = vmatprep.subr.mxu0 0.0
        %583 = vmatpush2.msra.mxu0 0.0
        %584 = vmatprep.subr.mxu0 0.0
        %585 = vmatpush2.msra.mxu0 0.0
        %586 = vmatprep.subr.mxu0 0.0
        %587 = vmatpush2.msra.mxu0 0.0
        %588 = vmatprep.subr.mxu0 0.0
        %589 = vmatpush2.msra.mxu0 0.0
        %590 = vmatprep.subr.mxu0 0.0
        %591 = vmatpush2.msra.mxu0 0.0
        %592 = vmatprep.subr.mxu0 0.0
        %593 = vmatpush2.msra.mxu0 0.0
        %594 = vmatprep.subr.mxu0 0.0
        %595 = vmatpush2.msra.mxu0 0.0
        %596 = vmatprep.subr.mxu0 0.0
        %597 = vmatpush2.msra.mxu0 0.0
        %598 = vmatprep.mubr.f32.mxu0 0.0
        %599 = vmatmul.mubr.f32.gmra.mxu0 %v526
        %v600 = vpop.f32.mrf.mxu0
        %v601 = vadd.f32 0.0, %v600
        %v602 = vpop.f32.mrf.mxu0
        %v603 = vadd.f32 0.0, %v602
        %604 = vmatprep.mubr.f32.mxu0 0.0
        %605 = vmatmul.mubr.f32.gmra.mxu0 %v528
        %v606 = vpop.f32.mrf.mxu0
        %v607 = vadd.f32 0.0, %v606
        %v608 = vpop.f32.mrf.mxu0
        %v609 = vadd.f32 0.0, %v608
        %610 = vmatprep.mubr.f32.mxu0 0.0
        %611 = vmatmul.mubr.f32.gmra.mxu0 %v530
        %v612 = vpop.f32.mrf.mxu0
        %v613 = vadd.f32 0.0, %v612
        %v614 = vpop.f32.mrf.mxu0
        %v615 = vadd.f32 0.0, %v614
        %616 = vmatprep.mubr.f32.mxu0 0.0
        %617 = vmatmul.mubr.f32.gmra.mxu0 %v532
        %v618 = vpop.f32.mrf.mxu0
        %v619 = vadd.f32 0.0, %v618
        %v620 = vpop.f32.mrf.mxu0
        %v621 = vadd.f32 0.0, %v620
        %622 = vdwg.mxu0
        %v623 = vsel %vm525, %v492, 0
        %v625 = vsel %vm525, %v493, 0
        %v627 = vsel %vm525, %v494, 0
        %v629 = vsel %vm525, %v495, 0
        %631 = vmatprep.subr.mxu0 0.0
        %632 = vmatpush1.msra.mxu0 0.0
        %633 = vmatprep.subr.mxu0 0.0
        %634 = vmatpush1.msra.mxu0 0.0
        %635 = vmatprep.subr.mxu0 0.0
        %636 = vmatpush1.msra.mxu0 0.0
        %637 = vmatprep.subr.mxu0 0.0
        %638 = vmatpush1.msra.mxu0 0.0
        %639 = vmatprep.subr.mxu0 0.0
        %640 = vmatpush1.msra.mxu0 0.0
        %641 = vmatprep.subr.mxu0 0.0
        %642 = vmatpush1.msra.mxu0 0.0
        %643 = vmatprep.subr.mxu0 0.0
        %644 = vmatpush1.msra.mxu0 0.0
        %645 = vmatprep.subr.mxu0 0.0
        %646 = vmatpush1.msra.mxu0 0.0
        %647 = vmatprep.subr.mxu0 0.0
        %648 = vmatpush1.msra.mxu0 0.0
        %649 = vmatprep.subr.mxu0 0.0
        %650 = vmatpush1.msra.mxu0 0.0
        %651 = vmatprep.subr.mxu0 0.0
        %652 = vmatpush1.msra.mxu0 0.0
        %653 = vmatprep.subr.mxu0 0.0
        %654 = vmatpush1.msra.mxu0 0.0
        %655 = vmatprep.subr.mxu0 %v503
        %656 = vmatpush1.msra.mxu0 %v502
        %657 = vmatprep.subr.mxu0 %v501
        %658 = vmatpush1.msra.mxu0 %v500
        %659 = vmatprep.subr.mxu0 %v499
        %660 = vmatpush1.msra.mxu0 %v498
        %661 = vmatprep.subr.mxu0 %v497
        %662 = vmatpush1.msra.mxu0 %v496
        %663 = vmatprep.subr.mxu0 0.0
        %664 = vmatpush2.msra.mxu0 0.0
        %665 = vmatprep.subr.mxu0 0.0
        %666 = vmatpush2.msra.mxu0 0.0
        %667 = vmatprep.subr.mxu0 0.0
        %668 = vmatpush2.msra.mxu0 0.0
        %669 = vmatprep.subr.mxu0 0.0
        %670 = vmatpush2.msra.mxu0 0.0
        %671 = vmatprep.subr.mxu0 0.0
        %672 = vmatpush2.msra.mxu0 0.0
        %673 = vmatprep.subr.mxu0 0.0
        %674 = vmatpush2.msra.mxu0 0.0
        %675 = vmatprep.subr.mxu0 0.0
        %676 = vmatpush2.msra.mxu0 0.0
        %677 = vmatprep.subr.mxu0 0.0
        %678 = vmatpush2.msra.mxu0 0.0
        %679 = vmatprep.subr.mxu0 0.0
        %680 = vmatpush2.msra.mxu0 0.0
        %681 = vmatprep.subr.mxu0 0.0
        %682 = vmatpush2.msra.mxu0 0.0
        %683 = vmatprep.subr.mxu0 0.0
        %684 = vmatpush2.msra.mxu0 0.0
        %685 = vmatprep.subr.mxu0 0.0
        %686 = vmatpush2.msra.mxu0 0.0
        %687 = vmatprep.subr.mxu0 0.0
        %688 = vmatpush2.msra.mxu0 0.0
        %689 = vmatprep.subr.mxu0 0.0
        %690 = vmatpush2.msra.mxu0 0.0
        %691 = vmatprep.subr.mxu0 0.0
        %692 = vmatpush2.msra.mxu0 0.0
        %693 = vmatprep.subr.mxu0 0.0
        %694 = vmatpush2.msra.mxu0 0.0
        %695 = vmatprep.mubr.f32.mxu0 0.0
        %696 = vmatmul.mubr.f32.gmra.mxu0 %v623
        %v697 = vpop.f32.mrf.mxu0
        %v698 = vadd.f32 %v601, %v697
        %v699 = vpop.f32.mrf.mxu0
        %v700 = vadd.f32 %v603, %v699
        %701 = vmatprep.mubr.f32.mxu0 0.0
        %702 = vmatmul.mubr.f32.gmra.mxu0 %v625
        %v703 = vpop.f32.mrf.mxu0
        %v704 = vadd.f32 %v607, %v703
        %v705 = vpop.f32.mrf.mxu0
        %v706 = vadd.f32 %v609, %v705
        %707 = vmatprep.mubr.f32.mxu0 0.0
        %708 = vmatmul.mubr.f32.gmra.mxu0 %v627
        %v709 = vpop.f32.mrf.mxu0
        %v710 = vadd.f32 %v613, %v709
        %v711 = vpop.f32.mrf.mxu0
        %v712 = vadd.f32 %v615, %v711
        %713 = vmatprep.mubr.f32.mxu0 0.0
        %714 = vmatmul.mubr.f32.gmra.mxu0 %v629
        %v715 = vpop.f32.mrf.mxu0
        %v716 = vadd.f32 %v619, %v715
        %v717 = vpop.f32.mrf.mxu0
        %v718 = vadd.f32 %v621, %v717
        %719 = vdwg.mxu0
        %s720 = scalar_lea.vmem %s1, 128
        %v721 = vld [vmem:[%s720] sm:$0xff]
        %v722 = vld [vmem:[%s720 + $0x8] sm:$0xff]
        %v723 = vld [vmem:[%s720 + $0x10] sm:$0xff]
        %v724 = vld [vmem:[%s720 + $0x18] sm:$0xff]
        %v725 = vld [vmem:[%s720 + $0x20] sm:$0xff]
        %v726 = vld [vmem:[%s720 + $0x28] sm:$0xff]
        %v727 = vld [vmem:[%s720 + $0x30] sm:$0xff]
        %v728 = vld [vmem:[%s720 + $0x38] sm:$0xff]
        %vm729 = vcmask 1045504
        %v730 = vrot.slane %v492, 2
        %v731 = vrot.slane %v493, 2
        %v732 = vsel %vm729, %v730, %v731
        %v733 = vrot.slane %v494, 2
        %v734 = vsel %vm729, %v731, %v733
        %v735 = vrot.slane %v495, 2
        %v736 = vsel %vm729, %v733, %v735
        %v737 = vsel %vm525, %v732, 0
        %v739 = vsel %vm525, %v734, 0
        %v741 = vsel %vm525, %v736, 0
        %v743 = vsel %vm525, %v735, 0
        %745 = vmatprep.subr.mxu0 0.0
        %746 = vmatpush1.msra.mxu0 0.0
        %747 = vmatprep.subr.mxu0 0.0
        %748 = vmatpush1.msra.mxu0 0.0
        %749 = vmatprep.subr.mxu0 0.0
        %750 = vmatpush1.msra.mxu0 0.0
        %751 = vmatprep.subr.mxu0 0.0
        %752 = vmatpush1.msra.mxu0 0.0
        %753 = vmatprep.subr.mxu0 0.0
        %754 = vmatpush1.msra.mxu0 0.0
        %755 = vmatprep.subr.mxu0 0.0
        %756 = vmatpush1.msra.mxu0 0.0
        %757 = vmatprep.subr.mxu0 0.0
        %758 = vmatpush1.msra.mxu0 0.0
        %759 = vmatprep.subr.mxu0 0.0
        %760 = vmatpush1.msra.mxu0 0.0
        %761 = vmatprep.subr.mxu0 0.0
        %762 = vmatpush1.msra.mxu0 0.0
        %763 = vmatprep.subr.mxu0 0.0
        %764 = vmatpush1.msra.mxu0 0.0
        %765 = vmatprep.subr.mxu0 0.0
        %766 = vmatpush1.msra.mxu0 0.0
        %767 = vmatprep.subr.mxu0 0.0
        %768 = vmatpush1.msra.mxu0 0.0
        %769 = vmatprep.subr.mxu0 %v728
        %770 = vmatpush1.msra.mxu0 %v727
        %771 = vmatprep.subr.mxu0 %v726
        %772 = vmatpush1.msra.mxu0 %v725
        %773 = vmatprep.subr.mxu0 %v724
        %774 = vmatpush1.msra.mxu0 %v723
        %775 = vmatprep.subr.mxu0 %v722
        %776 = vmatpush1.msra.mxu0 %v721
        %777 = vmatprep.subr.mxu0 0.0
        %778 = vmatpush2.msra.mxu0 0.0
        %779 = vmatprep.subr.mxu0 0.0
        %780 = vmatpush2.msra.mxu0 0.0
        %781 = vmatprep.subr.mxu0 0.0
        %782 = vmatpush2.msra.mxu0 0.0
        %783 = vmatprep.subr.mxu0 0.0
        %784 = vmatpush2.msra.mxu0 0.0
        %785 = vmatprep.subr.mxu0 0.0
        %786 = vmatpush2.msra.mxu0 0.0
        %787 = vmatprep.subr.mxu0 0.0
        %788 = vmatpush2.msra.mxu0 0.0
        %789 = vmatprep.subr.mxu0 0.0
        %790 = vmatpush2.msra.mxu0 0.0
        %791 = vmatprep.subr.mxu0 0.0
        %792 = vmatpush2.msra.mxu0 0.0
        %793 = vmatprep.subr.mxu0 0.0
        %794 = vmatpush2.msra.mxu0 0.0
        %795 = vmatprep.subr.mxu0 0.0
        %796 = vmatpush2.msra.mxu0 0.0
        %797 = vmatprep.subr.mxu0 0.0
        %798 = vmatpush2.msra.mxu0 0.0
        %799 = vmatprep.subr.mxu0 0.0
        %800 = vmatpush2.msra.mxu0 0.0
        %801 = vmatprep.subr.mxu0 0.0
        %802 = vmatpush2.msra.mxu0 0.0
        %803 = vmatprep.subr.mxu0 0.0
        %804 = vmatpush2.msra.mxu0 0.0
        %805 = vmatprep.subr.mxu0 0.0
        %806 = vmatpush2.msra.mxu0 0.0
        %807 = vmatprep.subr.mxu0 0.0
        %808 = vmatpush2.msra.mxu0 0.0
        %809 = vmatprep.mubr.f32.mxu0 0.0
        %810 = vmatmul.mubr.f32.gmra.mxu0 %v737
        %v811 = vpop.f32.mrf.mxu0
        %v812 = vadd.f32 0.0, %v811
        %v813 = vpop.f32.mrf.mxu0
        %v814 = vadd.f32 0.0, %v813
        %815 = vmatprep.mubr.f32.mxu0 0.0
        %816 = vmatmul.mubr.f32.gmra.mxu0 %v739
        %v817 = vpop.f32.mrf.mxu0
        %v818 = vadd.f32 0.0, %v817
        %v819 = vpop.f32.mrf.mxu0
        %v820 = vadd.f32 0.0, %v819
        %821 = vmatprep.mubr.f32.mxu0 0.0
        %822 = vmatmul.mubr.f32.gmra.mxu0 %v741
        %v823 = vpop.f32.mrf.mxu0
        %v824 = vadd.f32 0.0, %v823
        %v825 = vpop.f32.mrf.mxu0
        %v826 = vadd.f32 0.0, %v825
        %827 = vmatprep.mubr.f32.mxu0 0.0
        %828 = vmatmul.mubr.f32.gmra.mxu0 %v743
        %v829 = vpop.f32.mrf.mxu0
        %v830 = vadd.f32 0.0, %v829
        %v831 = vpop.f32.mrf.mxu0
        %v832 = vadd.f32 0.0, %v831
        %833 = vdwg.mxu0
        %v834 = vadd.f32 %v698, %v812
        %v835 = vadd.f32 %v700, %v814
        %v836 = vadd.f32 %v704, %v818
        %v837 = vadd.f32 %v706, %v820
        %v838 = vadd.f32 %v710, %v824
        %v839 = vadd.f32 %v712, %v826
        %v840 = vadd.f32 %v716, %v830
        %v841 = vadd.f32 %v718, %v832
        %s842 = scalar_lea.vmem %s1, 192
        %v843 = vld [vmem:[%s842] sm:$0xff]
        %v844 = vld [vmem:[%s842 + $0x8] sm:$0xff]
        %v845 = vld [vmem:[%s842 + $0x10] sm:$0xff]
        %v846 = vld [vmem:[%s842 + $0x18] sm:$0xff]
        %v847 = vld [vmem:[%s842 + $0x20] sm:$0xff]
        %v848 = vld [vmem:[%s842 + $0x28] sm:$0xff]
        %v849 = vld [vmem:[%s842 + $0x30] sm:$0xff]
        %v850 = vld [vmem:[%s842 + $0x38] sm:$0xff]
        %vm851 = vcmask 1044480
        %v852 = vrot.slane %v492, 3
        %v853 = vrot.slane %v493, 3
        %v854 = vsel %vm851, %v852, %v853
        %v855 = vrot.slane %v494, 3
        %v856 = vsel %vm851, %v853, %v855
        %v857 = vrot.slane %v495, 3
        %v858 = vsel %vm851, %v855, %v857
        %v859 = vsel %vm525, %v854, 0
        %v861 = vsel %vm525, %v856, 0
        %v863 = vsel %vm525, %v858, 0
        %v865 = vsel %vm525, %v857, 0
        %867 = vmatprep.subr.mxu0 0.0
        %868 = vmatpush1.msra.mxu0 0.0
        %869 = vmatprep.subr.mxu0 0.0
        %870 = vmatpush1.msra.mxu0 0.0
        %871 = vmatprep.subr.mxu0 0.0
        %872 = vmatpush1.msra.mxu0 0.0
        %873 = vmatprep.subr.mxu0 0.0
        %874 = vmatpush1.msra.mxu0 0.0
        %875 = vmatprep.subr.mxu0 0.0
        %876 = vmatpush1.msra.mxu0 0.0
        %877 = vmatprep.subr.mxu0 0.0
        %878 = vmatpush1.msra.mxu0 0.0
        %879 = vmatprep.subr.mxu0 0.0
        %880 = vmatpush1.msra.mxu0 0.0
        %881 = vmatprep.subr.mxu0 0.0
        %882 = vmatpush1.msra.mxu0 0.0
        %883 = vmatprep.subr.mxu0 0.0
        %884 = vmatpush1.msra.mxu0 0.0
        %885 = vmatprep.subr.mxu0 0.0
        %886 = vmatpush1.msra.mxu0 0.0
        %887 = vmatprep.subr.mxu0 0.0
        %888 = vmatpush1.msra.mxu0 0.0
        %889 = vmatprep.subr.mxu0 0.0
        %890 = vmatpush1.msra.mxu0 0.0
        %891 = vmatprep.subr.mxu0 %v850
        %892 = vmatpush1.msra.mxu0 %v849
        %893 = vmatprep.subr.mxu0 %v848
        %894 = vmatpush1.msra.mxu0 %v847
        %895 = vmatprep.subr.mxu0 %v846
        %896 = vmatpush1.msra.mxu0 %v845
        %897 = vmatprep.subr.mxu0 %v844
        %898 = vmatpush1.msra.mxu0 %v843
        %899 = vmatprep.subr.mxu0 0.0
        %900 = vmatpush2.msra.mxu0 0.0
        %901 = vmatprep.subr.mxu0 0.0
        %902 = vmatpush2.msra.mxu0 0.0
        %903 = vmatprep.subr.mxu0 0.0
        %904 = vmatpush2.msra.mxu0 0.0
        %905 = vmatprep.subr.mxu0 0.0
        %906 = vmatpush2.msra.mxu0 0.0
        %907 = vmatprep.subr.mxu0 0.0
        %908 = vmatpush2.msra.mxu0 0.0
        %909 = vmatprep.subr.mxu0 0.0
        %910 = vmatpush2.msra.mxu0 0.0
        %911 = vmatprep.subr.mxu0 0.0
        %912 = vmatpush2.msra.mxu0 0.0
        %913 = vmatprep.subr.mxu0 0.0
        %914 = vmatpush2.msra.mxu0 0.0
        %915 = vmatprep.subr.mxu0 0.0
        %916 = vmatpush2.msra.mxu0 0.0
        %917 = vmatprep.subr.mxu0 0.0
        %918 = vmatpush2.msra.mxu0 0.0
        %919 = vmatprep.subr.mxu0 0.0
        %920 = vmatpush2.msra.mxu0 0.0
        %921 = vmatprep.subr.mxu0 0.0
        %922 = vmatpush2.msra.mxu0 0.0
        %923 = vmatprep.subr.mxu0 0.0
        %924 = vmatpush2.msra.mxu0 0.0
        %925 = vmatprep.subr.mxu0 0.0
        %926 = vmatpush2.msra.mxu0 0.0
        %927 = vmatprep.subr.mxu0 0.0
        %928 = vmatpush2.msra.mxu0 0.0
        %929 = vmatprep.subr.mxu0 0.0
        %930 = vmatpush2.msra.mxu0 0.0
        %931 = vmatprep.mubr.f32.mxu0 0.0
        %932 = vmatmul.mubr.f32.gmra.mxu0 %v859
        %v933 = vpop.f32.mrf.mxu0
        %v934 = vadd.f32 0.0, %v933
        %v935 = vpop.f32.mrf.mxu0
        %v936 = vadd.f32 0.0, %v935
        %937 = vmatprep.mubr.f32.mxu0 0.0
        %938 = vmatmul.mubr.f32.gmra.mxu0 %v861
        %v939 = vpop.f32.mrf.mxu0
        %v940 = vadd.f32 0.0, %v939
        %v941 = vpop.f32.mrf.mxu0
        %v942 = vadd.f32 0.0, %v941
        %943 = vmatprep.mubr.f32.mxu0 0.0
        %944 = vmatmul.mubr.f32.gmra.mxu0 %v863
        %v945 = vpop.f32.mrf.mxu0
        %v946 = vadd.f32 0.0, %v945
        %v947 = vpop.f32.mrf.mxu0
        %v948 = vadd.f32 0.0, %v947
        %949 = vmatprep.mubr.f32.mxu0 0.0
        %950 = vmatmul.mubr.f32.gmra.mxu0 %v865
        %v951 = vpop.f32.mrf.mxu0
        %v952 = vadd.f32 0.0, %v951
        %v953 = vpop.f32.mrf.mxu0
        %v954 = vadd.f32 0.0, %v953
        %955 = vdwg.mxu0
        %v956 = vadd.f32 %v834, %v934
        %v957 = vadd.f32 %v835, %v936
        %v958 = vadd.f32 %v836, %v940
        %v959 = vadd.f32 %v837, %v942
        %v960 = vadd.f32 %v838, %v946
        %v961 = vadd.f32 %v839, %v948
        %v962 = vadd.f32 %v840, %v952
        %v963 = vadd.f32 %v841, %v954
        %s964 = scalar_lea.vmem %s1, 256
        %v965 = vld [vmem:[%s964] sm:$0xff]
        %v966 = vld [vmem:[%s964 + $0x8] sm:$0xff]
        %v967 = vld [vmem:[%s964 + $0x10] sm:$0xff]
        %v968 = vld [vmem:[%s964 + $0x18] sm:$0xff]
        %v969 = vld [vmem:[%s964 + $0x20] sm:$0xff]
        %v970 = vld [vmem:[%s964 + $0x28] sm:$0xff]
        %v971 = vld [vmem:[%s964 + $0x30] sm:$0xff]
        %v972 = vld [vmem:[%s964 + $0x38] sm:$0xff]
        %vm973 = vcmask 1043456
        %v974 = vrot.slane %v492, 4
        %v975 = vrot.slane %v493, 4
        %v976 = vsel %vm973, %v974, %v975
        %v977 = vrot.slane %v494, 4
        %v978 = vsel %vm973, %v975, %v977
        %v979 = vrot.slane %v495, 4
        %v980 = vsel %vm973, %v977, %v979
        %v981 = vsel %vm525, %v976, 0
        %v983 = vsel %vm525, %v978, 0
        %v985 = vsel %vm525, %v980, 0
        %v987 = vsel %vm525, %v979, 0
        %989 = vmatprep.subr.mxu0 0.0
        %990 = vmatpush1.msra.mxu0 0.0
        %991 = vmatprep.subr.mxu0 0.0
        %992 = vmatpush1.msra.mxu0 0.0
        %993 = vmatprep.subr.mxu0 0.0
        %994 = vmatpush1.msra.mxu0 0.0
        %995 = vmatprep.subr.mxu0 0.0
        %996 = vmatpush1.msra.mxu0 0.0
        %997 = vmatprep.subr.mxu0 0.0
        %998 = vmatpush1.msra.mxu0 0.0
        %999 = vmatprep.subr.mxu0 0.0
        %1000 = vmatpush1.msra.mxu0 0.0
        %1001 = vmatprep.subr.mxu0 0.0
        %1002 = vmatpush1.msra.mxu0 0.0
        %1003 = vmatprep.subr.mxu0 0.0
        %1004 = vmatpush1.msra.mxu0 0.0
        %1005 = vmatprep.subr.mxu0 0.0
        %1006 = vmatpush1.msra.mxu0 0.0
        %1007 = vmatprep.subr.mxu0 0.0
        %1008 = vmatpush1.msra.mxu0 0.0
        %1009 = vmatprep.subr.mxu0 0.0
        %1010 = vmatpush1.msra.mxu0 0.0
        %1011 = vmatprep.subr.mxu0 0.0
        %1012 = vmatpush1.msra.mxu0 0.0
        %1013 = vmatprep.subr.mxu0 %v972
        %1014 = vmatpush1.msra.mxu0 %v971
        %1015 = vmatprep.subr.mxu0 %v970
        %1016 = vmatpush1.msra.mxu0 %v969
        %1017 = vmatprep.subr.mxu0 %v968
        %1018 = vmatpush1.msra.mxu0 %v967
        %1019 = vmatprep.subr.mxu0 %v966
        %1020 = vmatpush1.msra.mxu0 %v965
        %1021 = vmatprep.subr.mxu0 0.0
        %1022 = vmatpush2.msra.mxu0 0.0
        %1023 = vmatprep.subr.mxu0 0.0
        %1024 = vmatpush2.msra.mxu0 0.0
        %1025 = vmatprep.subr.mxu0 0.0
        %1026 = vmatpush2.msra.mxu0 0.0
        %1027 = vmatprep.subr.mxu0 0.0
        %1028 = vmatpush2.msra.mxu0 0.0
        %1029 = vmatprep.subr.mxu0 0.0
        %1030 = vmatpush2.msra.mxu0 0.0
        %1031 = vmatprep.subr.mxu0 0.0
        %1032 = vmatpush2.msra.mxu0 0.0
        %1033 = vmatprep.subr.mxu0 0.0
        %1034 = vmatpush2.msra.mxu0 0.0
        %1035 = vmatprep.subr.mxu0 0.0
        %1036 = vmatpush2.msra.mxu0 0.0
        %1037 = vmatprep.subr.mxu0 0.0
        %1038 = vmatpush2.msra.mxu0 0.0
        %1039 = vmatprep.subr.mxu0 0.0
        %1040 = vmatpush2.msra.mxu0 0.0
        %1041 = vmatprep.subr.mxu0 0.0
        %1042 = vmatpush2.msra.mxu0 0.0
        %1043 = vmatprep.subr.mxu0 0.0
        %1044 = vmatpush2.msra.mxu0 0.0
        %1045 = vmatprep.subr.mxu0 0.0
        %1046 = vmatpush2.msra.mxu0 0.0
        %1047 = vmatprep.subr.mxu0 0.0
        %1048 = vmatpush2.msra.mxu0 0.0
        %1049 = vmatprep.subr.mxu0 0.0
        %1050 = vmatpush2.msra.mxu0 0.0
        %1051 = vmatprep.subr.mxu0 0.0
        %1052 = vmatpush2.msra.mxu0 0.0
        %1053 = vmatprep.mubr.f32.mxu0 0.0
        %1054 = vmatmul.mubr.f32.gmra.mxu0 %v981
        %v1055 = vpop.f32.mrf.mxu0
        %v1056 = vadd.f32 0.0, %v1055
        %v1057 = vpop.f32.mrf.mxu0
        %v1058 = vadd.f32 0.0, %v1057
        %1059 = vmatprep.mubr.f32.mxu0 0.0
        %1060 = vmatmul.mubr.f32.gmra.mxu0 %v983
        %v1061 = vpop.f32.mrf.mxu0
        %v1062 = vadd.f32 0.0, %v1061
        %v1063 = vpop.f32.mrf.mxu0
        %v1064 = vadd.f32 0.0, %v1063
        %1065 = vmatprep.mubr.f32.mxu0 0.0
        %1066 = vmatmul.mubr.f32.gmra.mxu0 %v985
        %v1067 = vpop.f32.mrf.mxu0
        %v1068 = vadd.f32 0.0, %v1067
        %v1069 = vpop.f32.mrf.mxu0
        %v1070 = vadd.f32 0.0, %v1069
        %1071 = vmatprep.mubr.f32.mxu0 0.0
        %1072 = vmatmul.mubr.f32.gmra.mxu0 %v987
        %v1073 = vpop.f32.mrf.mxu0
        %v1074 = vadd.f32 0.0, %v1073
        %v1075 = vpop.f32.mrf.mxu0
        %v1076 = vadd.f32 0.0, %v1075
        %1077 = vdwg.mxu0
        %v1078 = vadd.f32 %v956, %v1056
        %v1079 = vadd.f32 %v957, %v1058
        %v1080 = vadd.f32 %v958, %v1062
        %v1081 = vadd.f32 %v959, %v1064
        %v1082 = vadd.f32 %v960, %v1068
        %v1083 = vadd.f32 %v961, %v1070
        %v1084 = vadd.f32 %v962, %v1074
        %v1085 = vadd.f32 %v963, %v1076
        %v1086 = vld [vmem:[%s2] sm:$0x3]
        %v1088 = vlaneseq
        %v1089 = vshrl.u32 %v1088, 7
        %v1090 = vsub.s32 0, %v1089
        %v1091 = vrot.slane %v1086, %v1090
        %v1092 = vlaneseq
        %v1093 = vshrl.u32 %v1092, 7
        %v1094 = vsub.s32 1, %v1093
        %v1095 = vrot.slane %v1086, %v1094
        %v1098 = vadd.f32 %v1078, %v1091
        %v1099 = vadd.f32 %v1079, %v1095
        %v1100 = vadd.f32 %v1080, %v1091
        %v1101 = vadd.f32 %v1081, %v1095
        %v1102 = vadd.f32 %v1082, %v1091
        %v1103 = vadd.f32 %v1083, %v1095
        %v1104 = vadd.f32 %v1084, %v1091
        %v1105 = vadd.f32 %v1085, %v1095
        %v1106 = vmax.f32 %v1098, 0.0
        %v1107 = vmax.f32 %v1099, 0.0
        %v1108 = vmax.f32 %v1100, 0.0
        %v1109 = vmax.f32 %v1101, 0.0
        %v1110 = vmax.f32 %v1102, 0.0
        %v1111 = vmax.f32 %v1103, 0.0
        %v1112 = vmax.f32 %v1104, 0.0
        %v1113 = vmax.f32 %v1105, 0.0
        %1122 = vrot.lane.b32.xlu0 %v1106, 122
        %v1123 = vpop.permute.xlu0 %1122
        %1124 = vrot.lane.b32.xlu0 %v1107, 122
        %v1125 = vpop.permute.xlu0 %1124
        %1126 = vrot.lane.b32.xlu0 %v1108, 122
        %v1127 = vpop.permute.xlu0 %1126
        %1128 = vrot.lane.b32.xlu0 %v1109, 122
        %v1129 = vpop.permute.xlu0 %1128
        %1130 = vrot.lane.b32.xlu0 %v1110, 122
        %v1131 = vpop.permute.xlu0 %1130
        %1132 = vrot.lane.b32.xlu0 %v1111, 122
        %v1133 = vpop.permute.xlu0 %1132
        %1134 = vrot.lane.b32.xlu0 %v1112, 122
        %v1135 = vpop.permute.xlu0 %1134
        %1136 = vrot.lane.b32.xlu0 %v1113, 122
        %v1137 = vpop.permute.xlu0 %1136
        %vm1138 = vcmask 998400
        %v1139 = vsel %vm1138, %v1123, %v1125
        %v1140 = vsel %vm1138, %v1127, %v1129
        %v1141 = vsel %vm1138, %v1131, %v1133
        %v1142 = vsel %vm1138, %v1135, %v1137
        %v1151 = vmax.f32 %v1106, %v1139
        %v1152 = vmax.f32 %v1107, %v1125
        %v1153 = vmax.f32 %v1108, %v1140
        %v1154 = vmax.f32 %v1109, %v1129
        %v1155 = vmax.f32 %v1110, %v1141
        %v1156 = vmax.f32 %v1111, %v1133
        %v1157 = vmax.f32 %v1112, %v1142
        %v1158 = vmax.f32 %v1113, %v1137
        %v1159 = vld [vmem:[%s3] sm:$0xff]
        %v1160 = vld [vmem:[%s3 + $0x8] sm:$0xff]
        %v1161 = vld [vmem:[%s3 + $0x10] sm:$0xff]
        %v1162 = vld [vmem:[%s3 + $0x18] sm:$0xff]
        %v1163 = vld [vmem:[%s3 + $0x20] sm:$0xff]
        %v1164 = vld [vmem:[%s3 + $0x28] sm:$0xff]
        %v1165 = vld [vmem:[%s3 + $0x30] sm:$0xff]
        %v1166 = vld [vmem:[%s3 + $0x38] sm:$0xff]
        %v1167 = vld [vmem:[%s3 + $0x40] sm:$0xff]
        %v1168 = vld [vmem:[%s3 + $0x48] sm:$0xff]
        %v1169 = vld [vmem:[%s3 + $0x50] sm:$0xff]
        %v1170 = vld [vmem:[%s3 + $0x58] sm:$0xff]
        %v1171 = vld [vmem:[%s3 + $0x60] sm:$0xff]
        %v1172 = vld [vmem:[%s3 + $0x68] sm:$0xff]
        %v1173 = vld [vmem:[%s3 + $0x70] sm:$0xff]
        %v1174 = vld [vmem:[%s3 + $0x78] sm:$0xff]
        %v1175 = vld [vmem:[%s3 + $0x80] sm:$0xff]
        %v1176 = vld [vmem:[%s3 + $0x88] sm:$0xff]
        %v1177 = vld [vmem:[%s3 + $0x90] sm:$0xff]
        %v1178 = vld [vmem:[%s3 + $0x98] sm:$0xff]
        %v1179 = vld [vmem:[%s3 + $0xa0] sm:$0x3]
        %vm1180 = vcmask 277504
        %v1182 = vsel %vm1180, %v1152, 0
        %v1185 = vsel %vm1180, %v1154, 0
        %v1188 = vsel %vm1180, %v1156, 0
        %v1191 = vsel %vm1180, %v1158, 0
        %vm1193 = vcmask 1041408
        %v1195 = vsel %vm1193, %v1179, 0
        %1197 = vmatprep.subr.mxu0 0.0
        %1198 = vmatpush1.msra.mxu0 %v1174
        %1199 = vmatprep.subr.mxu0 0.0
        %1200 = vmatpush1.msra.mxu0 %v1173
        %1201 = vmatprep.subr.mxu0 0.0
        %1202 = vmatpush1.msra.mxu0 %v1172
        %1203 = vmatprep.subr.mxu0 0.0
        %1204 = vmatpush1.msra.mxu0 %v1171
        %1205 = vmatprep.subr.mxu0 0.0
        %1206 = vmatpush1.msra.mxu0 %v1170
        %1207 = vmatprep.subr.mxu0 0.0
        %1208 = vmatpush1.msra.mxu0 %v1169
        %1209 = vmatprep.subr.mxu0 0.0
        %1210 = vmatpush1.msra.mxu0 %v1168
        %1211 = vmatprep.subr.mxu0 0.0
        %1212 = vmatpush1.msra.mxu0 %v1167
        %1213 = vmatprep.subr.mxu0 0.0
        %1214 = vmatpush1.msra.mxu0 %v1166
        %1215 = vmatprep.subr.mxu0 0.0
        %1216 = vmatpush1.msra.mxu0 %v1165
        %1217 = vmatprep.subr.mxu0 0.0
        %1218 = vmatpush1.msra.mxu0 %v1164
        %1219 = vmatprep.subr.mxu0 0.0
        %1220 = vmatpush1.msra.mxu0 %v1163
        %1221 = vmatprep.subr.mxu0 0.0
        %1222 = vmatpush1.msra.mxu0 %v1162
        %1223 = vmatprep.subr.mxu0 0.0
        %1224 = vmatpush1.msra.mxu0 %v1161
        %1225 = vmatprep.subr.mxu0 0.0
        %1226 = vmatpush1.msra.mxu0 %v1160
        %1227 = vmatprep.subr.mxu0 0.0
        %1228 = vmatpush1.msra.mxu0 %v1159
        %1229 = vmatprep.subr.mxu0 0.0
        %1230 = vmatpush2.msra.mxu0 0.0
        %1231 = vmatprep.subr.mxu0 0.0
        %1232 = vmatpush2.msra.mxu0 0.0
        %1233 = vmatprep.subr.mxu0 0.0
        %1234 = vmatpush2.msra.mxu0 0.0
        %1235 = vmatprep.subr.mxu0 0.0
        %1236 = vmatpush2.msra.mxu0 0.0
        %1237 = vmatprep.subr.mxu0 0.0
        %1238 = vmatpush2.msra.mxu0 0.0
        %1239 = vmatprep.subr.mxu0 0.0
        %1240 = vmatpush2.msra.mxu0 0.0
        %1241 = vmatprep.subr.mxu0 0.0
        %1242 = vmatpush2.msra.mxu0 0.0
        %1243 = vmatprep.subr.mxu0 0.0
        %1244 = vmatpush2.msra.mxu0 0.0
        %1245 = vmatprep.subr.mxu0 0.0
        %1246 = vmatpush2.msra.mxu0 0.0
        %1247 = vmatprep.subr.mxu0 0.0
        %1248 = vmatpush2.msra.mxu0 0.0
        %1249 = vmatprep.subr.mxu0 0.0
        %1250 = vmatpush2.msra.mxu0 0.0
        %1251 = vmatprep.subr.mxu0 0.0
        %1252 = vmatpush2.msra.mxu0 %v1195
        %1253 = vmatprep.subr.mxu0 0.0
        %1254 = vmatpush2.msra.mxu0 %v1178
        %1255 = vmatprep.subr.mxu0 0.0
        %1256 = vmatpush2.msra.mxu0 %v1177
        %1257 = vmatprep.subr.mxu0 0.0
        %1258 = vmatpush2.msra.mxu0 %v1176
        %1259 = vmatprep.subr.mxu0 0.0
        %1260 = vmatpush2.msra.mxu0 %v1175
        %1261 = vmatprep.mubr.f32.mxu0 %v1182
        %1262 = vmatmul.mubr.f32.gmra.mxu0 %v1151
        %v1263 = vpop.f32.mrf.mxu0
        %v1264 = vadd.f32 0.0, %v1263
        %v1265 = vpop.f32.mrf.mxu0
        %1266 = vmatprep.mubr.f32.mxu0 %v1185
        %1267 = vmatmul.mubr.f32.gmra.mxu0 %v1153
        %v1268 = vpop.f32.mrf.mxu0
        %v1269 = vadd.f32 0.0, %v1268
        %v1270 = vpop.f32.mrf.mxu0
        %1271 = vmatprep.mubr.f32.mxu0 %v1188
        %1272 = vmatmul.mubr.f32.gmra.mxu0 %v1155
        %v1273 = vpop.f32.mrf.mxu0
        %v1274 = vadd.f32 0.0, %v1273
        %v1275 = vpop.f32.mrf.mxu0
        %1276 = vmatprep.mubr.f32.mxu0 %v1191
        %1277 = vmatmul.mubr.f32.gmra.mxu0 %v1157
        %v1278 = vpop.f32.mrf.mxu0
        %v1279 = vadd.f32 0.0, %v1278
        %v1280 = vpop.f32.mrf.mxu0
        %1281 = vdwg.mxu0
        %v1286 = vrot.slane %v1264, 1
        %v1287 = vrot.slane %v1269, 1
        %v1288 = vsel %vm517, %v1286, %v1287
        %v1289 = vrot.slane %v1274, 1
        %v1290 = vsel %vm517, %v1287, %v1289
        %v1291 = vrot.slane %v1279, 1
        %v1292 = vsel %vm517, %v1289, %v1291
        %v1297 = vmax.f32 %v1264, %v1288
        %v1298 = vmax.f32 %v1269, %v1290
        %v1299 = vmax.f32 %v1274, %v1292
        %v1300 = vmax.f32 %v1279, %v1291
        %v1301 = vld [vmem:[%s4] sm:$0xff]
        %v1302 = vld [vmem:[%s4 + $0x8] sm:$0x3f]
        %vm1303 = vcmask 220160
        %v1305 = vsel %vm1303, %v1301, 0
        %v1308 = vsel %vm1303, %v1302, 0
        %vm1310 = vcmask 1042432
        %v1312 = vsel %vm1310, %v1300, 0
        %1314 = vmatprep.subr.mxu0 0.0
        %1315 = vmatpush1.msra.mxu0 0.0
        %1316 = vmatprep.subr.mxu0 0.0
        %1317 = vmatpush1.msra.mxu0 0.0
        %1318 = vmatprep.subr.mxu0 0.0
        %1319 = vmatpush1.msra.mxu0 0.0
        %1320 = vmatprep.subr.mxu0 0.0
        %1321 = vmatpush1.msra.mxu0 0.0
        %1322 = vmatprep.subr.mxu0 0.0
        %1323 = vmatpush1.msra.mxu0 0.0
        %1324 = vmatprep.subr.mxu0 0.0
        %1325 = vmatpush1.msra.mxu0 0.0
        %1326 = vmatprep.subr.mxu0 0.0
        %1327 = vmatpush1.msra.mxu0 0.0
        %1328 = vmatprep.subr.mxu0 0.0
        %1329 = vmatpush1.msra.mxu0 0.0
        %1330 = vmatprep.subr.mxu0 0.0
        %1331 = vmatpush1.msra.mxu0 0.0
        %1332 = vmatprep.subr.mxu0 0.0
        %1333 = vmatpush1.msra.mxu0 0.0
        %1334 = vmatprep.subr.mxu0 0.0
        %1335 = vmatpush1.msra.mxu0 0.0
        %1336 = vmatprep.subr.mxu0 0.0
        %1337 = vmatpush1.msra.mxu0 0.0
        %1338 = vmatprep.subr.mxu0 0.0
        %1339 = vmatpush1.msra.mxu0 %v1312
        %1340 = vmatprep.subr.mxu0 0.0
        %1341 = vmatpush1.msra.mxu0 %v1299
        %1342 = vmatprep.subr.mxu0 0.0
        %1343 = vmatpush1.msra.mxu0 %v1298
        %1344 = vmatprep.subr.mxu0 0.0
        %1345 = vmatpush1.msra.mxu0 %v1297
        %1346 = vmatprep.subr.mxu0 0.0
        %1347 = vmatpush2.msra.mxu0 0.0
        %1348 = vmatprep.subr.mxu0 0.0
        %1349 = vmatpush2.msra.mxu0 0.0
        %1350 = vmatprep.subr.mxu0 0.0
        %1351 = vmatpush2.msra.mxu0 0.0
        %1352 = vmatprep.subr.mxu0 0.0
        %1353 = vmatpush2.msra.mxu0 0.0
        %1354 = vmatprep.subr.mxu0 0.0
        %1355 = vmatpush2.msra.mxu0 0.0
        %1356 = vmatprep.subr.mxu0 0.0
        %1357 = vmatpush2.msra.mxu0 0.0
        %1358 = vmatprep.subr.mxu0 0.0
        %1359 = vmatpush2.msra.mxu0 0.0
        %1360 = vmatprep.subr.mxu0 0.0
        %1361 = vmatpush2.msra.mxu0 0.0
        %1362 = vmatprep.subr.mxu0 0.0
        %1363 = vmatpush2.msra.mxu0 0.0
        %1364 = vmatprep.subr.mxu0 0.0
        %1365 = vmatpush2.msra.mxu0 0.0
        %1366 = vmatprep.subr.mxu0 0.0
        %1367 = vmatpush2.msra.mxu0 0.0
        %1368 = vmatprep.subr.mxu0 0.0
        %1369 = vmatpush2.msra.mxu0 0.0
        %1370 = vmatprep.subr.mxu0 0.0
        %1371 = vmatpush2.msra.mxu0 0.0
        %1372 = vmatprep.subr.mxu0 0.0
        %1373 = vmatpush2.msra.mxu0 0.0
        %1374 = vmatprep.subr.mxu0 0.0
        %1375 = vmatpush2.msra.mxu0 0.0
        %1376 = vmatprep.subr.mxu0 0.0
        %1377 = vmatpush2.msra.mxu0 0.0
        %1378 = vmatprep.mubr.f32.mxu0 0.0
        %1379 = vmatmul.mubr.f32.gmra.mxu0 %v1305
        %v1380 = vpop.f32.mrf.mxu0
        %v1381 = vadd.f32 0.0, %v1380
        %v1382 = vpop.f32.mrf.mxu0
        %1383 = vmatprep.mubr.f32.mxu0 0.0
        %1384 = vmatmul.mubr.f32.gmra.mxu0 %v1308
        %v1385 = vpop.f32.mrf.mxu0
        %v1386 = vadd.f32 0.0, %v1385
        %v1387 = vpop.f32.mrf.mxu0
        %1388 = vdwg.mxu0
        %v1389 = vld [vmem:[%s5] sm:$0xff]
        %v1390 = vld [vmem:[%s5 + $0x8] sm:$0xff]
        %v1391 = vld [vmem:[%s5 + $0x10] sm:$0xff]
        %v1392 = vld [vmem:[%s5 + $0x18] sm:$0xff]
        %v1393 = vld [vmem:[%s5 + $0x20] sm:$0xff]
        %v1394 = vld [vmem:[%s5 + $0x28] sm:$0xff]
        %v1395 = vld [vmem:[%s5 + $0x30] sm:$0xff]
        %v1396 = vld [vmem:[%s5 + $0x38] sm:$0xff]
        %v1397 = vld [vmem:[%s5 + $0x40] sm:$0xff]
        %v1398 = vld [vmem:[%s5 + $0x48] sm:$0xff]
        %v1399 = vld [vmem:[%s5 + $0x50] sm:$0xff]
        %v1400 = vld [vmem:[%s5 + $0x58] sm:$0xff]
        %v1401 = vld [vmem:[%s5 + $0x60] sm:$0xff]
        %v1402 = vld [vmem:[%s5 + $0x68] sm:$0xff]
        %v1403 = vld [vmem:[%s5 + $0x70] sm:$0xff]
        %v1404 = vld [vmem:[%s5 + $0x78] sm:$0xff]
        %v1405 = vld [vmem:[%s5 + $0x80] sm:$0xff]
        %v1406 = vld [vmem:[%s5 + $0x88] sm:$0xff]
        %v1407 = vld [vmem:[%s5 + $0x90] sm:$0xff]
        %v1408 = vld [vmem:[%s5 + $0x98] sm:$0xff]
        %v1409 = vld [vmem:[%s5 + $0xa0] sm:$0xf]
        %v1410 = vld [vmem:[%s5 + $0xa8] sm:$0xf]
        %s1411 = scalar_lea.vmem %s5, 176
        %v1412 = vld [vmem:[%s1411] sm:$0xff]
        %v1413 = vld [vmem:[%s1411 + $0x8] sm:$0xff]
        %v1414 = vld [vmem:[%s1411 + $0x10] sm:$0xff]
        %v1415 = vld [vmem:[%s1411 + $0x18] sm:$0xff]
        %v1416 = vld [vmem:[%s1411 + $0x20] sm:$0xff]
        %v1417 = vld [vmem:[%s1411 + $0x28] sm:$0xff]
        %v1418 = vld [vmem:[%s1411 + $0x30] sm:$0xff]
        %v1419 = vld [vmem:[%s1411 + $0x38] sm:$0xff]
        %v1420 = vld [vmem:[%s1411 + $0x40] sm:$0xff]
        %v1421 = vld [vmem:[%s1411 + $0x48] sm:$0xff]
        %v1422 = vld [vmem:[%s1411 + $0x50] sm:$0xff]
        %v1423 = vld [vmem:[%s1411 + $0x58] sm:$0xff]
        %v1424 = vld [vmem:[%s1411 + $0x60] sm:$0xff]
        %v1425 = vld [vmem:[%s1411 + $0x68] sm:$0xff]
        %v1426 = vld [vmem:[%s1411 + $0x70] sm:$0xff]
        %v1427 = vld [vmem:[%s1411 + $0x78] sm:$0xff]
        %v1428 = vld [vmem:[%s1411 + $0x80] sm:$0xff]
        %v1429 = vld [vmem:[%s1411 + $0x88] sm:$0xff]
        %v1430 = vld [vmem:[%s1411 + $0x90] sm:$0xff]
        %v1431 = vld [vmem:[%s1411 + $0x98] sm:$0xff]
        %v1432 = vld [vmem:[%s1411 + $0xa0] sm:$0xf]
        %v1433 = vld [vmem:[%s1411 + $0xa8] sm:$0xf]
        %v1436 = vrot.slane %v1381, 1
        %v1437 = vrot.slane %v1386, 1
        %v1438 = vsel %vm517, %v1436, %v1437
        %vm1439 = vcmask 687104
        %v1440 = vsel %vm1439, %v1438, 0
        %v1442 = vsel %vm1439, %v1437, 0
        %v1445 = vsel %vm973, %v1432, 0
        %v1448 = vsel %vm973, %v1433, 0
        %1450 = vmatprep.subr.mxu0 0.0
        %1451 = vmatpush1.msra.mxu0 0.0
        %1452 = vmatprep.subr.mxu0 0.0
        %1453 = vmatpush1.msra.mxu0 0.0
        %1454 = vmatprep.subr.mxu0 0.0
        %1455 = vmatpush1.msra.mxu0 0.0
        %1456 = vmatprep.subr.mxu0 0.0
        %1457 = vmatpush1.msra.mxu0 0.0
        %1458 = vmatprep.subr.mxu0 0.0
        %1459 = vmatpush1.msra.mxu0 0.0
        %1460 = vmatprep.subr.mxu0 %v1448
        %1461 = vmatpush1.msra.mxu0 %v1445
        %1462 = vmatprep.subr.mxu0 %v1431
        %1463 = vmatpush1.msra.mxu0 %v1430
        %1464 = vmatprep.subr.mxu0 %v1429
        %1465 = vmatpush1.msra.mxu0 %v1428
        %1466 = vmatprep.subr.mxu0 %v1427
        %1467 = vmatpush1.msra.mxu0 %v1426
        %1468 = vmatprep.subr.mxu0 %v1425
        %1469 = vmatpush1.msra.mxu0 %v1424
        %1470 = vmatprep.subr.mxu0 %v1423
        %1471 = vmatpush1.msra.mxu0 %v1422
        %1472 = vmatprep.subr.mxu0 %v1421
        %1473 = vmatpush1.msra.mxu0 %v1420
        %1474 = vmatprep.subr.mxu0 %v1419
        %1475 = vmatpush1.msra.mxu0 %v1418
        %1476 = vmatprep.subr.mxu0 %v1417
        %1477 = vmatpush1.msra.mxu0 %v1416
        %1478 = vmatprep.subr.mxu0 %v1415
        %1479 = vmatpush1.msra.mxu0 %v1414
        %1480 = vmatprep.subr.mxu0 %v1413
        %1481 = vmatpush1.msra.mxu0 %v1412
        %1482 = vmatprep.subr.mxu0 0.0
        %1483 = vmatpush2.msra.mxu0 0.0
        %1484 = vmatprep.subr.mxu0 0.0
        %1485 = vmatpush2.msra.mxu0 0.0
        %1486 = vmatprep.subr.mxu0 0.0
        %1487 = vmatpush2.msra.mxu0 0.0
        %1488 = vmatprep.subr.mxu0 0.0
        %1489 = vmatpush2.msra.mxu0 0.0
        %1490 = vmatprep.subr.mxu0 0.0
        %1491 = vmatpush2.msra.mxu0 0.0
        %1492 = vmatprep.subr.mxu0 0.0
        %1493 = vmatpush2.msra.mxu0 0.0
        %1494 = vmatprep.subr.mxu0 0.0
        %1495 = vmatpush2.msra.mxu0 0.0
        %1496 = vmatprep.subr.mxu0 0.0
        %1497 = vmatpush2.msra.mxu0 0.0
        %1498 = vmatprep.subr.mxu0 0.0
        %1499 = vmatpush2.msra.mxu0 0.0
        %1500 = vmatprep.subr.mxu0 0.0
        %1501 = vmatpush2.msra.mxu0 0.0
        %1502 = vmatprep.subr.mxu0 0.0
        %1503 = vmatpush2.msra.mxu0 0.0
        %1504 = vmatprep.subr.mxu0 0.0
        %1505 = vmatpush2.msra.mxu0 0.0
        %1506 = vmatprep.subr.mxu0 0.0
        %1507 = vmatpush2.msra.mxu0 0.0
        %1508 = vmatprep.subr.mxu0 0.0
        %1509 = vmatpush2.msra.mxu0 0.0
        %1510 = vmatprep.subr.mxu0 0.0
        %1511 = vmatpush2.msra.mxu0 0.0
        %1512 = vmatprep.subr.mxu0 0.0
        %1513 = vmatpush2.msra.mxu0 0.0
        %1514 = vmatprep.mubr.f32.mxu0 0.0
        %1515 = vmatmul.mubr.f32.gmra.mxu0 %v1440
        %v1516 = vpop.f32.mrf.mxu0
        %v1517 = vadd.f32 0.0, %v1516
        %v1518 = vpop.f32.mrf.mxu0
        %v1519 = vadd.f32 0.0, %v1518
        %1520 = vmatprep.mubr.f32.mxu0 0.0
        %1521 = vmatmul.mubr.f32.gmra.mxu0 %v1442
        %v1522 = vpop.f32.mrf.mxu0
        %v1523 = vadd.f32 0.0, %v1522
        %v1524 = vpop.f32.mrf.mxu0
        %v1525 = vadd.f32 0.0, %v1524
        %1526 = vdwg.mxu0
        %v1527 = vsel %vm1439, %v1381, 0
        %v1529 = vsel %vm1439, %v1386, 0
        %v1532 = vsel %vm973, %v1409, 0
        %v1535 = vsel %vm973, %v1410, 0
        %1537 = vmatprep.subr.mxu0 0.0
        %1538 = vmatpush1.msra.mxu0 0.0
        %1539 = vmatprep.subr.mxu0 0.0
        %1540 = vmatpush1.msra.mxu0 0.0
        %1541 = vmatprep.subr.mxu0 0.0
        %1542 = vmatpush1.msra.mxu0 0.0
        %1543 = vmatprep.subr.mxu0 0.0
        %1544 = vmatpush1.msra.mxu0 0.0
        %1545 = vmatprep.subr.mxu0 0.0
        %1546 = vmatpush1.msra.mxu0 0.0
        %1547 = vmatprep.subr.mxu0 %v1535
        %1548 = vmatpush1.msra.mxu0 %v1532
        %1549 = vmatprep.subr.mxu0 %v1408
        %1550 = vmatpush1.msra.mxu0 %v1407
        %1551 = vmatprep.subr.mxu0 %v1406
        %1552 = vmatpush1.msra.mxu0 %v1405
        %1553 = vmatprep.subr.mxu0 %v1404
        %1554 = vmatpush1.msra.mxu0 %v1403
        %1555 = vmatprep.subr.mxu0 %v1402
        %1556 = vmatpush1.msra.mxu0 %v1401
        %1557 = vmatprep.subr.mxu0 %v1400
        %1558 = vmatpush1.msra.mxu0 %v1399
        %1559 = vmatprep.subr.mxu0 %v1398
        %1560 = vmatpush1.msra.mxu0 %v1397
        %1561 = vmatprep.subr.mxu0 %v1396
        %1562 = vmatpush1.msra.mxu0 %v1395
        %1563 = vmatprep.subr.mxu0 %v1394
        %1564 = vmatpush1.msra.mxu0 %v1393
        %1565 = vmatprep.subr.mxu0 %v1392
        %1566 = vmatpush1.msra.mxu0 %v1391
        %1567 = vmatprep.subr.mxu0 %v1390
        %1568 = vmatpush1.msra.mxu0 %v1389
        %1569 = vmatprep.subr.mxu0 0.0
        %1570 = vmatpush2.msra.mxu0 0.0
        %1571 = vmatprep.subr.mxu0 0.0
        %1572 = vmatpush2.msra.mxu0 0.0
        %1573 = vmatprep.subr.mxu0 0.0
        %1574 = vmatpush2.msra.mxu0 0.0
        %1575 = vmatprep.subr.mxu0 0.0
        %1576 = vmatpush2.msra.mxu0 0.0
        %1577 = vmatprep.subr.mxu0 0.0
        %1578 = vmatpush2.msra.mxu0 0.0
        %1579 = vmatprep.subr.mxu0 0.0
        %1580 = vmatpush2.msra.mxu0 0.0
        %1581 = vmatprep.subr.mxu0 0.0
        %1582 = vmatpush2.msra.mxu0 0.0
        %1583 = vmatprep.subr.mxu0 0.0
        %1584 = vmatpush2.msra.mxu0 0.0
        %1585 = vmatprep.subr.mxu0 0.0
        %1586 = vmatpush2.msra.mxu0 0.0
        %1587 = vmatprep.subr.mxu0 0.0
        %1588 = vmatpush2.msra.mxu0 0.0
        %1589 = vmatprep.subr.mxu0 0.0
        %1590 = vmatpush2.msra.mxu0 0.0
        %1591 = vmatprep.subr.mxu0 0.0
        %1592 = vmatpush2.msra.mxu0 0.0
        %1593 = vmatprep.subr.mxu0 0.0
        %1594 = vmatpush2.msra.mxu0 0.0
        %1595 = vmatprep.subr.mxu0 0.0
        %1596 = vmatpush2.msra.mxu0 0.0
        %1597 = vmatprep.subr.mxu0 0.0
        %1598 = vmatpush2.msra.mxu0 0.0
        %1599 = vmatprep.subr.mxu0 0.0
        %1600 = vmatpush2.msra.mxu0 0.0
        %1601 = vmatprep.mubr.f32.mxu0 0.0
        %1602 = vmatmul.mubr.f32.gmra.mxu0 %v1527
        %v1603 = vpop.f32.mrf.mxu0
        %v1604 = vadd.f32 %v1517, %v1603
        %v1605 = vpop.f32.mrf.mxu0
        %v1606 = vadd.f32 %v1519, %v1605
        %1607 = vmatprep.mubr.f32.mxu0 0.0
        %1608 = vmatmul.mubr.f32.gmra.mxu0 %v1529
        %v1609 = vpop.f32.mrf.mxu0
        %v1610 = vadd.f32 %v1523, %v1609
        %v1611 = vpop.f32.mrf.mxu0
        %v1612 = vadd.f32 %v1525, %v1611
        %1613 = vdwg.mxu0
        %s1614 = scalar_lea.vmem %s5, 352
        %v1615 = vld [vmem:[%s1614] sm:$0xff]
        %v1616 = vld [vmem:[%s1614 + $0x8] sm:$0xff]
        %v1617 = vld [vmem:[%s1614 + $0x10] sm:$0xff]
        %v1618 = vld [vmem:[%s1614 + $0x18] sm:$0xff]
        %v1619 = vld [vmem:[%s1614 + $0x20] sm:$0xff]
        %v1620 = vld [vmem:[%s1614 + $0x28] sm:$0xff]
        %v1621 = vld [vmem:[%s1614 + $0x30] sm:$0xff]
        %v1622 = vld [vmem:[%s1614 + $0x38] sm:$0xff]
        %v1623 = vld [vmem:[%s1614 + $0x40] sm:$0xff]
        %v1624 = vld [vmem:[%s1614 + $0x48] sm:$0xff]
        %v1625 = vld [vmem:[%s1614 + $0x50] sm:$0xff]
        %v1626 = vld [vmem:[%s1614 + $0x58] sm:$0xff]
        %v1627 = vld [vmem:[%s1614 + $0x60] sm:$0xff]
        %v1628 = vld [vmem:[%s1614 + $0x68] sm:$0xff]
        %v1629 = vld [vmem:[%s1614 + $0x70] sm:$0xff]
        %v1630 = vld [vmem:[%s1614 + $0x78] sm:$0xff]
        %v1631 = vld [vmem:[%s1614 + $0x80] sm:$0xff]
        %v1632 = vld [vmem:[%s1614 + $0x88] sm:$0xff]
        %v1633 = vld [vmem:[%s1614 + $0x90] sm:$0xff]
        %v1634 = vld [vmem:[%s1614 + $0x98] sm:$0xff]
        %v1635 = vld [vmem:[%s1614 + $0xa0] sm:$0xf]
        %v1636 = vld [vmem:[%s1614 + $0xa8] sm:$0xf]
        %v1637 = vrot.slane %v1381, 2
        %v1638 = vrot.slane %v1386, 2
        %v1639 = vsel %vm729, %v1637, %v1638
        %v1640 = vsel %vm1439, %v1639, 0
        %v1642 = vsel %vm1439, %v1638, 0
        %v1645 = vsel %vm973, %v1635, 0
        %v1648 = vsel %vm973, %v1636, 0
        %1650 = vmatprep.subr.mxu0 0.0
        %1651 = vmatpush1.msra.mxu0 0.0
        %1652 = vmatprep.subr.mxu0 0.0
        %1653 = vmatpush1.msra.mxu0 0.0
        %1654 = vmatprep.subr.mxu0 0.0
        %1655 = vmatpush1.msra.mxu0 0.0
        %1656 = vmatprep.subr.mxu0 0.0
        %1657 = vmatpush1.msra.mxu0 0.0
        %1658 = vmatprep.subr.mxu0 0.0
        %1659 = vmatpush1.msra.mxu0 0.0
        %1660 = vmatprep.subr.mxu0 %v1648
        %1661 = vmatpush1.msra.mxu0 %v1645
        %1662 = vmatprep.subr.mxu0 %v1634
        %1663 = vmatpush1.msra.mxu0 %v1633
        %1664 = vmatprep.subr.mxu0 %v1632
        %1665 = vmatpush1.msra.mxu0 %v1631
        %1666 = vmatprep.subr.mxu0 %v1630
        %1667 = vmatpush1.msra.mxu0 %v1629
        %1668 = vmatprep.subr.mxu0 %v1628
        %1669 = vmatpush1.msra.mxu0 %v1627
        %1670 = vmatprep.subr.mxu0 %v1626
        %1671 = vmatpush1.msra.mxu0 %v1625
        %1672 = vmatprep.subr.mxu0 %v1624
        %1673 = vmatpush1.msra.mxu0 %v1623
        %1674 = vmatprep.subr.mxu0 %v1622
        %1675 = vmatpush1.msra.mxu0 %v1621
        %1676 = vmatprep.subr.mxu0 %v1620
        %1677 = vmatpush1.msra.mxu0 %v1619
        %1678 = vmatprep.subr.mxu0 %v1618
        %1679 = vmatpush1.msra.mxu0 %v1617
        %1680 = vmatprep.subr.mxu0 %v1616
        %1681 = vmatpush1.msra.mxu0 %v1615
        %1682 = vmatprep.subr.mxu0 0.0
        %1683 = vmatpush2.msra.mxu0 0.0
        %1684 = vmatprep.subr.mxu0 0.0
        %1685 = vmatpush2.msra.mxu0 0.0
        %1686 = vmatprep.subr.mxu0 0.0
        %1687 = vmatpush2.msra.mxu0 0.0
        %1688 = vmatprep.subr.mxu0 0.0
        %1689 = vmatpush2.msra.mxu0 0.0
        %1690 = vmatprep.subr.mxu0 0.0
        %1691 = vmatpush2.msra.mxu0 0.0
        %1692 = vmatprep.subr.mxu0 0.0
        %1693 = vmatpush2.msra.mxu0 0.0
        %1694 = vmatprep.subr.mxu0 0.0
        %1695 = vmatpush2.msra.mxu0 0.0
        %1696 = vmatprep.subr.mxu0 0.0
        %1697 = vmatpush2.msra.mxu0 0.0
        %1698 = vmatprep.subr.mxu0 0.0
        %1699 = vmatpush2.msra.mxu0 0.0
        %1700 = vmatprep.subr.mxu0 0.0
        %1701 = vmatpush2.msra.mxu0 0.0
        %1702 = vmatprep.subr.mxu0 0.0
        %1703 = vmatpush2.msra.mxu0 0.0
        %1704 = vmatprep.subr.mxu0 0.0
        %1705 = vmatpush2.msra.mxu0 0.0
        %1706 = vmatprep.subr.mxu0 0.0
        %1707 = vmatpush2.msra.mxu0 0.0
        %1708 = vmatprep.subr.mxu0 0.0
        %1709 = vmatpush2.msra.mxu0 0.0
        %1710 = vmatprep.subr.mxu0 0.0
        %1711 = vmatpush2.msra.mxu0 0.0
        %1712 = vmatprep.subr.mxu0 0.0
        %1713 = vmatpush2.msra.mxu0 0.0
        %1714 = vmatprep.mubr.f32.mxu0 0.0
        %1715 = vmatmul.mubr.f32.gmra.mxu0 %v1640
        %v1716 = vpop.f32.mrf.mxu0
        %v1717 = vadd.f32 0.0, %v1716
        %v1718 = vpop.f32.mrf.mxu0
        %v1719 = vadd.f32 0.0, %v1718
        %1720 = vmatprep.mubr.f32.mxu0 0.0
        %1721 = vmatmul.mubr.f32.gmra.mxu0 %v1642
        %v1722 = vpop.f32.mrf.mxu0
        %v1723 = vadd.f32 0.0, %v1722
        %v1724 = vpop.f32.mrf.mxu0
        %v1725 = vadd.f32 0.0, %v1724
        %1726 = vdwg.mxu0
        %v1727 = vadd.f32 %v1604, %v1717
        %v1728 = vadd.f32 %v1606, %v1719
        %v1729 = vadd.f32 %v1610, %v1723
        %v1730 = vadd.f32 %v1612, %v1725
        %s1731 = scalar_lea.vmem %s5, 528
        %v1732 = vld [vmem:[%s1731] sm:$0xff]
        %v1733 = vld [vmem:[%s1731 + $0x8] sm:$0xff]
        %v1734 = vld [vmem:[%s1731 + $0x10] sm:$0xff]
        %v1735 = vld [vmem:[%s1731 + $0x18] sm:$0xff]
        %v1736 = vld [vmem:[%s1731 + $0x20] sm:$0xff]
        %v1737 = vld [vmem:[%s1731 + $0x28] sm:$0xff]
        %v1738 = vld [vmem:[%s1731 + $0x30] sm:$0xff]
        %v1739 = vld [vmem:[%s1731 + $0x38] sm:$0xff]
        %v1740 = vld [vmem:[%s1731 + $0x40] sm:$0xff]
        %v1741 = vld [vmem:[%s1731 + $0x48] sm:$0xff]
        %v1742 = vld [vmem:[%s1731 + $0x50] sm:$0xff]
        %v1743 = vld [vmem:[%s1731 + $0x58] sm:$0xff]
        %v1744 = vld [vmem:[%s1731 + $0x60] sm:$0xff]
        %v1745 = vld [vmem:[%s1731 + $0x68] sm:$0xff]
        %v1746 = vld [vmem:[%s1731 + $0x70] sm:$0xff]
        %v1747 = vld [vmem:[%s1731 + $0x78] sm:$0xff]
        %v1748 = vld [vmem:[%s1731 + $0x80] sm:$0xff]
        %v1749 = vld [vmem:[%s1731 + $0x88] sm:$0xff]
        %v1750 = vld [vmem:[%s1731 + $0x90] sm:$0xff]
        %v1751 = vld [vmem:[%s1731 + $0x98] sm:$0xff]
        %v1752 = vld [vmem:[%s1731 + $0xa0] sm:$0xf]
        %v1753 = vld [vmem:[%s1731 + $0xa8] sm:$0xf]
        %v1754 = vrot.slane %v1381, 3
        %v1755 = vrot.slane %v1386, 3
        %v1756 = vsel %vm851, %v1754, %v1755
        %v1757 = vsel %vm1439, %v1756, 0
        %v1759 = vsel %vm1439, %v1755, 0
        %v1762 = vsel %vm973, %v1752, 0
        %v1765 = vsel %vm973, %v1753, 0
        %1767 = vmatprep.subr.mxu0 0.0
        %1768 = vmatpush1.msra.mxu0 0.0
        %1769 = vmatprep.subr.mxu0 0.0
        %1770 = vmatpush1.msra.mxu0 0.0
        %1771 = vmatprep.subr.mxu0 0.0
        %1772 = vmatpush1.msra.mxu0 0.0
        %1773 = vmatprep.subr.mxu0 0.0
        %1774 = vmatpush1.msra.mxu0 0.0
        %1775 = vmatprep.subr.mxu0 0.0
        %1776 = vmatpush1.msra.mxu0 0.0
        %1777 = vmatprep.subr.mxu0 %v1765
        %1778 = vmatpush1.msra.mxu0 %v1762
        %1779 = vmatprep.subr.mxu0 %v1751
        %1780 = vmatpush1.msra.mxu0 %v1750
        %1781 = vmatprep.subr.mxu0 %v1749
        %1782 = vmatpush1.msra.mxu0 %v1748
        %1783 = vmatprep.subr.mxu0 %v1747
        %1784 = vmatpush1.msra.mxu0 %v1746
        %1785 = vmatprep.subr.mxu0 %v1745
        %1786 = vmatpush1.msra.mxu0 %v1744
        %1787 = vmatprep.subr.mxu0 %v1743
        %1788 = vmatpush1.msra.mxu0 %v1742
        %1789 = vmatprep.subr.mxu0 %v1741
        %1790 = vmatpush1.msra.mxu0 %v1740
        %1791 = vmatprep.subr.mxu0 %v1739
        %1792 = vmatpush1.msra.mxu0 %v1738
        %1793 = vmatprep.subr.mxu0 %v1737
        %1794 = vmatpush1.msra.mxu0 %v1736
        %1795 = vmatprep.subr.mxu0 %v1735
        %1796 = vmatpush1.msra.mxu0 %v1734
        %1797 = vmatprep.subr.mxu0 %v1733
        %1798 = vmatpush1.msra.mxu0 %v1732
        %1799 = vmatprep.subr.mxu0 0.0
        %1800 = vmatpush2.msra.mxu0 0.0
        %1801 = vmatprep.subr.mxu0 0.0
        %1802 = vmatpush2.msra.mxu0 0.0
        %1803 = vmatprep.subr.mxu0 0.0
        %1804 = vmatpush2.msra.mxu0 0.0
        %1805 = vmatprep.subr.mxu0 0.0
        %1806 = vmatpush2.msra.mxu0 0.0
        %1807 = vmatprep.subr.mxu0 0.0
        %1808 = vmatpush2.msra.mxu0 0.0
        %1809 = vmatprep.subr.mxu0 0.0
        %1810 = vmatpush2.msra.mxu0 0.0
        %1811 = vmatprep.subr.mxu0 0.0
        %1812 = vmatpush2.msra.mxu0 0.0
        %1813 = vmatprep.subr.mxu0 0.0
        %1814 = vmatpush2.msra.mxu0 0.0
        %1815 = vmatprep.subr.mxu0 0.0
        %1816 = vmatpush2.msra.mxu0 0.0
        %1817 = vmatprep.subr.mxu0 0.0
        %1818 = vmatpush2.msra.mxu0 0.0
        %1819 = vmatprep.subr.mxu0 0.0
        %1820 = vmatpush2.msra.mxu0 0.0
        %1821 = vmatprep.subr.mxu0 0.0
        %1822 = vmatpush2.msra.mxu0 0.0
        %1823 = vmatprep.subr.mxu0 0.0
        %1824 = vmatpush2.msra.mxu0 0.0
        %1825 = vmatprep.subr.mxu0 0.0
        %1826 = vmatpush2.msra.mxu0 0.0
        %1827 = vmatprep.subr.mxu0 0.0
        %1828 = vmatpush2.msra.mxu0 0.0
        %1829 = vmatprep.subr.mxu0 0.0
        %1830 = vmatpush2.msra.mxu0 0.0
        %1831 = vmatprep.mubr.f32.mxu0 0.0
        %1832 = vmatmul.mubr.f32.gmra.mxu0 %v1757
        %v1833 = vpop.f32.mrf.mxu0
        %v1834 = vadd.f32 0.0, %v1833
        %v1835 = vpop.f32.mrf.mxu0
        %v1836 = vadd.f32 0.0, %v1835
        %1837 = vmatprep.mubr.f32.mxu0 0.0
        %1838 = vmatmul.mubr.f32.gmra.mxu0 %v1759
        %v1839 = vpop.f32.mrf.mxu0
        %v1840 = vadd.f32 0.0, %v1839
        %v1841 = vpop.f32.mrf.mxu0
        %v1842 = vadd.f32 0.0, %v1841
        %1843 = vdwg.mxu0
        %v1844 = vadd.f32 %v1727, %v1834
        %v1845 = vadd.f32 %v1728, %v1836
        %v1846 = vadd.f32 %v1729, %v1840
        %v1847 = vadd.f32 %v1730, %v1842
        %s1848 = scalar_lea.vmem %s5, 704
        %v1849 = vld [vmem:[%s1848] sm:$0xff]
        %v1850 = vld [vmem:[%s1848 + $0x8] sm:$0xff]
        %v1851 = vld [vmem:[%s1848 + $0x10] sm:$0xff]
        %v1852 = vld [vmem:[%s1848 + $0x18] sm:$0xff]
        %v1853 = vld [vmem:[%s1848 + $0x20] sm:$0xff]
        %v1854 = vld [vmem:[%s1848 + $0x28] sm:$0xff]
        %v1855 = vld [vmem:[%s1848 + $0x30] sm:$0xff]
        %v1856 = vld [vmem:[%s1848 + $0x38] sm:$0xff]
        %v1857 = vld [vmem:[%s1848 + $0x40] sm:$0xff]
        %v1858 = vld [vmem:[%s1848 + $0x48] sm:$0xff]
        %v1859 = vld [vmem:[%s1848 + $0x50] sm:$0xff]
        %v1860 = vld [vmem:[%s1848 + $0x58] sm:$0xff]
        %v1861 = vld [vmem:[%s1848 + $0x60] sm:$0xff]
        %v1862 = vld [vmem:[%s1848 + $0x68] sm:$0xff]
        %v1863 = vld [vmem:[%s1848 + $0x70] sm:$0xff]
        %v1864 = vld [vmem:[%s1848 + $0x78] sm:$0xff]
        %v1865 = vld [vmem:[%s1848 + $0x80] sm:$0xff]
        %v1866 = vld [vmem:[%s1848 + $0x88] sm:$0xff]
        %v1867 = vld [vmem:[%s1848 + $0x90] sm:$0xff]
        %v1868 = vld [vmem:[%s1848 + $0x98] sm:$0xff]
        %v1869 = vld [vmem:[%s1848 + $0xa0] sm:$0xf]
        %v1870 = vld [vmem:[%s1848 + $0xa8] sm:$0xf]
        %v1871 = vrot.slane %v1381, 4
        %v1872 = vrot.slane %v1386, 4
        %v1873 = vsel %vm973, %v1871, %v1872
        %v1874 = vsel %vm1439, %v1873, 0
        %v1876 = vsel %vm1439, %v1872, 0
        %v1879 = vsel %vm973, %v1869, 0
        %v1882 = vsel %vm973, %v1870, 0
        %1884 = vmatprep.subr.mxu0 0.0
        %1885 = vmatpush1.msra.mxu0 0.0
        %1886 = vmatprep.subr.mxu0 0.0
        %1887 = vmatpush1.msra.mxu0 0.0
        %1888 = vmatprep.subr.mxu0 0.0
        %1889 = vmatpush1.msra.mxu0 0.0
        %1890 = vmatprep.subr.mxu0 0.0
        %1891 = vmatpush1.msra.mxu0 0.0
        %1892 = vmatprep.subr.mxu0 0.0
        %1893 = vmatpush1.msra.mxu0 0.0
        %1894 = vmatprep.subr.mxu0 %v1882
        %1895 = vmatpush1.msra.mxu0 %v1879
        %1896 = vmatprep.subr.mxu0 %v1868
        %1897 = vmatpush1.msra.mxu0 %v1867
        %1898 = vmatprep.subr.mxu0 %v1866
        %1899 = vmatpush1.msra.mxu0 %v1865
        %1900 = vmatprep.subr.mxu0 %v1864
        %1901 = vmatpush1.msra.mxu0 %v1863
        %1902 = vmatprep.subr.mxu0 %v1862
        %1903 = vmatpush1.msra.mxu0 %v1861
        %1904 = vmatprep.subr.mxu0 %v1860
        %1905 = vmatpush1.msra.mxu0 %v1859
        %1906 = vmatprep.subr.mxu0 %v1858
        %1907 = vmatpush1.msra.mxu0 %v1857
        %1908 = vmatprep.subr.mxu0 %v1856
        %1909 = vmatpush1.msra.mxu0 %v1855
        %1910 = vmatprep.subr.mxu0 %v1854
        %1911 = vmatpush1.msra.mxu0 %v1853
        %1912 = vmatprep.subr.mxu0 %v1852
        %1913 = vmatpush1.msra.mxu0 %v1851
        %1914 = vmatprep.subr.mxu0 %v1850
        %1915 = vmatpush1.msra.mxu0 %v1849
        %1916 = vmatprep.subr.mxu0 0.0
        %1917 = vmatpush2.msra.mxu0 0.0
        %1918 = vmatprep.subr.mxu0 0.0
        %1919 = vmatpush2.msra.mxu0 0.0
        %1920 = vmatprep.subr.mxu0 0.0
        %1921 = vmatpush2.msra.mxu0 0.0
        %1922 = vmatprep.subr.mxu0 0.0
        %1923 = vmatpush2.msra.mxu0 0.0
        %1924 = vmatprep.subr.mxu0 0.0
        %1925 = vmatpush2.msra.mxu0 0.0
        %1926 = vmatprep.subr.mxu0 0.0
        %1927 = vmatpush2.msra.mxu0 0.0
        %1928 = vmatprep.subr.mxu0 0.0
        %1929 = vmatpush2.msra.mxu0 0.0
        %1930 = vmatprep.subr.mxu0 0.0
        %1931 = vmatpush2.msra.mxu0 0.0
        %1932 = vmatprep.subr.mxu0 0.0
        %1933 = vmatpush2.msra.mxu0 0.0
        %1934 = vmatprep.subr.mxu0 0.0
        %1935 = vmatpush2.msra.mxu0 0.0
        %1936 = vmatprep.subr.mxu0 0.0
        %1937 = vmatpush2.msra.mxu0 0.0
        %1938 = vmatprep.subr.mxu0 0.0
        %1939 = vmatpush2.msra.mxu0 0.0
        %1940 = vmatprep.subr.mxu0 0.0
        %1941 = vmatpush2.msra.mxu0 0.0
        %1942 = vmatprep.subr.mxu0 0.0
        %1943 = vmatpush2.msra.mxu0 0.0
        %1944 = vmatprep.subr.mxu0 0.0
        %1945 = vmatpush2.msra.mxu0 0.0
        %1946 = vmatprep.subr.mxu0 0.0
        %1947 = vmatpush2.msra.mxu0 0.0
        %1948 = vmatprep.mubr.f32.mxu0 0.0
        %1949 = vmatmul.mubr.f32.gmra.mxu0 %v1874
        %v1950 = vpop.f32.mrf.mxu0
        %v1951 = vadd.f32 0.0, %v1950
        %v1952 = vpop.f32.mrf.mxu0
        %v1953 = vadd.f32 0.0, %v1952
        %1954 = vmatprep.mubr.f32.mxu0 0.0
        %1955 = vmatmul.mubr.f32.gmra.mxu0 %v1876
        %v1956 = vpop.f32.mrf.mxu0
        %v1957 = vadd.f32 0.0, %v1956
        %v1958 = vpop.f32.mrf.mxu0
        %v1959 = vadd.f32 0.0, %v1958
        %1960 = vdwg.mxu0
        %v1961 = vadd.f32 %v1844, %v1951
        %v1962 = vadd.f32 %v1845, %v1953
        %v1963 = vadd.f32 %v1846, %v1957
        %v1964 = vadd.f32 %v1847, %v1959
        %v1965 = vld [vmem:[%s6] sm:$0x3]
        %v1967 = vlaneseq
        %v1968 = vshrl.u32 %v1967, 7
        %v1969 = vsub.s32 0, %v1968
        %v1970 = vrot.slane %v1965, %v1969
        %v1971 = vlaneseq
        %v1972 = vshrl.u32 %v1971, 7
        %v1973 = vsub.s32 1, %v1972
        %v1974 = vrot.slane %v1965, %v1973
        %v1977 = vadd.f32 %v1961, %v1970
        %v1978 = vadd.f32 %v1962, %v1974
        %v1979 = vadd.f32 %v1963, %v1970
        %v1980 = vadd.f32 %v1964, %v1974
        %v1981 = vmax.f32 %v1977, 0.0
        %v1982 = vmax.f32 %v1978, 0.0
        %v1983 = vmax.f32 %v1979, 0.0
        %v1984 = vmax.f32 %v1980, 0.0
        %1989 = vrot.lane.b32.xlu0 %v1981, 112
        %v1990 = vpop.permute.xlu0 %1989
        %1991 = vrot.lane.b32.xlu0 %v1982, 112
        %v1992 = vpop.permute.xlu0 %1991
        %1993 = vrot.lane.b32.xlu0 %v1983, 112
        %v1994 = vpop.permute.xlu0 %1993
        %1995 = vrot.lane.b32.xlu0 %v1984, 112
        %v1996 = vpop.permute.xlu0 %1995
        %vm1997 = vcmask 916480
        %v1998 = vsel %vm1997, %v1990, %v1992
        %v1999 = vsel %vm1997, %v1994, %v1996
        %v2004 = vmax.f32 %v1981, %v1998
        %v2005 = vmax.f32 %v1982, %v1992
        %v2006 = vmax.f32 %v1983, %v1999
        %v2007 = vmax.f32 %v1984, %v1996
        %v2008 = vld [vmem:[%s7] sm:$0xff]
        %v2009 = vld [vmem:[%s7 + $0x8] sm:$0xff]
        %v2010 = vld [vmem:[%s7 + $0x10] sm:$0xff]
        %v2011 = vld [vmem:[%s7 + $0x18] sm:$0xff]
        %v2012 = vld [vmem:[%s7 + $0x20] sm:$0xff]
        %v2013 = vld [vmem:[%s7 + $0x28] sm:$0xff]
        %v2014 = vld [vmem:[%s7 + $0x30] sm:$0xff]
        %v2015 = vld [vmem:[%s7 + $0x38] sm:$0xff]
        %v2016 = vld [vmem:[%s7 + $0x40] sm:$0xff]
        %v2017 = vld [vmem:[%s7 + $0x48] sm:$0xff]
        %v2018 = vld [vmem:[%s7 + $0x50] sm:$0xff]
        %v2019 = vld [vmem:[%s7 + $0x58] sm:$0xff]
        %v2020 = vld [vmem:[%s7 + $0x60] sm:$0xff]
        %v2021 = vld [vmem:[%s7 + $0x68] sm:$0xff]
        %v2022 = vld [vmem:[%s7 + $0x70] sm:$0xff]
        %v2023 = vld [vmem:[%s7 + $0x78] sm:$0xff]
        %v2024 = vld [vmem:[%s7 + $0x80] sm:$0xff]
        %v2025 = vld [vmem:[%s7 + $0x88] sm:$0xff]
        %vm2026 = vcmask 130048
        %v2028 = vsel %vm2026, %v2005, 0
        %v2031 = vsel %vm2026, %v2007, 0
        %2033 = vmatprep.subr.mxu0 0.0
        %2034 = vmatpush1.msra.mxu0 %v2023
        %2035 = vmatprep.subr.mxu0 0.0
        %2036 = vmatpush1.msra.mxu0 %v2022
        %2037 = vmatprep.subr.mxu0 0.0
        %2038 = vmatpush1.msra.mxu0 %v2021
        %2039 = vmatprep.subr.mxu0 0.0
        %2040 = vmatpush1.msra.mxu0 %v2020
        %2041 = vmatprep.subr.mxu0 0.0
        %2042 = vmatpush1.msra.mxu0 %v2019
        %2043 = vmatprep.subr.mxu0 0.0
        %2044 = vmatpush1.msra.mxu0 %v2018
        %2045 = vmatprep.subr.mxu0 0.0
        %2046 = vmatpush1.msra.mxu0 %v2017
        %2047 = vmatprep.subr.mxu0 0.0
        %2048 = vmatpush1.msra.mxu0 %v2016
        %2049 = vmatprep.subr.mxu0 0.0
        %2050 = vmatpush1.msra.mxu0 %v2015
        %2051 = vmatprep.subr.mxu0 0.0
        %2052 = vmatpush1.msra.mxu0 %v2014
        %2053 = vmatprep.subr.mxu0 0.0
        %2054 = vmatpush1.msra.mxu0 %v2013
        %2055 = vmatprep.subr.mxu0 0.0
        %2056 = vmatpush1.msra.mxu0 %v2012
        %2057 = vmatprep.subr.mxu0 0.0
        %2058 = vmatpush1.msra.mxu0 %v2011
        %2059 = vmatprep.subr.mxu0 0.0
        %2060 = vmatpush1.msra.mxu0 %v2010
        %2061 = vmatprep.subr.mxu0 0.0
        %2062 = vmatpush1.msra.mxu0 %v2009
        %2063 = vmatprep.subr.mxu0 0.0
        %2064 = vmatpush1.msra.mxu0 %v2008
        %2065 = vmatprep.subr.mxu0 0.0
        %2066 = vmatpush2.msra.mxu0 0.0
        %2067 = vmatprep.subr.mxu0 0.0
        %2068 = vmatpush2.msra.mxu0 0.0
        %2069 = vmatprep.subr.mxu0 0.0
        %2070 = vmatpush2.msra.mxu0 0.0
        %2071 = vmatprep.subr.mxu0 0.0
        %2072 = vmatpush2.msra.mxu0 0.0
        %2073 = vmatprep.subr.mxu0 0.0
        %2074 = vmatpush2.msra.mxu0 0.0
        %2075 = vmatprep.subr.mxu0 0.0
        %2076 = vmatpush2.msra.mxu0 0.0
        %2077 = vmatprep.subr.mxu0 0.0
        %2078 = vmatpush2.msra.mxu0 0.0
        %2079 = vmatprep.subr.mxu0 0.0
        %2080 = vmatpush2.msra.mxu0 0.0
        %2081 = vmatprep.subr.mxu0 0.0
        %2082 = vmatpush2.msra.mxu0 0.0
        %2083 = vmatprep.subr.mxu0 0.0
        %2084 = vmatpush2.msra.mxu0 0.0
        %2085 = vmatprep.subr.mxu0 0.0
        %2086 = vmatpush2.msra.mxu0 0.0
        %2087 = vmatprep.subr.mxu0 0.0
        %2088 = vmatpush2.msra.mxu0 0.0
        %2089 = vmatprep.subr.mxu0 0.0
        %2090 = vmatpush2.msra.mxu0 0.0
        %2091 = vmatprep.subr.mxu0 0.0
        %2092 = vmatpush2.msra.mxu0 0.0
        %2093 = vmatprep.subr.mxu0 0.0
        %2094 = vmatpush2.msra.mxu0 %v2025
        %2095 = vmatprep.subr.mxu0 0.0
        %2096 = vmatpush2.msra.mxu0 %v2024
        %2097 = vmatprep.mubr.f32.mxu0 %v2028
        %2098 = vmatmul.mubr.f32.gmra.mxu0 %v2004
        %v2099 = vpop.f32.mrf.mxu0
        %v2100 = vadd.f32 0.0, %v2099
        %v2101 = vpop.f32.mrf.mxu0
        %2102 = vmatprep.mubr.f32.mxu0 %v2031
        %2103 = vmatmul.mubr.f32.gmra.mxu0 %v2006
        %v2104 = vpop.f32.mrf.mxu0
        %v2105 = vadd.f32 0.0, %v2104
        %v2106 = vpop.f32.mrf.mxu0
        %2107 = vdwg.mxu0
        %v2110 = vrot.slane %v2100, 1
        %v2111 = vrot.slane %v2105, 1
        %v2112 = vsel %vm517, %v2110, %v2111
        %v2115 = vmax.f32 %v2100, %v2112
        %v2116 = vmax.f32 %v2105, %v2111
        %v2117 = vld [vmem:[%s8] sm:$0x1f]
        %vm2118 = vcmask 72704
        %v2120 = vsel %vm2118, %v2117, 0
        %vm2122 = vcmask 1040384
        %v2124 = vsel %vm2122, %v2116, 0
        %2126 = vmatprep.subr.mxu0 0.0
        %2127 = vmatpush1.msra.mxu0 0.0
        %2128 = vmatprep.subr.mxu0 0.0
        %2129 = vmatpush1.msra.mxu0 0.0
        %2130 = vmatprep.subr.mxu0 0.0
        %2131 = vmatpush1.msra.mxu0 0.0
        %2132 = vmatprep.subr.mxu0 0.0
        %2133 = vmatpush1.msra.mxu0 0.0
        %2134 = vmatprep.subr.mxu0 0.0
        %2135 = vmatpush1.msra.mxu0 0.0
        %2136 = vmatprep.subr.mxu0 0.0
        %2137 = vmatpush1.msra.mxu0 0.0
        %2138 = vmatprep.subr.mxu0 0.0
        %2139 = vmatpush1.msra.mxu0 0.0
        %2140 = vmatprep.subr.mxu0 0.0
        %2141 = vmatpush1.msra.mxu0 0.0
        %2142 = vmatprep.subr.mxu0 0.0
        %2143 = vmatpush1.msra.mxu0 0.0
        %2144 = vmatprep.subr.mxu0 0.0
        %2145 = vmatpush1.msra.mxu0 0.0
        %2146 = vmatprep.subr.mxu0 0.0
        %2147 = vmatpush1.msra.mxu0 0.0
        %2148 = vmatprep.subr.mxu0 0.0
        %2149 = vmatpush1.msra.mxu0 0.0
        %2150 = vmatprep.subr.mxu0 0.0
        %2151 = vmatpush1.msra.mxu0 0.0
        %2152 = vmatprep.subr.mxu0 0.0
        %2153 = vmatpush1.msra.mxu0 0.0
        %2154 = vmatprep.subr.mxu0 0.0
        %2155 = vmatpush1.msra.mxu0 %v2124
        %2156 = vmatprep.subr.mxu0 0.0
        %2157 = vmatpush1.msra.mxu0 %v2115
        %2158 = vmatprep.subr.mxu0 0.0
        %2159 = vmatpush2.msra.mxu0 0.0
        %2160 = vmatprep.subr.mxu0 0.0
        %2161 = vmatpush2.msra.mxu0 0.0
        %2162 = vmatprep.subr.mxu0 0.0
        %2163 = vmatpush2.msra.mxu0 0.0
        %2164 = vmatprep.subr.mxu0 0.0
        %2165 = vmatpush2.msra.mxu0 0.0
        %2166 = vmatprep.subr.mxu0 0.0
        %2167 = vmatpush2.msra.mxu0 0.0
        %2168 = vmatprep.subr.mxu0 0.0
        %2169 = vmatpush2.msra.mxu0 0.0
        %2170 = vmatprep.subr.mxu0 0.0
        %2171 = vmatpush2.msra.mxu0 0.0
        %2172 = vmatprep.subr.mxu0 0.0
        %2173 = vmatpush2.msra.mxu0 0.0
        %2174 = vmatprep.subr.mxu0 0.0
        %2175 = vmatpush2.msra.mxu0 0.0
        %2176 = vmatprep.subr.mxu0 0.0
        %2177 = vmatpush2.msra.mxu0 0.0
        %2178 = vmatprep.subr.mxu0 0.0
        %2179 = vmatpush2.msra.mxu0 0.0
        %2180 = vmatprep.subr.mxu0 0.0
        %2181 = vmatpush2.msra.mxu0 0.0
        %2182 = vmatprep.subr.mxu0 0.0
        %2183 = vmatpush2.msra.mxu0 0.0
        %2184 = vmatprep.subr.mxu0 0.0
        %2185 = vmatpush2.msra.mxu0 0.0
        %2186 = vmatprep.subr.mxu0 0.0
        %2187 = vmatpush2.msra.mxu0 0.0
        %2188 = vmatprep.subr.mxu0 0.0
        %2189 = vmatpush2.msra.mxu0 0.0
        %2190 = vmatprep.mubr.f32.mxu0 0.0
        %2191 = vmatmul.mubr.f32.gmra.mxu0 %v2120
        %v2192 = vpop.f32.mrf.mxu0
        %v2193 = vadd.f32 0.0, %v2192
        %v2194 = vpop.f32.mrf.mxu0
        %2195 = vdwg.mxu0
        %v2196 = vld [vmem:[%s9] sm:$0xff]
        %v2197 = vld [vmem:[%s9 + $0x8] sm:$0xff]
        %v2198 = vld [vmem:[%s9 + $0x10] sm:$0xff]
        %v2199 = vld [vmem:[%s9 + $0x18] sm:$0xff]
        %v2200 = vld [vmem:[%s9 + $0x20] sm:$0xff]
        %v2201 = vld [vmem:[%s9 + $0x28] sm:$0xff]
        %v2202 = vld [vmem:[%s9 + $0x30] sm:$0xff]
        %v2203 = vld [vmem:[%s9 + $0x38] sm:$0xff]
        %v2204 = vld [vmem:[%s9 + $0x40] sm:$0xff]
        %v2205 = vld [vmem:[%s9 + $0x48] sm:$0xff]
        %s2206 = scalar_lea.vmem %s9, 80
        %v2207 = vld [vmem:[%s2206] sm:$0xff]
        %v2208 = vld [vmem:[%s2206 + $0x8] sm:$0xff]
        %v2209 = vld [vmem:[%s2206 + $0x10] sm:$0xff]
        %v2210 = vld [vmem:[%s2206 + $0x18] sm:$0xff]
        %v2211 = vld [vmem:[%s2206 + $0x20] sm:$0xff]
        %v2212 = vld [vmem:[%s2206 + $0x28] sm:$0xff]
        %v2213 = vld [vmem:[%s2206 + $0x30] sm:$0xff]
        %v2214 = vld [vmem:[%s2206 + $0x38] sm:$0xff]
        %v2215 = vld [vmem:[%s2206 + $0x40] sm:$0xff]
        %v2216 = vld [vmem:[%s2206 + $0x48] sm:$0xff]
        %v2218 = vrot.slane %v2193, 1
        %vm2219 = vcmask 654336
        %v2220 = vsel %vm2219, %v2218, 0
        %2222 = vmatprep.subr.mxu0 0.0
        %2223 = vmatpush1.msra.mxu0 0.0
        %2224 = vmatprep.subr.mxu0 0.0
        %2225 = vmatpush1.msra.mxu0 0.0
        %2226 = vmatprep.subr.mxu0 0.0
        %2227 = vmatpush1.msra.mxu0 0.0
        %2228 = vmatprep.subr.mxu0 0.0
        %2229 = vmatpush1.msra.mxu0 0.0
        %2230 = vmatprep.subr.mxu0 0.0
        %2231 = vmatpush1.msra.mxu0 0.0
        %2232 = vmatprep.subr.mxu0 0.0
        %2233 = vmatpush1.msra.mxu0 0.0
        %2234 = vmatprep.subr.mxu0 0.0
        %2235 = vmatpush1.msra.mxu0 %v2216
        %2236 = vmatprep.subr.mxu0 0.0
        %2237 = vmatpush1.msra.mxu0 %v2215
        %2238 = vmatprep.subr.mxu0 0.0
        %2239 = vmatpush1.msra.mxu0 %v2214
        %2240 = vmatprep.subr.mxu0 0.0
        %2241 = vmatpush1.msra.mxu0 %v2213
        %2242 = vmatprep.subr.mxu0 0.0
        %2243 = vmatpush1.msra.mxu0 %v2212
        %2244 = vmatprep.subr.mxu0 0.0
        %2245 = vmatpush1.msra.mxu0 %v2211
        %2246 = vmatprep.subr.mxu0 0.0
        %2247 = vmatpush1.msra.mxu0 %v2210
        %2248 = vmatprep.subr.mxu0 0.0
        %2249 = vmatpush1.msra.mxu0 %v2209
        %2250 = vmatprep.subr.mxu0 0.0
        %2251 = vmatpush1.msra.mxu0 %v2208
        %2252 = vmatprep.subr.mxu0 0.0
        %2253 = vmatpush1.msra.mxu0 %v2207
        %2254 = vmatprep.subr.mxu0 0.0
        %2255 = vmatpush2.msra.mxu0 0.0
        %2256 = vmatprep.subr.mxu0 0.0
        %2257 = vmatpush2.msra.mxu0 0.0
        %2258 = vmatprep.subr.mxu0 0.0
        %2259 = vmatpush2.msra.mxu0 0.0
        %2260 = vmatprep.subr.mxu0 0.0
        %2261 = vmatpush2.msra.mxu0 0.0
        %2262 = vmatprep.subr.mxu0 0.0
        %2263 = vmatpush2.msra.mxu0 0.0
        %2264 = vmatprep.subr.mxu0 0.0
        %2265 = vmatpush2.msra.mxu0 0.0
        %2266 = vmatprep.subr.mxu0 0.0
        %2267 = vmatpush2.msra.mxu0 0.0
        %2268 = vmatprep.subr.mxu0 0.0
        %2269 = vmatpush2.msra.mxu0 0.0
        %2270 = vmatprep.subr.mxu0 0.0
        %2271 = vmatpush2.msra.mxu0 0.0
        %2272 = vmatprep.subr.mxu0 0.0
        %2273 = vmatpush2.msra.mxu0 0.0
        %2274 = vmatprep.subr.mxu0 0.0
        %2275 = vmatpush2.msra.mxu0 0.0
        %2276 = vmatprep.subr.mxu0 0.0
        %2277 = vmatpush2.msra.mxu0 0.0
        %2278 = vmatprep.subr.mxu0 0.0
        %2279 = vmatpush2.msra.mxu0 0.0
        %2280 = vmatprep.subr.mxu0 0.0
        %2281 = vmatpush2.msra.mxu0 0.0
        %2282 = vmatprep.subr.mxu0 0.0
        %2283 = vmatpush2.msra.mxu0 0.0
        %2284 = vmatprep.subr.mxu0 0.0
        %2285 = vmatpush2.msra.mxu0 0.0
        %2286 = vmatprep.mubr.f32.mxu0 0.0
        %2287 = vmatmul.mubr.f32.gmra.mxu0 %v2220
        %v2288 = vpop.f32.mrf.mxu0
        %v2289 = vadd.f32 0.0, %v2288
        %v2290 = vpop.f32.mrf.mxu0
        %2291 = vdwg.mxu0
        %v2292 = vsel %vm2219, %v2193, 0
        %2294 = vmatprep.subr.mxu0 0.0
        %2295 = vmatpush1.msra.mxu0 0.0
        %2296 = vmatprep.subr.mxu0 0.0
        %2297 = vmatpush1.msra.mxu0 0.0
        %2298 = vmatprep.subr.mxu0 0.0
        %2299 = vmatpush1.msra.mxu0 0.0
        %2300 = vmatprep.subr.mxu0 0.0
        %2301 = vmatpush1.msra.mxu0 0.0
        %2302 = vmatprep.subr.mxu0 0.0
        %2303 = vmatpush1.msra.mxu0 0.0
        %2304 = vmatprep.subr.mxu0 0.0
        %2305 = vmatpush1.msra.mxu0 0.0
        %2306 = vmatprep.subr.mxu0 0.0
        %2307 = vmatpush1.msra.mxu0 %v2205
        %2308 = vmatprep.subr.mxu0 0.0
        %2309 = vmatpush1.msra.mxu0 %v2204
        %2310 = vmatprep.subr.mxu0 0.0
        %2311 = vmatpush1.msra.mxu0 %v2203
        %2312 = vmatprep.subr.mxu0 0.0
        %2313 = vmatpush1.msra.mxu0 %v2202
        %2314 = vmatprep.subr.mxu0 0.0
        %2315 = vmatpush1.msra.mxu0 %v2201
        %2316 = vmatprep.subr.mxu0 0.0
        %2317 = vmatpush1.msra.mxu0 %v2200
        %2318 = vmatprep.subr.mxu0 0.0
        %2319 = vmatpush1.msra.mxu0 %v2199
        %2320 = vmatprep.subr.mxu0 0.0
        %2321 = vmatpush1.msra.mxu0 %v2198
        %2322 = vmatprep.subr.mxu0 0.0
        %2323 = vmatpush1.msra.mxu0 %v2197
        %2324 = vmatprep.subr.mxu0 0.0
        %2325 = vmatpush1.msra.mxu0 %v2196
        %2326 = vmatprep.subr.mxu0 0.0
        %2327 = vmatpush2.msra.mxu0 0.0
        %2328 = vmatprep.subr.mxu0 0.0
        %2329 = vmatpush2.msra.mxu0 0.0
        %2330 = vmatprep.subr.mxu0 0.0
        %2331 = vmatpush2.msra.mxu0 0.0
        %2332 = vmatprep.subr.mxu0 0.0
        %2333 = vmatpush2.msra.mxu0 0.0
        %2334 = vmatprep.subr.mxu0 0.0
        %2335 = vmatpush2.msra.mxu0 0.0
        %2336 = vmatprep.subr.mxu0 0.0
        %2337 = vmatpush2.msra.mxu0 0.0
        %2338 = vmatprep.subr.mxu0 0.0
        %2339 = vmatpush2.msra.mxu0 0.0
        %2340 = vmatprep.subr.mxu0 0.0
        %2341 = vmatpush2.msra.mxu0 0.0
        %2342 = vmatprep.subr.mxu0 0.0
        %2343 = vmatpush2.msra.mxu0 0.0
        %2344 = vmatprep.subr.mxu0 0.0
        %2345 = vmatpush2.msra.mxu0 0.0
        %2346 = vmatprep.subr.mxu0 0.0
        %2347 = vmatpush2.msra.mxu0 0.0
        %2348 = vmatprep.subr.mxu0 0.0
        %2349 = vmatpush2.msra.mxu0 0.0
        %2350 = vmatprep.subr.mxu0 0.0
        %2351 = vmatpush2.msra.mxu0 0.0
        %2352 = vmatprep.subr.mxu0 0.0
        %2353 = vmatpush2.msra.mxu0 0.0
        %2354 = vmatprep.subr.mxu0 0.0
        %2355 = vmatpush2.msra.mxu0 0.0
        %2356 = vmatprep.subr.mxu0 0.0
        %2357 = vmatpush2.msra.mxu0 0.0
        %2358 = vmatprep.mubr.f32.mxu0 0.0
        %2359 = vmatmul.mubr.f32.gmra.mxu0 %v2292
        %v2360 = vpop.f32.mrf.mxu0
        %v2361 = vadd.f32 %v2289, %v2360
        %v2362 = vpop.f32.mrf.mxu0
        %2363 = vdwg.mxu0
        %s2364 = scalar_lea.vmem %s9, 160
        %v2365 = vld [vmem:[%s2364] sm:$0xff]
        %v2366 = vld [vmem:[%s2364 + $0x8] sm:$0xff]
        %v2367 = vld [vmem:[%s2364 + $0x10] sm:$0xff]
        %v2368 = vld [vmem:[%s2364 + $0x18] sm:$0xff]
        %v2369 = vld [vmem:[%s2364 + $0x20] sm:$0xff]
        %v2370 = vld [vmem:[%s2364 + $0x28] sm:$0xff]
        %v2371 = vld [vmem:[%s2364 + $0x30] sm:$0xff]
        %v2372 = vld [vmem:[%s2364 + $0x38] sm:$0xff]
        %v2373 = vld [vmem:[%s2364 + $0x40] sm:$0xff]
        %v2374 = vld [vmem:[%s2364 + $0x48] sm:$0xff]
        %v2375 = vrot.slane %v2193, 2
        %v2376 = vsel %vm2219, %v2375, 0
        %2378 = vmatprep.subr.mxu0 0.0
        %2379 = vmatpush1.msra.mxu0 0.0
        %2380 = vmatprep.subr.mxu0 0.0
        %2381 = vmatpush1.msra.mxu0 0.0
        %2382 = vmatprep.subr.mxu0 0.0
        %2383 = vmatpush1.msra.mxu0 0.0
        %2384 = vmatprep.subr.mxu0 0.0
        %2385 = vmatpush1.msra.mxu0 0.0
        %2386 = vmatprep.subr.mxu0 0.0
        %2387 = vmatpush1.msra.mxu0 0.0
        %2388 = vmatprep.subr.mxu0 0.0
        %2389 = vmatpush1.msra.mxu0 0.0
        %2390 = vmatprep.subr.mxu0 0.0
        %2391 = vmatpush1.msra.mxu0 %v2374
        %2392 = vmatprep.subr.mxu0 0.0
        %2393 = vmatpush1.msra.mxu0 %v2373
        %2394 = vmatprep.subr.mxu0 0.0
        %2395 = vmatpush1.msra.mxu0 %v2372
        %2396 = vmatprep.subr.mxu0 0.0
        %2397 = vmatpush1.msra.mxu0 %v2371
        %2398 = vmatprep.subr.mxu0 0.0
        %2399 = vmatpush1.msra.mxu0 %v2370
        %2400 = vmatprep.subr.mxu0 0.0
        %2401 = vmatpush1.msra.mxu0 %v2369
        %2402 = vmatprep.subr.mxu0 0.0
        %2403 = vmatpush1.msra.mxu0 %v2368
        %2404 = vmatprep.subr.mxu0 0.0
        %2405 = vmatpush1.msra.mxu0 %v2367
        %2406 = vmatprep.subr.mxu0 0.0
        %2407 = vmatpush1.msra.mxu0 %v2366
        %2408 = vmatprep.subr.mxu0 0.0
        %2409 = vmatpush1.msra.mxu0 %v2365
        %2410 = vmatprep.subr.mxu0 0.0
        %2411 = vmatpush2.msra.mxu0 0.0
        %2412 = vmatprep.subr.mxu0 0.0
        %2413 = vmatpush2.msra.mxu0 0.0
        %2414 = vmatprep.subr.mxu0 0.0
        %2415 = vmatpush2.msra.mxu0 0.0
        %2416 = vmatprep.subr.mxu0 0.0
        %2417 = vmatpush2.msra.mxu0 0.0
        %2418 = vmatprep.subr.mxu0 0.0
        %2419 = vmatpush2.msra.mxu0 0.0
        %2420 = vmatprep.subr.mxu0 0.0
        %2421 = vmatpush2.msra.mxu0 0.0
        %2422 = vmatprep.subr.mxu0 0.0
        %2423 = vmatpush2.msra.mxu0 0.0
        %2424 = vmatprep.subr.mxu0 0.0
        %2425 = vmatpush2.msra.mxu0 0.0
        %2426 = vmatprep.subr.mxu0 0.0
        %2427 = vmatpush2.msra.mxu0 0.0
        %2428 = vmatprep.subr.mxu0 0.0
        %2429 = vmatpush2.msra.mxu0 0.0
        %2430 = vmatprep.subr.mxu0 0.0
        %2431 = vmatpush2.msra.mxu0 0.0
        %2432 = vmatprep.subr.mxu0 0.0
        %2433 = vmatpush2.msra.mxu0 0.0
        %2434 = vmatprep.subr.mxu0 0.0
        %2435 = vmatpush2.msra.mxu0 0.0
        %2436 = vmatprep.subr.mxu0 0.0
        %2437 = vmatpush2.msra.mxu0 0.0
        %2438 = vmatprep.subr.mxu0 0.0
        %2439 = vmatpush2.msra.mxu0 0.0
        %2440 = vmatprep.subr.mxu0 0.0
        %2441 = vmatpush2.msra.mxu0 0.0
        %2442 = vmatprep.mubr.f32.mxu0 0.0
        %2443 = vmatmul.mubr.f32.gmra.mxu0 %v2376
        %v2444 = vpop.f32.mrf.mxu0
        %v2445 = vadd.f32 0.0, %v2444
        %v2446 = vpop.f32.mrf.mxu0
        %2447 = vdwg.mxu0
        %v2448 = vadd.f32 %v2361, %v2445
        %s2449 = scalar_lea.vmem %s9, 240
        %v2450 = vld [vmem:[%s2449] sm:$0xff]
        %v2451 = vld [vmem:[%s2449 + $0x8] sm:$0xff]
        %v2452 = vld [vmem:[%s2449 + $0x10] sm:$0xff]
        %v2453 = vld [vmem:[%s2449 + $0x18] sm:$0xff]
        %v2454 = vld [vmem:[%s2449 + $0x20] sm:$0xff]
        %v2455 = vld [vmem:[%s2449 + $0x28] sm:$0xff]
        %v2456 = vld [vmem:[%s2449 + $0x30] sm:$0xff]
        %v2457 = vld [vmem:[%s2449 + $0x38] sm:$0xff]
        %v2458 = vld [vmem:[%s2449 + $0x40] sm:$0xff]
        %v2459 = vld [vmem:[%s2449 + $0x48] sm:$0xff]
        %v2460 = vrot.slane %v2193, 3
        %v2461 = vsel %vm2219, %v2460, 0
        %2463 = vmatprep.subr.mxu0 0.0
        %2464 = vmatpush1.msra.mxu0 0.0
        %2465 = vmatprep.subr.mxu0 0.0
        %2466 = vmatpush1.msra.mxu0 0.0
        %2467 = vmatprep.subr.mxu0 0.0
        %2468 = vmatpush1.msra.mxu0 0.0
        %2469 = vmatprep.subr.mxu0 0.0
        %2470 = vmatpush1.msra.mxu0 0.0
        %2471 = vmatprep.subr.mxu0 0.0
        %2472 = vmatpush1.msra.mxu0 0.0
        %2473 = vmatprep.subr.mxu0 0.0
        %2474 = vmatpush1.msra.mxu0 0.0
        %2475 = vmatprep.subr.mxu0 0.0
        %2476 = vmatpush1.msra.mxu0 %v2459
        %2477 = vmatprep.subr.mxu0 0.0
        %2478 = vmatpush1.msra.mxu0 %v2458
        %2479 = vmatprep.subr.mxu0 0.0
        %2480 = vmatpush1.msra.mxu0 %v2457
        %2481 = vmatprep.subr.mxu0 0.0
        %2482 = vmatpush1.msra.mxu0 %v2456
        %2483 = vmatprep.subr.mxu0 0.0
        %2484 = vmatpush1.msra.mxu0 %v2455
        %2485 = vmatprep.subr.mxu0 0.0
        %2486 = vmatpush1.msra.mxu0 %v2454
        %2487 = vmatprep.subr.mxu0 0.0
        %2488 = vmatpush1.msra.mxu0 %v2453
        %2489 = vmatprep.subr.mxu0 0.0
        %2490 = vmatpush1.msra.mxu0 %v2452
        %2491 = vmatprep.subr.mxu0 0.0
        %2492 = vmatpush1.msra.mxu0 %v2451
        %2493 = vmatprep.subr.mxu0 0.0
        %2494 = vmatpush1.msra.mxu0 %v2450
        %2495 = vmatprep.subr.mxu0 0.0
        %2496 = vmatpush2.msra.mxu0 0.0
        %2497 = vmatprep.subr.mxu0 0.0
        %2498 = vmatpush2.msra.mxu0 0.0
        %2499 = vmatprep.subr.mxu0 0.0
        %2500 = vmatpush2.msra.mxu0 0.0
        %2501 = vmatprep.subr.mxu0 0.0
        %2502 = vmatpush2.msra.mxu0 0.0
        %2503 = vmatprep.subr.mxu0 0.0
        %2504 = vmatpush2.msra.mxu0 0.0
        %2505 = vmatprep.subr.mxu0 0.0
        %2506 = vmatpush2.msra.mxu0 0.0
        %2507 = vmatprep.subr.mxu0 0.0
        %2508 = vmatpush2.msra.mxu0 0.0
        %2509 = vmatprep.subr.mxu0 0.0
        %2510 = vmatpush2.msra.mxu0 0.0
        %2511 = vmatprep.subr.mxu0 0.0
        %2512 = vmatpush2.msra.mxu0 0.0
        %2513 = vmatprep.subr.mxu0 0.0
        %2514 = vmatpush2.msra.mxu0 0.0
        %2515 = vmatprep.subr.mxu0 0.0
        %2516 = vmatpush2.msra.mxu0 0.0
        %2517 = vmatprep.subr.mxu0 0.0
        %2518 = vmatpush2.msra.mxu0 0.0
        %2519 = vmatprep.subr.mxu0 0.0
        %2520 = vmatpush2.msra.mxu0 0.0
        %2521 = vmatprep.subr.mxu0 0.0
        %2522 = vmatpush2.msra.mxu0 0.0
        %2523 = vmatprep.subr.mxu0 0.0
        %2524 = vmatpush2.msra.mxu0 0.0
        %2525 = vmatprep.subr.mxu0 0.0
        %2526 = vmatpush2.msra.mxu0 0.0
        %2527 = vmatprep.mubr.f32.mxu0 0.0
        %2528 = vmatmul.mubr.f32.gmra.mxu0 %v2461
        %v2529 = vpop.f32.mrf.mxu0
        %v2530 = vadd.f32 0.0, %v2529
        %v2531 = vpop.f32.mrf.mxu0
        %2532 = vdwg.mxu0
        %v2533 = vadd.f32 %v2448, %v2530
        %s2534 = scalar_lea.vmem %s9, 320
        %v2535 = vld [vmem:[%s2534] sm:$0xff]
        %v2536 = vld [vmem:[%s2534 + $0x8] sm:$0xff]
        %v2537 = vld [vmem:[%s2534 + $0x10] sm:$0xff]
        %v2538 = vld [vmem:[%s2534 + $0x18] sm:$0xff]
        %v2539 = vld [vmem:[%s2534 + $0x20] sm:$0xff]
        %v2540 = vld [vmem:[%s2534 + $0x28] sm:$0xff]
        %v2541 = vld [vmem:[%s2534 + $0x30] sm:$0xff]
        %v2542 = vld [vmem:[%s2534 + $0x38] sm:$0xff]
        %v2543 = vld [vmem:[%s2534 + $0x40] sm:$0xff]
        %v2544 = vld [vmem:[%s2534 + $0x48] sm:$0xff]
        %v2545 = vrot.slane %v2193, 4
        %v2546 = vsel %vm2219, %v2545, 0
        %2548 = vmatprep.subr.mxu0 0.0
        %2549 = vmatpush1.msra.mxu0 0.0
        %2550 = vmatprep.subr.mxu0 0.0
        %2551 = vmatpush1.msra.mxu0 0.0
        %2552 = vmatprep.subr.mxu0 0.0
        %2553 = vmatpush1.msra.mxu0 0.0
        %2554 = vmatprep.subr.mxu0 0.0
        %2555 = vmatpush1.msra.mxu0 0.0
        %2556 = vmatprep.subr.mxu0 0.0
        %2557 = vmatpush1.msra.mxu0 0.0
        %2558 = vmatprep.subr.mxu0 0.0
        %2559 = vmatpush1.msra.mxu0 0.0
        %2560 = vmatprep.subr.mxu0 0.0
        %2561 = vmatpush1.msra.mxu0 %v2544
        %2562 = vmatprep.subr.mxu0 0.0
        %2563 = vmatpush1.msra.mxu0 %v2543
        %2564 = vmatprep.subr.mxu0 0.0
        %2565 = vmatpush1.msra.mxu0 %v2542
        %2566 = vmatprep.subr.mxu0 0.0
        %2567 = vmatpush1.msra.mxu0 %v2541
        %2568 = vmatprep.subr.mxu0 0.0
        %2569 = vmatpush1.msra.mxu0 %v2540
        %2570 = vmatprep.subr.mxu0 0.0
        %2571 = vmatpush1.msra.mxu0 %v2539
        %2572 = vmatprep.subr.mxu0 0.0
        %2573 = vmatpush1.msra.mxu0 %v2538
        %2574 = vmatprep.subr.mxu0 0.0
        %2575 = vmatpush1.msra.mxu0 %v2537
        %2576 = vmatprep.subr.mxu0 0.0
        %2577 = vmatpush1.msra.mxu0 %v2536
        %2578 = vmatprep.subr.mxu0 0.0
        %2579 = vmatpush1.msra.mxu0 %v2535
        %2580 = vmatprep.subr.mxu0 0.0
        %2581 = vmatpush2.msra.mxu0 0.0
        %2582 = vmatprep.subr.mxu0 0.0
        %2583 = vmatpush2.msra.mxu0 0.0
        %2584 = vmatprep.subr.mxu0 0.0
        %2585 = vmatpush2.msra.mxu0 0.0
        %2586 = vmatprep.subr.mxu0 0.0
        %2587 = vmatpush2.msra.mxu0 0.0
        %2588 = vmatprep.subr.mxu0 0.0
        %2589 = vmatpush2.msra.mxu0 0.0
        %2590 = vmatprep.subr.mxu0 0.0
        %2591 = vmatpush2.msra.mxu0 0.0
        %2592 = vmatprep.subr.mxu0 0.0
        %2593 = vmatpush2.msra.mxu0 0.0
        %2594 = vmatprep.subr.mxu0 0.0
        %2595 = vmatpush2.msra.mxu0 0.0
        %2596 = vmatprep.subr.mxu0 0.0
        %2597 = vmatpush2.msra.mxu0 0.0
        %2598 = vmatprep.subr.mxu0 0.0
        %2599 = vmatpush2.msra.mxu0 0.0
        %2600 = vmatprep.subr.mxu0 0.0
        %2601 = vmatpush2.msra.mxu0 0.0
        %2602 = vmatprep.subr.mxu0 0.0
        %2603 = vmatpush2.msra.mxu0 0.0
        %2604 = vmatprep.subr.mxu0 0.0
        %2605 = vmatpush2.msra.mxu0 0.0
        %2606 = vmatprep.subr.mxu0 0.0
        %2607 = vmatpush2.msra.mxu0 0.0
        %2608 = vmatprep.subr.mxu0 0.0
        %2609 = vmatpush2.msra.mxu0 0.0
        %2610 = vmatprep.subr.mxu0 0.0
        %2611 = vmatpush2.msra.mxu0 0.0
        %2612 = vmatprep.mubr.f32.mxu0 0.0
        %2613 = vmatmul.mubr.f32.gmra.mxu0 %v2546
        %v2614 = vpop.f32.mrf.mxu0
        %v2615 = vadd.f32 0.0, %v2614
        %v2616 = vpop.f32.mrf.mxu0
        %2617 = vdwg.mxu0
        %v2618 = vadd.f32 %v2533, %v2615
        %v2619 = vld [vmem:[%s10] sm:$0x1]
        %v2620 = vadd.f32 %v2618, %v2619
        %v2621 = vmax.f32 %v2620, 0.0
        %v2622 = vld [vmem:[%s11] sm:$0xff]
        %v2623 = vld [vmem:[%s11 + $0x8] sm:$0xff]
        %v2624 = vld [vmem:[%s11 + $0x10] sm:$0xff]
        %v2625 = vld [vmem:[%s11 + $0x18] sm:$0xff]
        %v2626 = vld [vmem:[%s11 + $0x20] sm:$0xff]
        %v2627 = vld [vmem:[%s11 + $0x28] sm:$0xff]
        %v2628 = vld [vmem:[%s11 + $0x30] sm:$0xff]
        %v2629 = vld [vmem:[%s11 + $0x38] sm:$0xff]
        %v2630 = vld [vmem:[%s11 + $0x40] sm:$0xff]
        %v2631 = vld [vmem:[%s11 + $0x48] sm:$0xff]
        %v2632 = vld [vmem:[%s11 + $0x50] sm:$0xff]
        %v2633 = vld [vmem:[%s11 + $0x58] sm:$0xff]
        %v2634 = vld [vmem:[%s11 + $0x60] sm:$0xff]
        %v2635 = vld [vmem:[%s11 + $0x68] sm:$0xff]
        %v2636 = vld [vmem:[%s11 + $0x70] sm:$0xff]
        %v2637 = vld [vmem:[%s12] sm:$0x1]
        %vm2638 = vcmask 982016
        %v2640 = vsel %vm2638, %v2621, 0
        %2642 = vmatprep.subr.mxu0 0.0
        %2643 = vmatpush1.msra.mxu0 0.0
        %2644 = vmatprep.subr.mxu0 0.0
        %2645 = vmatpush1.msra.mxu0 %v2636
        %2646 = vmatprep.subr.mxu0 0.0
        %2647 = vmatpush1.msra.mxu0 %v2635
        %2648 = vmatprep.subr.mxu0 0.0
        %2649 = vmatpush1.msra.mxu0 %v2634
        %2650 = vmatprep.subr.mxu0 0.0
        %2651 = vmatpush1.msra.mxu0 %v2633
        %2652 = vmatprep.subr.mxu0 0.0
        %2653 = vmatpush1.msra.mxu0 %v2632
        %2654 = vmatprep.subr.mxu0 0.0
        %2655 = vmatpush1.msra.mxu0 %v2631
        %2656 = vmatprep.subr.mxu0 0.0
        %2657 = vmatpush1.msra.mxu0 %v2630
        %2658 = vmatprep.subr.mxu0 0.0
        %2659 = vmatpush1.msra.mxu0 %v2629
        %2660 = vmatprep.subr.mxu0 0.0
        %2661 = vmatpush1.msra.mxu0 %v2628
        %2662 = vmatprep.subr.mxu0 0.0
        %2663 = vmatpush1.msra.mxu0 %v2627
        %2664 = vmatprep.subr.mxu0 0.0
        %2665 = vmatpush1.msra.mxu0 %v2626
        %2666 = vmatprep.subr.mxu0 0.0
        %2667 = vmatpush1.msra.mxu0 %v2625
        %2668 = vmatprep.subr.mxu0 0.0
        %2669 = vmatpush1.msra.mxu0 %v2624
        %2670 = vmatprep.subr.mxu0 0.0
        %2671 = vmatpush1.msra.mxu0 %v2623
        %2672 = vmatprep.subr.mxu0 0.0
        %2673 = vmatpush1.msra.mxu0 %v2622
        %2674 = vmatprep.subr.mxu0 0.0
        %2675 = vmatpush2.msra.mxu0 0.0
        %2676 = vmatprep.subr.mxu0 0.0
        %2677 = vmatpush2.msra.mxu0 0.0
        %2678 = vmatprep.subr.mxu0 0.0
        %2679 = vmatpush2.msra.mxu0 0.0
        %2680 = vmatprep.subr.mxu0 0.0
        %2681 = vmatpush2.msra.mxu0 0.0
        %2682 = vmatprep.subr.mxu0 0.0
        %2683 = vmatpush2.msra.mxu0 0.0
        %2684 = vmatprep.subr.mxu0 0.0
        %2685 = vmatpush2.msra.mxu0 0.0
        %2686 = vmatprep.subr.mxu0 0.0
        %2687 = vmatpush2.msra.mxu0 0.0
        %2688 = vmatprep.subr.mxu0 0.0
        %2689 = vmatpush2.msra.mxu0 0.0
        %2690 = vmatprep.subr.mxu0 0.0
        %2691 = vmatpush2.msra.mxu0 0.0
        %2692 = vmatprep.subr.mxu0 0.0
        %2693 = vmatpush2.msra.mxu0 0.0
        %2694 = vmatprep.subr.mxu0 0.0
        %2695 = vmatpush2.msra.mxu0 0.0
        %2696 = vmatprep.subr.mxu0 0.0
        %2697 = vmatpush2.msra.mxu0 0.0
        %2698 = vmatprep.subr.mxu0 0.0
        %2699 = vmatpush2.msra.mxu0 0.0
        %2700 = vmatprep.subr.mxu0 0.0
        %2701 = vmatpush2.msra.mxu0 0.0
        %2702 = vmatprep.subr.mxu0 0.0
        %2703 = vmatpush2.msra.mxu0 0.0
        %2704 = vmatprep.subr.mxu0 0.0
        %2705 = vmatpush2.msra.mxu0 0.0
        %2706 = vmatprep.mubr.f32.mxu0 0.0
        %2707 = vmatmul.mubr.f32.gmra.mxu0 %v2640
        %v2708 = vpop.f32.mrf.mxu0
        %v2709 = vadd.f32 %v2637, %v2708
        %v2710 = vpop.f32.mrf.mxu0
        %2711 = vdwg.mxu0
        %v2712 = vmax.f32 %v2709, 0.0
        %v2713 = vld [vmem:[%s13] sm:$0xff]
        %v2714 = vld [vmem:[%s13 + $0x8] sm:$0xff]
        %v2715 = vld [vmem:[%s13 + $0x10] sm:$0xff]
        %v2716 = vld [vmem:[%s13 + $0x18] sm:$0xff]
        %v2717 = vld [vmem:[%s13 + $0x20] sm:$0xff]
        %v2718 = vld [vmem:[%s13 + $0x28] sm:$0xff]
        %v2719 = vld [vmem:[%s13 + $0x30] sm:$0xff]
        %v2720 = vld [vmem:[%s13 + $0x38] sm:$0xff]
        %v2721 = vld [vmem:[%s13 + $0x40] sm:$0xff]
        %v2722 = vld [vmem:[%s13 + $0x48] sm:$0xff]
        %v2723 = vld [vmem:[%s13 + $0x50] sm:$0xf]
        %v2724 = vld [vmem:[%s14] sm:$0x1]
        %v2726 = vsel %vm1439, %v2712, 0
        %v2729 = vsel %vm973, %v2723, 0
        %2731 = vmatprep.subr.mxu0 0.0
        %2732 = vmatpush1.msra.mxu0 0.0
        %2733 = vmatprep.subr.mxu0 0.0
        %2734 = vmatpush1.msra.mxu0 0.0
        %2735 = vmatprep.subr.mxu0 0.0
        %2736 = vmatpush1.msra.mxu0 0.0
        %2737 = vmatprep.subr.mxu0 0.0
        %2738 = vmatpush1.msra.mxu0 0.0
        %2739 = vmatprep.subr.mxu0 0.0
        %2740 = vmatpush1.msra.mxu0 0.0
        %2741 = vmatprep.subr.mxu0 0.0
        %2742 = vmatpush1.msra.mxu0 %v2729
        %2743 = vmatprep.subr.mxu0 0.0
        %2744 = vmatpush1.msra.mxu0 %v2722
        %2745 = vmatprep.subr.mxu0 0.0
        %2746 = vmatpush1.msra.mxu0 %v2721
        %2747 = vmatprep.subr.mxu0 0.0
        %2748 = vmatpush1.msra.mxu0 %v2720
        %2749 = vmatprep.subr.mxu0 0.0
        %2750 = vmatpush1.msra.mxu0 %v2719
        %2751 = vmatprep.subr.mxu0 0.0
        %2752 = vmatpush1.msra.mxu0 %v2718
        %2753 = vmatprep.subr.mxu0 0.0
        %2754 = vmatpush1.msra.mxu0 %v2717
        %2755 = vmatprep.subr.mxu0 0.0
        %2756 = vmatpush1.msra.mxu0 %v2716
        %2757 = vmatprep.subr.mxu0 0.0
        %2758 = vmatpush1.msra.mxu0 %v2715
        %2759 = vmatprep.subr.mxu0 0.0
        %2760 = vmatpush1.msra.mxu0 %v2714
        %2761 = vmatprep.subr.mxu0 0.0
        %2762 = vmatpush1.msra.mxu0 %v2713
        %2763 = vmatprep.subr.mxu0 0.0
        %2764 = vmatpush2.msra.mxu0 0.0
        %2765 = vmatprep.subr.mxu0 0.0
        %2766 = vmatpush2.msra.mxu0 0.0
        %2767 = vmatprep.subr.mxu0 0.0
        %2768 = vmatpush2.msra.mxu0 0.0
        %2769 = vmatprep.subr.mxu0 0.0
        %2770 = vmatpush2.msra.mxu0 0.0
        %2771 = vmatprep.subr.mxu0 0.0
        %2772 = vmatpush2.msra.mxu0 0.0
        %2773 = vmatprep.subr.mxu0 0.0
        %2774 = vmatpush2.msra.mxu0 0.0
        %2775 = vmatprep.subr.mxu0 0.0
        %2776 = vmatpush2.msra.mxu0 0.0
        %2777 = vmatprep.subr.mxu0 0.0
        %2778 = vmatpush2.msra.mxu0 0.0
        %2779 = vmatprep.subr.mxu0 0.0
        %2780 = vmatpush2.msra.mxu0 0.0
        %2781 = vmatprep.subr.mxu0 0.0
        %2782 = vmatpush2.msra.mxu0 0.0
        %2783 = vmatprep.subr.mxu0 0.0
        %2784 = vmatpush2.msra.mxu0 0.0
        %2785 = vmatprep.subr.mxu0 0.0
        %2786 = vmatpush2.msra.mxu0 0.0
        %2787 = vmatprep.subr.mxu0 0.0
        %2788 = vmatpush2.msra.mxu0 0.0
        %2789 = vmatprep.subr.mxu0 0.0
        %2790 = vmatpush2.msra.mxu0 0.0
        %2791 = vmatprep.subr.mxu0 0.0
        %2792 = vmatpush2.msra.mxu0 0.0
        %2793 = vmatprep.subr.mxu0 0.0
        %2794 = vmatpush2.msra.mxu0 0.0
        %2795 = vmatprep.mubr.f32.mxu0 0.0
        %2796 = vmatmul.mubr.f32.gmra.mxu0 %v2726
        %v2797 = vpop.f32.mrf.mxu0
        %v2798 = vadd.f32 %v2724, %v2797
        %v2799 = vpop.f32.mrf.mxu0
        %2800 = vdwg.mxu0
        %vm2801 = vcmask 73728
        %2802 = vst.msk [vmem:[%s486] sm:$0x1] %vm2801, %v2798
        %s2803 = sand.u32 %s357, 1
        %s2804 = scalar_lea.sflag [#allocation3], %s2803
        %s2805 = sand.u32 %s357, 1
        %s2806 = scalar_lea.vmem [#allocation2], %s2805
        // Predicated region
        $region81: #{net_forward.1} parent=79 // pred_check
          %p2807 = pneg %p367
        $region82: #{net_forward.1} parent=79 // pred_check_branch
          %2809 = sbr.rel (%p2807) target = $region84
        $region83: #{net_forward.1} parent=79 // pred_region
          %s2811 = ssub.s32 16, 16
          %2812 = vsyncadd %s2804, %s2811
          %s2813 = smul.addr %s29, 16
          %s2814 = scalar_lea.hbm %s15, %s2813
          %s2816 = sshll.u32 %s2806, 4
          %s2817 = int_to_ptr.vmem [resolvable:$true] %s2816
          %2819 = dma.vmem_to_hbm [thread:$0]  %s2817, 16, %s2814, %s2804
        $region84: #{net_forward.1} parent=79 // pred_fallthru
          _
      $region80: #{net_forward.1} parent=5 // pred_fallthru
        _
      %p2820 = scmp.le.s32.totalorder 2, %s24
      // Predicated region
      $region85: #{net_forward.1} parent=5 // pred_check
        %p2821 = pneg %p2820
      $region86: #{net_forward.1} parent=5 // pred_check_branch
        %2823 = sbr.rel (%p2821) target = $region88
      $region87: #{net_forward.1} parent=5 // pred_region
        %s2824 = ssub.s32 %s24, 2
        // Predicated region
        $region89: #{net_forward.1} parent=87 // pred_check
          %p2825 = pneg %p373
        $region90: #{net_forward.1} parent=87 // pred_check_branch
          %2827 = sbr.rel (%p2825) target = $region92
        $region91: #{net_forward.1} parent=87 // pred_region
          %s2828 = sand.u32 %s358, 1
          %s2829 = scalar_lea.sflag [#allocation3], %s2828
          %s2830 = sand.u32 %s358, 1
          %s2831 = scalar_lea.vmem [#allocation2], %s2830
          %2832 = dma.done %s2829, 16
        $region92: #{net_forward.1} parent=87 // pred_fallthru
          _
      $region88: #{net_forward.1} parent=5 // pred_fallthru
        _
    $region6: #{net_forward.1} parent=1 // loop_footer
      %s28 = sadd.s32 1, %s24
    $region7: #{net_forward.1} parent=1 // loop_footer_branch
      %23 = sbr.rel target = $region3
    $region8: #{net_forward.1} parent=1 // loop_exit
      _
    %2833 = vsyncpa [#allocation3], 1
    %s2834 = scalar_lea.sflag [#allocation3], 1
    %2835 = vsyncpa %s2834, 1

</llo_original>
